<compile_context>
chip_gen: v7x
topology: tpu7x:2x2x1
jax: 0.10.0
libtpu: 0.0.40
codegen_flags: <defaults>
</compile_context>

<pallas_src>
import jax
import jax.numpy as jnp
from jax.experimental import pallas as pl
from jax.experimental.pallas import tpu as pltpu

hidden_size = 64
input_size = 3
num_layers = 3
output_size = 24

_FC_PAD = 128  # lane-dense output width for the fused FC head


def _lstm_recurrence(gates_ref, whh_ref, T, B, H, seq_ref):
    """Recurrent part of one LSTM layer.

    gates_ref : (T*B, 4H) VMEM ref holding X @ W_ih + (b_ih + b_hh).
    whh_ref   : (H, 4H) recurrent weight ref (loaded once per layer).
    seq_ref   : optional (T*B, H) VMEM ref; if given, each step's h is stored
                there (consumed by the next layer's single input projection).
    Returns the final hidden state h_{T-1} of shape (B, H).
    """
    whh = whh_ref[...]                        # hoisted: loaded once per layer
    h = jnp.zeros((B, H), jnp.float32)
    c = jnp.zeros((B, H), jnp.float32)
    for t in range(T):                        # T static -> fully unrolled,
        #                                       all slices static & 8-row aligned
        gates = gates_ref[t * B:(t + 1) * B, :] + jnp.dot(
            h, whh, preferred_element_type=jnp.float32)          # (B, 4H)
        # PyTorch gate order: i, f, g, o.  sigmoid on the 128-lane [i|f] slab,
        # tanh on g, sigmoid on o — only the EUP work that is actually needed.
        if_sig = jax.nn.sigmoid(gates[:, 0:2 * H])
        i_g = if_sig[:, 0:H]
        f_g = if_sig[:, H:2 * H]
        g_g = jnp.tanh(gates[:, 2 * H:3 * H])
        o_g = jax.nn.sigmoid(gates[:, 3 * H:4 * H])
        c = f_g * c + i_g * g_g
        h = o_g * jnp.tanh(c)
        if seq_ref is not None:
            seq_ref[t * B:(t + 1) * B, :] = h
    return h


def fused_lstm_fc_kernel(x_ref,
                         wih0_ref, whh0_ref, b0_ref,
                         wih1_ref, whh1_ref, b1_ref,
                         wih2_ref, whh2_ref, b2_ref,
                         wfc_ref, bfc_ref,
                         out_ref,
                         seq0_ref, seq1_ref, gates_ref):
    TB, H = seq0_ref.shape
    B = out_ref.shape[0]
    T = TB // B

    # ---- layer 0: one big input-projection matmul, then the recurrence. ----
    gates_ref[...] = (
        jnp.dot(x_ref[...], wih0_ref[...], preferred_element_type=jnp.float32)
        + b0_ref[...])
    _lstm_recurrence(gates_ref, whh0_ref, T, B, H, seq0_ref)

    # ---- layer 1: reads layer-0 sequence straight from VMEM. ----
    gates_ref[...] = (
        jnp.dot(seq0_ref[...], wih1_ref[...], preferred_element_type=jnp.float32)
        + b1_ref[...])
    _lstm_recurrence(gates_ref, whh1_ref, T, B, H, seq1_ref)

    # ---- layer 2 (last): only the final hidden state is needed. ----
    gates_ref[...] = (
        jnp.dot(seq1_ref[...], wih2_ref[...], preferred_element_type=jnp.float32)
        + b2_ref[...])
    h_last = _lstm_recurrence(gates_ref, whh2_ref, T, B, H, None)

    # ---- FC head fused in: out = h_{T-1} @ W_fc^T + b_fc (lane-padded). ----
    out_ref[...] = (
        jnp.dot(h_last, wfc_ref[...], preferred_element_type=jnp.float32)
        + bfc_ref[...])


@jax.jit
def lstm_model_forward(x_btd, params):
    """x_btd: (B, T, input_size) batch-first, like the PyTorch module."""
    x = x_btd.astype(jnp.float32)
    B, T, Din = x.shape
    H = hidden_size
    B_pad = ((B + 7) // 8) * 8                # pad batch to sublane granularity

    # time-major, batch padded, flattened -> (T*B_pad, Din) so each layer's
    # input projection is a single matmul inside the kernel.
    x_tb = jnp.transpose(x, (1, 0, 2))
    x_tb = jnp.pad(x_tb, ((0, 0), (0, B_pad - B), (0, 0)))
    x2d = x_tb.reshape(T * B_pad, Din)

    (wih0, whh0, b0), (wih1, whh1, b1), (wih2, whh2, b2) = params["layers"]
    wfc, bfc = params["fc"]

    # Lane-pad the FC head to 128 output columns -> unmasked lane-dense store.
    n_out = wfc.shape[1]
    wfc_p = jnp.pad(wfc, ((0, 0), (0, _FC_PAD - n_out)))
    bfc_p = jnp.pad(bfc, ((0, 0), (0, _FC_PAD - n_out)))

    out_pad = pl.pallas_call(
        fused_lstm_fc_kernel,
        out_shape=jax.ShapeDtypeStruct((B_pad, _FC_PAD), jnp.float32),
        in_specs=[pl.BlockSpec(memory_space=pltpu.MemorySpace.VMEM)] * 12,
        out_specs=pl.BlockSpec(memory_space=pltpu.MemorySpace.VMEM),
        scratch_shapes=[
            pltpu.VMEM((T * B_pad, H), jnp.float32),       # layer-0 hidden seq
            pltpu.VMEM((T * B_pad, H), jnp.float32),       # layer-1 hidden seq
            pltpu.VMEM((T * B_pad, 4 * H), jnp.float32),   # precomputed gates
        ],
    )(x2d, wih0, whh0, b0, wih1, whh1, b1, wih2, whh2, b2, wfc_p, bfc_p)
    return out_pad[:B, :n_out]


def init_params(key):
    """Deterministic init matching PyTorch nn.LSTM/nn.Linear shapes.
    PyTorch stores weight_ih (4H, Din), weight_hh (4H, H); we keep transposed
    copies and fold b_ih + b_hh into a single (1, 4H) bias."""
    k = 1.0 / jnp.sqrt(jnp.float32(hidden_size))
    layers = []
    for layer in range(num_layers):
        din = input_size if layer == 0 else hidden_size
        key, k1, k2, k3, k4 = jax.random.split(key, 5)
        w_ih = jax.random.uniform(k1, (4 * hidden_size, din), jnp.float32, -k, k)
        w_hh = jax.random.uniform(k2, (4 * hidden_size, hidden_size), jnp.float32, -k, k)
        b_ih = jax.random.uniform(k3, (4 * hidden_size,), jnp.float32, -k, k)
        b_hh = jax.random.uniform(k4, (4 * hidden_size,), jnp.float32, -k, k)
        layers.append((w_ih.T, w_hh.T, (b_ih + b_hh)[None, :]))
    key, k5, k6 = jax.random.split(key, 3)
    kf = 1.0 / jnp.sqrt(jnp.float32(hidden_size))
    w_fc = jax.random.uniform(k5, (output_size, hidden_size), jnp.float32, -kf, kf)
    b_fc = jax.random.uniform(k6, (output_size,), jnp.float32, -kf, kf)
    return {"layers": layers, "fc": (w_fc.T, b_fc[None, :])}


def reference_forward(x_btd, params):
    """Pure-JAX reference of the same LSTM forward, for a correctness check."""
    x = jnp.transpose(x_btd, (1, 0, 2)).astype(jnp.float32)  # (T, B, Din)
    T, B, _ = x.shape
    h_seq = x
    for wih_t, whh_t, bias in params["layers"]:
        H = whh_t.shape[0]
        h = jnp.zeros((B, H), jnp.float32)
        c = jnp.zeros((B, H), jnp.float32)
        outs = []
        for t in range(T):
            gates = h_seq[t] @ wih_t + h @ whh_t + bias
            i = jax.nn.sigmoid(gates[:, 0 * H:1 * H])
            f = jax.nn.sigmoid(gates[:, 1 * H:2 * H])
            g = jnp.tanh(gates[:, 2 * H:3 * H])
            o = jax.nn.sigmoid(gates[:, 3 * H:4 * H])
            c = f * c + i * g
            h = o * jnp.tanh(c)
            outs.append(h)
        h_seq = jnp.stack(outs, axis=0)
    wfc_t, bfc = params["fc"]
    return h_seq[-1] @ wfc_t + bfc


if __name__ == "__main__":
    key = jax.random.PRNGKey(0)
    key, xk, pk = jax.random.split(key, 3)

    batch, seq_len = 2, 8
    x = jax.random.normal(xk, (batch, seq_len, input_size), jnp.float32)
    params = init_params(pk)

    out = lstm_model_forward(x, params)
    out = jax.block_until_ready(out)
    assert out.shape == (batch, output_size), out.shape

    ref = reference_forward(x, params)
    assert jnp.allclose(out, ref, rtol=1e-4, atol=1e-4), (
        float(jnp.max(jnp.abs(out - ref)))
    )

    print("KERNEL_OK")
</pallas_src>

<mosaic_0001>
module attributes {stable_mosaic.version = 11 : i64} {
  func.func @fused_lstm_fc_kernel(%arg0: memref<64x3xf32, #tpu.memory_space<vmem>>, %arg1: memref<3x256xf32, #tpu.memory_space<vmem>>, %arg2: memref<64x256xf32, #tpu.memory_space<vmem>>, %arg3: memref<1x256xf32, #tpu.memory_space<vmem>>, %arg4: memref<64x256xf32, #tpu.memory_space<vmem>>, %arg5: memref<64x256xf32, #tpu.memory_space<vmem>>, %arg6: memref<1x256xf32, #tpu.memory_space<vmem>>, %arg7: memref<64x256xf32, #tpu.memory_space<vmem>>, %arg8: memref<64x256xf32, #tpu.memory_space<vmem>>, %arg9: memref<1x256xf32, #tpu.memory_space<vmem>>, %arg10: memref<64x128xf32, #tpu.memory_space<vmem>>, %arg11: memref<1x128xf32, #tpu.memory_space<vmem>>, %arg12: memref<8x128xf32, #tpu.memory_space<vmem>>, %arg13: memref<64x64xf32, #tpu.memory_space<vmem>>, %arg14: memref<64x64xf32, #tpu.memory_space<vmem>>, %arg15: memref<64x256xf32, #tpu.memory_space<vmem>>) attributes {dimension_semantics = [], scalar_prefetch = 0 : i64, scratch_operands = 3 : i64, tpu.core_type = #tpu.core_type<tc>} {
    %c0 = arith.constant 0 : index
    %c0_0 = arith.constant 0 : index
    %0 = vector.load %arg0[%c0, %c0_0] : memref<64x3xf32, #tpu.memory_space<vmem>>, vector<64x3xf32>
    %c0_1 = arith.constant 0 : index
    %c0_2 = arith.constant 0 : index
    %1 = vector.load %arg1[%c0_1, %c0_2] : memref<3x256xf32, #tpu.memory_space<vmem>>, vector<3x256xf32>
    %cst = arith.constant dense<0.000000e+00> : vector<64x256xf32>
    %2 = tpu.matmul %0, %1, %cst {dimension_numbers = #tpu.dot_dimension_numbers<[1], [0], [0], [1], [0, 0, 1, 1], [], []>} : vector<64x3xf32>, vector<3x256xf32>, vector<64x256xf32> -> vector<64x256xf32>
    %c0_3 = arith.constant 0 : index
    %c0_4 = arith.constant 0 : index
    %3 = vector.load %arg3[%c0_3, %c0_4] : memref<1x256xf32, #tpu.memory_space<vmem>>, vector<1x256xf32>
    %4 = vector.broadcast %3 : vector<1x256xf32> to vector<64x256xf32>
    %5 = arith.addf %2, %4 : vector<64x256xf32>
    %c0_5 = arith.constant 0 : index
    %c0_6 = arith.constant 0 : index
    %6 = vector.load %arg15[%c0_5, %c0_6] : memref<64x256xf32, #tpu.memory_space<vmem>>, vector<64x256xf32>
    tpu.vector_store %arg15[%c0_5, %c0_6], %5 {strides = array<i32>} : memref<64x256xf32, #tpu.memory_space<vmem>>, vector<64x256xf32>,
    %c0_7 = arith.constant 0 : index
    %c0_8 = arith.constant 0 : index
    %7 = vector.load %arg2[%c0_7, %c0_8] : memref<64x256xf32, #tpu.memory_space<vmem>>, vector<64x256xf32>
    %cst_9 = arith.constant 0.000000e+00 : f32
    %8 = vector.broadcast %cst_9 : f32 to vector<8x64xf32>
    %cst_10 = arith.constant 0.000000e+00 : f32
    %9 = vector.broadcast %cst_10 : f32 to vector<8x64xf32>
    %c0_11 = arith.constant 0 : index
    %c0_12 = arith.constant 0 : index
    %10 = vector.load %arg15[%c0_11, %c0_12] : memref<64x256xf32, #tpu.memory_space<vmem>>, vector<8x256xf32>
    %cst_13 = arith.constant dense<0.000000e+00> : vector<8x256xf32>
    %11 = tpu.matmul %8, %7, %cst_13 {dimension_numbers = #tpu.dot_dimension_numbers<[1], [0], [0], [1], [0, 0, 1, 1], [], []>} : vector<8x64xf32>, vector<64x256xf32>, vector<8x256xf32> -> vector<8x256xf32>
    %12 = arith.addf %10, %11 : vector<8x256xf32>
    %13 = vector.extract_strided_slice %12 {offsets = [0, 0], sizes = [8, 128], strides = [1, 1]} : vector<8x256xf32> to vector<8x128xf32>
    %14 = arith.negf %13 : vector<8x128xf32>
    %15 = math.exp %14 : vector<8x128xf32>
    %cst_14 = arith.constant 1.000000e+00 : f32
    %16 = vector.broadcast %cst_14 : f32 to vector<8x128xf32>
    %17 = arith.addf %16, %15 : vector<8x128xf32>
    %18 = arith.divf %16, %17 : vector<8x128xf32>
    %19 = vector.extract_strided_slice %18 {offsets = [0, 0], sizes = [8, 64], strides = [1, 1]} : vector<8x128xf32> to vector<8x64xf32>
    %20 = vector.extract_strided_slice %18 {offsets = [0, 64], sizes = [8, 64], strides = [1, 1]} : vector<8x128xf32> to vector<8x64xf32>
    %21 = vector.extract_strided_slice %12 {offsets = [0, 128], sizes = [8, 64], strides = [1, 1]} : vector<8x256xf32> to vector<8x64xf32>
    %22 = math.tanh %21 : vector<8x64xf32>
    %23 = vector.extract_strided_slice %12 {offsets = [0, 192], sizes = [8, 64], strides = [1, 1]} : vector<8x256xf32> to vector<8x64xf32>
    %24 = arith.negf %23 : vector<8x64xf32>
    %25 = math.exp %24 : vector<8x64xf32>
    %cst_15 = arith.constant 1.000000e+00 : f32
    %26 = vector.broadcast %cst_15 : f32 to vector<8x64xf32>
    %27 = arith.addf %26, %25 : vector<8x64xf32>
    %28 = arith.divf %26, %27 : vector<8x64xf32>
    %29 = arith.mulf %20, %9 : vector<8x64xf32>
    %30 = arith.mulf %19, %22 : vector<8x64xf32>
    %31 = arith.addf %29, %30 : vector<8x64xf32>
    %32 = math.tanh %31 : vector<8x64xf32>
    %33 = arith.mulf %28, %32 : vector<8x64xf32>
    %c0_16 = arith.constant 0 : index
    %c0_17 = arith.constant 0 : index
    %34 = vector.load %arg13[%c0_16, %c0_17] : memref<64x64xf32, #tpu.memory_space<vmem>>, vector<8x64xf32>
    tpu.vector_store %arg13[%c0_16, %c0_17], %33 {strides = array<i32>} : memref<64x64xf32, #tpu.memory_space<vmem>>, vector<8x64xf32>,
    %c8 = arith.constant 8 : index
    %c0_18 = arith.constant 0 : index
    %35 = vector.load %arg15[%c8, %c0_18] : memref<64x256xf32, #tpu.memory_space<vmem>>, vector<8x256xf32>
    %cst_19 = arith.constant dense<0.000000e+00> : vector<8x256xf32>
    %36 = tpu.matmul %33, %7, %cst_19 {dimension_numbers = #tpu.dot_dimension_numbers<[1], [0], [0], [1], [0, 0, 1, 1], [], []>} : vector<8x64xf32>, vector<64x256xf32>, vector<8x256xf32> -> vector<8x256xf32>
    %37 = arith.addf %35, %36 : vector<8x256xf32>
    %38 = vector.extract_strided_slice %37 {offsets = [0, 0], sizes = [8, 128], strides = [1, 1]} : vector<8x256xf32> to vector<8x128xf32>
    %39 = arith.negf %38 : vector<8x128xf32>
    %40 = math.exp %39 : vector<8x128xf32>
    %cst_20 = arith.constant 1.000000e+00 : f32
    %41 = vector.broadcast %cst_20 : f32 to vector<8x128xf32>
    %42 = arith.addf %41, %40 : vector<8x128xf32>
    %43 = arith.divf %41, %42 : vector<8x128xf32>
    %44 = vector.extract_strided_slice %43 {offsets = [0, 0], sizes = [8, 64], strides = [1, 1]} : vector<8x128xf32> to vector<8x64xf32>
    %45 = vector.extract_strided_slice %43 {offsets = [0, 64], sizes = [8, 64], strides = [1, 1]} : vector<8x128xf32> to vector<8x64xf32>
    %46 = vector.extract_strided_slice %37 {offsets = [0, 128], sizes = [8, 64], strides = [1, 1]} : vector<8x256xf32> to vector<8x64xf32>
    %47 = math.tanh %46 : vector<8x64xf32>
    %48 = vector.extract_strided_slice %37 {offsets = [0, 192], sizes = [8, 64], strides = [1, 1]} : vector<8x256xf32> to vector<8x64xf32>
    %49 = arith.negf %48 : vector<8x64xf32>
    %50 = math.exp %49 : vector<8x64xf32>
    %cst_21 = arith.constant 1.000000e+00 : f32
    %51 = vector.broadcast %cst_21 : f32 to vector<8x64xf32>
    %52 = arith.addf %51, %50 : vector<8x64xf32>
    %53 = arith.divf %51, %52 : vector<8x64xf32>
    %54 = arith.mulf %45, %31 : vector<8x64xf32>
    %55 = arith.mulf %44, %47 : vector<8x64xf32>
    %56 = arith.addf %54, %55 : vector<8x64xf32>
    %57 = math.tanh %56 : vector<8x64xf32>
    %58 = arith.mulf %53, %57 : vector<8x64xf32>
    %c8_22 = arith.constant 8 : index
    %c0_23 = arith.constant 0 : index
    %59 = vector.load %arg13[%c8_22, %c0_23] : memref<64x64xf32, #tpu.memory_space<vmem>>, vector<8x64xf32>
    tpu.vector_store %arg13[%c8_22, %c0_23], %58 {strides = array<i32>} : memref<64x64xf32, #tpu.memory_space<vmem>>, vector<8x64xf32>,
    %c16 = arith.constant 16 : index
    %c0_24 = arith.constant 0 : index
    %60 = vector.load %arg15[%c16, %c0_24] : memref<64x256xf32, #tpu.memory_space<vmem>>, vector<8x256xf32>
    %cst_25 = arith.constant dense<0.000000e+00> : vector<8x256xf32>
    %61 = tpu.matmul %58, %7, %cst_25 {dimension_numbers = #tpu.dot_dimension_numbers<[1], [0], [0], [1], [0, 0, 1, 1], [], []>} : vector<8x64xf32>, vector<64x256xf32>, vector<8x256xf32> -> vector<8x256xf32>
    %62 = arith.addf %60, %61 : vector<8x256xf32>
    %63 = vector.extract_strided_slice %62 {offsets = [0, 0], sizes = [8, 128], strides = [1, 1]} : vector<8x256xf32> to vector<8x128xf32>
    %64 = arith.negf %63 : vector<8x128xf32>
    %65 = math.exp %64 : vector<8x128xf32>
    %cst_26 = arith.constant 1.000000e+00 : f32
    %66 = vector.broadcast %cst_26 : f32 to vector<8x128xf32>
    %67 = arith.addf %66, %65 : vector<8x128xf32>
    %68 = arith.divf %66, %67 : vector<8x128xf32>
    %69 = vector.extract_strided_slice %68 {offsets = [0, 0], sizes = [8, 64], strides = [1, 1]} : vector<8x128xf32> to vector<8x64xf32>
    %70 = vector.extract_strided_slice %68 {offsets = [0, 64], sizes = [8, 64], strides = [1, 1]} : vector<8x128xf32> to vector<8x64xf32>
    %71 = vector.extract_strided_slice %62 {offsets = [0, 128], sizes = [8, 64], strides = [1, 1]} : vector<8x256xf32> to vector<8x64xf32>
    %72 = math.tanh %71 : vector<8x64xf32>
    %73 = vector.extract_strided_slice %62 {offsets = [0, 192], sizes = [8, 64], strides = [1, 1]} : vector<8x256xf32> to vector<8x64xf32>
    %74 = arith.negf %73 : vector<8x64xf32>
    %75 = math.exp %74 : vector<8x64xf32>
    %cst_27 = arith.constant 1.000000e+00 : f32
    %76 = vector.broadcast %cst_27 : f32 to vector<8x64xf32>
    %77 = arith.addf %76, %75 : vector<8x64xf32>
    %78 = arith.divf %76, %77 : vector<8x64xf32>
    %79 = arith.mulf %70, %56 : vector<8x64xf32>
    %80 = arith.mulf %69, %72 : vector<8x64xf32>
    %81 = arith.addf %79, %80 : vector<8x64xf32>
    %82 = math.tanh %81 : vector<8x64xf32>
    %83 = arith.mulf %78, %82 : vector<8x64xf32>
    %c16_28 = arith.constant 16 : index
    %c0_29 = arith.constant 0 : index
    %84 = vector.load %arg13[%c16_28, %c0_29] : memref<64x64xf32, #tpu.memory_space<vmem>>, vector<8x64xf32>
    tpu.vector_store %arg13[%c16_28, %c0_29], %83 {strides = array<i32>} : memref<64x64xf32, #tpu.memory_space<vmem>>, vector<8x64xf32>,
    %c24 = arith.constant 24 : index
    %c0_30 = arith.constant 0 : index
    %85 = vector.load %arg15[%c24, %c0_30] : memref<64x256xf32, #tpu.memory_space<vmem>>, vector<8x256xf32>
    %cst_31 = arith.constant dense<0.000000e+00> : vector<8x256xf32>
    %86 = tpu.matmul %83, %7, %cst_31 {dimension_numbers = #tpu.dot_dimension_numbers<[1], [0], [0], [1], [0, 0, 1, 1], [], []>} : vector<8x64xf32>, vector<64x256xf32>, vector<8x256xf32> -> vector<8x256xf32>
    %87 = arith.addf %85, %86 : vector<8x256xf32>
    %88 = vector.extract_strided_slice %87 {offsets = [0, 0], sizes = [8, 128], strides = [1, 1]} : vector<8x256xf32> to vector<8x128xf32>
    %89 = arith.negf %88 : vector<8x128xf32>
    %90 = math.exp %89 : vector<8x128xf32>
    %cst_32 = arith.constant 1.000000e+00 : f32
    %91 = vector.broadcast %cst_32 : f32 to vector<8x128xf32>
    %92 = arith.addf %91, %90 : vector<8x128xf32>
    %93 = arith.divf %91, %92 : vector<8x128xf32>
    %94 = vector.extract_strided_slice %93 {offsets = [0, 0], sizes = [8, 64], strides = [1, 1]} : vector<8x128xf32> to vector<8x64xf32>
    %95 = vector.extract_strided_slice %93 {offsets = [0, 64], sizes = [8, 64], strides = [1, 1]} : vector<8x128xf32> to vector<8x64xf32>
    %96 = vector.extract_strided_slice %87 {offsets = [0, 128], sizes = [8, 64], strides = [1, 1]} : vector<8x256xf32> to vector<8x64xf32>
    %97 = math.tanh %96 : vector<8x64xf32>
    %98 = vector.extract_strided_slice %87 {offsets = [0, 192], sizes = [8, 64], strides = [1, 1]} : vector<8x256xf32> to vector<8x64xf32>
    %99 = arith.negf %98 : vector<8x64xf32>
    %100 = math.exp %99 : vector<8x64xf32>
    %cst_33 = arith.constant 1.000000e+00 : f32
    %101 = vector.broadcast %cst_33 : f32 to vector<8x64xf32>
    %102 = arith.addf %101, %100 : vector<8x64xf32>
    %103 = arith.divf %101, %102 : vector<8x64xf32>
    %104 = arith.mulf %95, %81 : vector<8x64xf32>
    %105 = arith.mulf %94, %97 : vector<8x64xf32>
    %106 = arith.addf %104, %105 : vector<8x64xf32>
    %107 = math.tanh %106 : vector<8x64xf32>
    %108 = arith.mulf %103, %107 : vector<8x64xf32>
    %c24_34 = arith.constant 24 : index
    %c0_35 = arith.constant 0 : index
    %109 = vector.load %arg13[%c24_34, %c0_35] : memref<64x64xf32, #tpu.memory_space<vmem>>, vector<8x64xf32>
    tpu.vector_store %arg13[%c24_34, %c0_35], %108 {strides = array<i32>} : memref<64x64xf32, #tpu.memory_space<vmem>>, vector<8x64xf32>,
    %c32 = arith.constant 32 : index
    %c0_36 = arith.constant 0 : index
    %110 = vector.load %arg15[%c32, %c0_36] : memref<64x256xf32, #tpu.memory_space<vmem>>, vector<8x256xf32>
    %cst_37 = arith.constant dense<0.000000e+00> : vector<8x256xf32>
    %111 = tpu.matmul %108, %7, %cst_37 {dimension_numbers = #tpu.dot_dimension_numbers<[1], [0], [0], [1], [0, 0, 1, 1], [], []>} : vector<8x64xf32>, vector<64x256xf32>, vector<8x256xf32> -> vector<8x256xf32>
    %112 = arith.addf %110, %111 : vector<8x256xf32>
    %113 = vector.extract_strided_slice %112 {offsets = [0, 0], sizes = [8, 128], strides = [1, 1]} : vector<8x256xf32> to vector<8x128xf32>
    %114 = arith.negf %113 : vector<8x128xf32>
    %115 = math.exp %114 : vector<8x128xf32>
    %cst_38 = arith.constant 1.000000e+00 : f32
    %116 = vector.broadcast %cst_38 : f32 to vector<8x128xf32>
    %117 = arith.addf %116, %115 : vector<8x128xf32>
    %118 = arith.divf %116, %117 : vector<8x128xf32>
    %119 = vector.extract_strided_slice %118 {offsets = [0, 0], sizes = [8, 64], strides = [1, 1]} : vector<8x128xf32> to vector<8x64xf32>
    %120 = vector.extract_strided_slice %118 {offsets = [0, 64], sizes = [8, 64], strides = [1, 1]} : vector<8x128xf32> to vector<8x64xf32>
    %121 = vector.extract_strided_slice %112 {offsets = [0, 128], sizes = [8, 64], strides = [1, 1]} : vector<8x256xf32> to vector<8x64xf32>
    %122 = math.tanh %121 : vector<8x64xf32>
    %123 = vector.extract_strided_slice %112 {offsets = [0, 192], sizes = [8, 64], strides = [1, 1]} : vector<8x256xf32> to vector<8x64xf32>
    %124 = arith.negf %123 : vector<8x64xf32>
    %125 = math.exp %124 : vector<8x64xf32>
    %cst_39 = arith.constant 1.000000e+00 : f32
    %126 = vector.broadcast %cst_39 : f32 to vector<8x64xf32>
    %127 = arith.addf %126, %125 : vector<8x64xf32>
    %128 = arith.divf %126, %127 : vector<8x64xf32>
    %129 = arith.mulf %120, %106 : vector<8x64xf32>
    %130 = arith.mulf %119, %122 : vector<8x64xf32>
    %131 = arith.addf %129, %130 : vector<8x64xf32>
    %132 = math.tanh %131 : vector<8x64xf32>
    %133 = arith.mulf %128, %132 : vector<8x64xf32>
    %c32_40 = arith.constant 32 : index
    %c0_41 = arith.constant 0 : index
    %134 = vector.load %arg13[%c32_40, %c0_41] : memref<64x64xf32, #tpu.memory_space<vmem>>, vector<8x64xf32>
    tpu.vector_store %arg13[%c32_40, %c0_41], %133 {strides = array<i32>} : memref<64x64xf32, #tpu.memory_space<vmem>>, vector<8x64xf32>,
    %c40 = arith.constant 40 : index
    %c0_42 = arith.constant 0 : index
    %135 = vector.load %arg15[%c40, %c0_42] : memref<64x256xf32, #tpu.memory_space<vmem>>, vector<8x256xf32>
    %cst_43 = arith.constant dense<0.000000e+00> : vector<8x256xf32>
    %136 = tpu.matmul %133, %7, %cst_43 {dimension_numbers = #tpu.dot_dimension_numbers<[1], [0], [0], [1], [0, 0, 1, 1], [], []>} : vector<8x64xf32>, vector<64x256xf32>, vector<8x256xf32> -> vector<8x256xf32>
    %137 = arith.addf %135, %136 : vector<8x256xf32>
    %138 = vector.extract_strided_slice %137 {offsets = [0, 0], sizes = [8, 128], strides = [1, 1]} : vector<8x256xf32> to vector<8x128xf32>
    %139 = arith.negf %138 : vector<8x128xf32>
    %140 = math.exp %139 : vector<8x128xf32>
    %cst_44 = arith.constant 1.000000e+00 : f32
    %141 = vector.broadcast %cst_44 : f32 to vector<8x128xf32>
    %142 = arith.addf %141, %140 : vector<8x128xf32>
    %143 = arith.divf %141, %142 : vector<8x128xf32>
    %144 = vector.extract_strided_slice %143 {offsets = [0, 0], sizes = [8, 64], strides = [1, 1]} : vector<8x128xf32> to vector<8x64xf32>
    %145 = vector.extract_strided_slice %143 {offsets = [0, 64], sizes = [8, 64], strides = [1, 1]} : vector<8x128xf32> to vector<8x64xf32>
    %146 = vector.extract_strided_slice %137 {offsets = [0, 128], sizes = [8, 64], strides = [1, 1]} : vector<8x256xf32> to vector<8x64xf32>
    %147 = math.tanh %146 : vector<8x64xf32>
    %148 = vector.extract_strided_slice %137 {offsets = [0, 192], sizes = [8, 64], strides = [1, 1]} : vector<8x256xf32> to vector<8x64xf32>
    %149 = arith.negf %148 : vector<8x64xf32>
    %150 = math.exp %149 : vector<8x64xf32>
    %cst_45 = arith.constant 1.000000e+00 : f32
    %151 = vector.broadcast %cst_45 : f32 to vector<8x64xf32>
    %152 = arith.addf %151, %150 : vector<8x64xf32>
    %153 = arith.divf %151, %152 : vector<8x64xf32>
    %154 = arith.mulf %145, %131 : vector<8x64xf32>
    %155 = arith.mulf %144, %147 : vector<8x64xf32>
    %156 = arith.addf %154, %155 : vector<8x64xf32>
    %157 = math.tanh %156 : vector<8x64xf32>
    %158 = arith.mulf %153, %157 : vector<8x64xf32>
    %c40_46 = arith.constant 40 : index
    %c0_47 = arith.constant 0 : index
    %159 = vector.load %arg13[%c40_46, %c0_47] : memref<64x64xf32, #tpu.memory_space<vmem>>, vector<8x64xf32>
    tpu.vector_store %arg13[%c40_46, %c0_47], %158 {strides = array<i32>} : memref<64x64xf32, #tpu.memory_space<vmem>>, vector<8x64xf32>,
    %c48 = arith.constant 48 : index
    %c0_48 = arith.constant 0 : index
    %160 = vector.load %arg15[%c48, %c0_48] : memref<64x256xf32, #tpu.memory_space<vmem>>, vector<8x256xf32>
    %cst_49 = arith.constant dense<0.000000e+00> : vector<8x256xf32>
    %161 = tpu.matmul %158, %7, %cst_49 {dimension_numbers = #tpu.dot_dimension_numbers<[1], [0], [0], [1], [0, 0, 1, 1], [], []>} : vector<8x64xf32>, vector<64x256xf32>, vector<8x256xf32> -> vector<8x256xf32>
    %162 = arith.addf %160, %161 : vector<8x256xf32>
    %163 = vector.extract_strided_slice %162 {offsets = [0, 0], sizes = [8, 128], strides = [1, 1]} : vector<8x256xf32> to vector<8x128xf32>
    %164 = arith.negf %163 : vector<8x128xf32>
    %165 = math.exp %164 : vector<8x128xf32>
    %cst_50 = arith.constant 1.000000e+00 : f32
    %166 = vector.broadcast %cst_50 : f32 to vector<8x128xf32>
    %167 = arith.addf %166, %165 : vector<8x128xf32>
    %168 = arith.divf %166, %167 : vector<8x128xf32>
    %169 = vector.extract_strided_slice %168 {offsets = [0, 0], sizes = [8, 64], strides = [1, 1]} : vector<8x128xf32> to vector<8x64xf32>
    %170 = vector.extract_strided_slice %168 {offsets = [0, 64], sizes = [8, 64], strides = [1, 1]} : vector<8x128xf32> to vector<8x64xf32>
    %171 = vector.extract_strided_slice %162 {offsets = [0, 128], sizes = [8, 64], strides = [1, 1]} : vector<8x256xf32> to vector<8x64xf32>
    %172 = math.tanh %171 : vector<8x64xf32>
    %173 = vector.extract_strided_slice %162 {offsets = [0, 192], sizes = [8, 64], strides = [1, 1]} : vector<8x256xf32> to vector<8x64xf32>
    %174 = arith.negf %173 : vector<8x64xf32>
    %175 = math.exp %174 : vector<8x64xf32>
    %cst_51 = arith.constant 1.000000e+00 : f32
    %176 = vector.broadcast %cst_51 : f32 to vector<8x64xf32>
    %177 = arith.addf %176, %175 : vector<8x64xf32>
    %178 = arith.divf %176, %177 : vector<8x64xf32>
    %179 = arith.mulf %170, %156 : vector<8x64xf32>
    %180 = arith.mulf %169, %172 : vector<8x64xf32>
    %181 = arith.addf %179, %180 : vector<8x64xf32>
    %182 = math.tanh %181 : vector<8x64xf32>
    %183 = arith.mulf %178, %182 : vector<8x64xf32>
    %c48_52 = arith.constant 48 : index
    %c0_53 = arith.constant 0 : index
    %184 = vector.load %arg13[%c48_52, %c0_53] : memref<64x64xf32, #tpu.memory_space<vmem>>, vector<8x64xf32>
    tpu.vector_store %arg13[%c48_52, %c0_53], %183 {strides = array<i32>} : memref<64x64xf32, #tpu.memory_space<vmem>>, vector<8x64xf32>,
    %c56 = arith.constant 56 : index
    %c0_54 = arith.constant 0 : index
    %185 = vector.load %arg15[%c56, %c0_54] : memref<64x256xf32, #tpu.memory_space<vmem>>, vector<8x256xf32>
    %cst_55 = arith.constant dense<0.000000e+00> : vector<8x256xf32>
    %186 = tpu.matmul %183, %7, %cst_55 {dimension_numbers = #tpu.dot_dimension_numbers<[1], [0], [0], [1], [0, 0, 1, 1], [], []>} : vector<8x64xf32>, vector<64x256xf32>, vector<8x256xf32> -> vector<8x256xf32>
    %187 = arith.addf %185, %186 : vector<8x256xf32>
    %188 = vector.extract_strided_slice %187 {offsets = [0, 0], sizes = [8, 128], strides = [1, 1]} : vector<8x256xf32> to vector<8x128xf32>
    %189 = arith.negf %188 : vector<8x128xf32>
    %190 = math.exp %189 : vector<8x128xf32>
    %cst_56 = arith.constant 1.000000e+00 : f32
    %191 = vector.broadcast %cst_56 : f32 to vector<8x128xf32>
    %192 = arith.addf %191, %190 : vector<8x128xf32>
    %193 = arith.divf %191, %192 : vector<8x128xf32>
    %194 = vector.extract_strided_slice %193 {offsets = [0, 0], sizes = [8, 64], strides = [1, 1]} : vector<8x128xf32> to vector<8x64xf32>
    %195 = vector.extract_strided_slice %193 {offsets = [0, 64], sizes = [8, 64], strides = [1, 1]} : vector<8x128xf32> to vector<8x64xf32>
    %196 = vector.extract_strided_slice %187 {offsets = [0, 128], sizes = [8, 64], strides = [1, 1]} : vector<8x256xf32> to vector<8x64xf32>
    %197 = math.tanh %196 : vector<8x64xf32>
    %198 = vector.extract_strided_slice %187 {offsets = [0, 192], sizes = [8, 64], strides = [1, 1]} : vector<8x256xf32> to vector<8x64xf32>
    %199 = arith.negf %198 : vector<8x64xf32>
    %200 = math.exp %199 : vector<8x64xf32>
    %cst_57 = arith.constant 1.000000e+00 : f32
    %201 = vector.broadcast %cst_57 : f32 to vector<8x64xf32>
    %202 = arith.addf %201, %200 : vector<8x64xf32>
    %203 = arith.divf %201, %202 : vector<8x64xf32>
    %204 = arith.mulf %195, %181 : vector<8x64xf32>
    %205 = arith.mulf %194, %197 : vector<8x64xf32>
    %206 = arith.addf %204, %205 : vector<8x64xf32>
    %207 = math.tanh %206 : vector<8x64xf32>
    %208 = arith.mulf %203, %207 : vector<8x64xf32>
    %c56_58 = arith.constant 56 : index
    %c0_59 = arith.constant 0 : index
    %209 = vector.load %arg13[%c56_58, %c0_59] : memref<64x64xf32, #tpu.memory_space<vmem>>, vector<8x64xf32>
    tpu.vector_store %arg13[%c56_58, %c0_59], %208 {strides = array<i32>} : memref<64x64xf32, #tpu.memory_space<vmem>>, vector<8x64xf32>,
    %c0_60 = arith.constant 0 : index
    %c0_61 = arith.constant 0 : index
    %210 = vector.load %arg13[%c0_60, %c0_61] : memref<64x64xf32, #tpu.memory_space<vmem>>, vector<64x64xf32>
    %c0_62 = arith.constant 0 : index
    %c0_63 = arith.constant 0 : index
    %211 = vector.load %arg4[%c0_62, %c0_63] : memref<64x256xf32, #tpu.memory_space<vmem>>, vector<64x256xf32>
    %cst_64 = arith.constant dense<0.000000e+00> : vector<64x256xf32>
    %212 = tpu.matmul %210, %211, %cst_64 {dimension_numbers = #tpu.dot_dimension_numbers<[1], [0], [0], [1], [0, 0, 1, 1], [], []>} : vector<64x64xf32>, vector<64x256xf32>, vector<64x256xf32> -> vector<64x256xf32>
    %c0_65 = arith.constant 0 : index
    %c0_66 = arith.constant 0 : index
    %213 = vector.load %arg6[%c0_65, %c0_66] : memref<1x256xf32, #tpu.memory_space<vmem>>, vector<1x256xf32>
    %214 = vector.broadcast %213 : vector<1x256xf32> to vector<64x256xf32>
    %215 = arith.addf %212, %214 : vector<64x256xf32>
    %c0_67 = arith.constant 0 : index
    %c0_68 = arith.constant 0 : index
    %216 = vector.load %arg15[%c0_67, %c0_68] : memref<64x256xf32, #tpu.memory_space<vmem>>, vector<64x256xf32>
    tpu.vector_store %arg15[%c0_67, %c0_68], %215 {strides = array<i32>} : memref<64x256xf32, #tpu.memory_space<vmem>>, vector<64x256xf32>,
    %c0_69 = arith.constant 0 : index
    %c0_70 = arith.constant 0 : index
    %217 = vector.load %arg5[%c0_69, %c0_70] : memref<64x256xf32, #tpu.memory_space<vmem>>, vector<64x256xf32>
    %cst_71 = arith.constant 0.000000e+00 : f32
    %218 = vector.broadcast %cst_71 : f32 to vector<8x64xf32>
    %cst_72 = arith.constant 0.000000e+00 : f32
    %219 = vector.broadcast %cst_72 : f32 to vector<8x64xf32>
    %c0_73 = arith.constant 0 : index
    %c0_74 = arith.constant 0 : index
    %220 = vector.load %arg15[%c0_73, %c0_74] : memref<64x256xf32, #tpu.memory_space<vmem>>, vector<8x256xf32>
    %cst_75 = arith.constant dense<0.000000e+00> : vector<8x256xf32>
    %221 = tpu.matmul %218, %217, %cst_75 {dimension_numbers = #tpu.dot_dimension_numbers<[1], [0], [0], [1], [0, 0, 1, 1], [], []>} : vector<8x64xf32>, vector<64x256xf32>, vector<8x256xf32> -> vector<8x256xf32>
    %222 = arith.addf %220, %221 : vector<8x256xf32>
    %223 = vector.extract_strided_slice %222 {offsets = [0, 0], sizes = [8, 128], strides = [1, 1]} : vector<8x256xf32> to vector<8x128xf32>
    %224 = arith.negf %223 : vector<8x128xf32>
    %225 = math.exp %224 : vector<8x128xf32>
    %cst_76 = arith.constant 1.000000e+00 : f32
    %226 = vector.broadcast %cst_76 : f32 to vector<8x128xf32>
    %227 = arith.addf %226, %225 : vector<8x128xf32>
    %228 = arith.divf %226, %227 : vector<8x128xf32>
    %229 = vector.extract_strided_slice %228 {offsets = [0, 0], sizes = [8, 64], strides = [1, 1]} : vector<8x128xf32> to vector<8x64xf32>
    %230 = vector.extract_strided_slice %228 {offsets = [0, 64], sizes = [8, 64], strides = [1, 1]} : vector<8x128xf32> to vector<8x64xf32>
    %231 = vector.extract_strided_slice %222 {offsets = [0, 128], sizes = [8, 64], strides = [1, 1]} : vector<8x256xf32> to vector<8x64xf32>
    %232 = math.tanh %231 : vector<8x64xf32>
    %233 = vector.extract_strided_slice %222 {offsets = [0, 192], sizes = [8, 64], strides = [1, 1]} : vector<8x256xf32> to vector<8x64xf32>
    %234 = arith.negf %233 : vector<8x64xf32>
    %235 = math.exp %234 : vector<8x64xf32>
    %cst_77 = arith.constant 1.000000e+00 : f32
    %236 = vector.broadcast %cst_77 : f32 to vector<8x64xf32>
    %237 = arith.addf %236, %235 : vector<8x64xf32>
    %238 = arith.divf %236, %237 : vector<8x64xf32>
    %239 = arith.mulf %230, %219 : vector<8x64xf32>
    %240 = arith.mulf %229, %232 : vector<8x64xf32>
    %241 = arith.addf %239, %240 : vector<8x64xf32>
    %242 = math.tanh %241 : vector<8x64xf32>
    %243 = arith.mulf %238, %242 : vector<8x64xf32>
    %c0_78 = arith.constant 0 : index
    %c0_79 = arith.constant 0 : index
    %244 = vector.load %arg14[%c0_78, %c0_79] : memref<64x64xf32, #tpu.memory_space<vmem>>, vector<8x64xf32>
    tpu.vector_store %arg14[%c0_78, %c0_79], %243 {strides = array<i32>} : memref<64x64xf32, #tpu.memory_space<vmem>>, vector<8x64xf32>,
    %c8_80 = arith.constant 8 : index
    %c0_81 = arith.constant 0 : index
    %245 = vector.load %arg15[%c8_80, %c0_81] : memref<64x256xf32, #tpu.memory_space<vmem>>, vector<8x256xf32>
    %cst_82 = arith.constant dense<0.000000e+00> : vector<8x256xf32>
    %246 = tpu.matmul %243, %217, %cst_82 {dimension_numbers = #tpu.dot_dimension_numbers<[1], [0], [0], [1], [0, 0, 1, 1], [], []>} : vector<8x64xf32>, vector<64x256xf32>, vector<8x256xf32> -> vector<8x256xf32>
    %247 = arith.addf %245, %246 : vector<8x256xf32>
    %248 = vector.extract_strided_slice %247 {offsets = [0, 0], sizes = [8, 128], strides = [1, 1]} : vector<8x256xf32> to vector<8x128xf32>
    %249 = arith.negf %248 : vector<8x128xf32>
    %250 = math.exp %249 : vector<8x128xf32>
    %cst_83 = arith.constant 1.000000e+00 : f32
    %251 = vector.broadcast %cst_83 : f32 to vector<8x128xf32>
    %252 = arith.addf %251, %250 : vector<8x128xf32>
    %253 = arith.divf %251, %252 : vector<8x128xf32>
    %254 = vector.extract_strided_slice %253 {offsets = [0, 0], sizes = [8, 64], strides = [1, 1]} : vector<8x128xf32> to vector<8x64xf32>
    %255 = vector.extract_strided_slice %253 {offsets = [0, 64], sizes = [8, 64], strides = [1, 1]} : vector<8x128xf32> to vector<8x64xf32>
    %256 = vector.extract_strided_slice %247 {offsets = [0, 128], sizes = [8, 64], strides = [1, 1]} : vector<8x256xf32> to vector<8x64xf32>
    %257 = math.tanh %256 : vector<8x64xf32>
    %258 = vector.extract_strided_slice %247 {offsets = [0, 192], sizes = [8, 64], strides = [1, 1]} : vector<8x256xf32> to vector<8x64xf32>
    %259 = arith.negf %258 : vector<8x64xf32>
    %260 = math.exp %259 : vector<8x64xf32>
    %cst_84 = arith.constant 1.000000e+00 : f32
    %261 = vector.broadcast %cst_84 : f32 to vector<8x64xf32>
    %262 = arith.addf %261, %260 : vector<8x64xf32>
    %263 = arith.divf %261, %262 : vector<8x64xf32>
    %264 = arith.mulf %255, %241 : vector<8x64xf32>
    %265 = arith.mulf %254, %257 : vector<8x64xf32>
    %266 = arith.addf %264, %265 : vector<8x64xf32>
    %267 = math.tanh %266 : vector<8x64xf32>
    %268 = arith.mulf %263, %267 : vector<8x64xf32>
    %c8_85 = arith.constant 8 : index
    %c0_86 = arith.constant 0 : index
    %269 = vector.load %arg14[%c8_85, %c0_86] : memref<64x64xf32, #tpu.memory_space<vmem>>, vector<8x64xf32>
    tpu.vector_store %arg14[%c8_85, %c0_86], %268 {strides = array<i32>} : memref<64x64xf32, #tpu.memory_space<vmem>>, vector<8x64xf32>,
    %c16_87 = arith.constant 16 : index
    %c0_88 = arith.constant 0 : index
    %270 = vector.load %arg15[%c16_87, %c0_88] : memref<64x256xf32, #tpu.memory_space<vmem>>, vector<8x256xf32>
    %cst_89 = arith.constant dense<0.000000e+00> : vector<8x256xf32>
    %271 = tpu.matmul %268, %217, %cst_89 {dimension_numbers = #tpu.dot_dimension_numbers<[1], [0], [0], [1], [0, 0, 1, 1], [], []>} : vector<8x64xf32>, vector<64x256xf32>, vector<8x256xf32> -> vector<8x256xf32>
    %272 = arith.addf %270, %271 : vector<8x256xf32>
    %273 = vector.extract_strided_slice %272 {offsets = [0, 0], sizes = [8, 128], strides = [1, 1]} : vector<8x256xf32> to vector<8x128xf32>
    %274 = arith.negf %273 : vector<8x128xf32>
    %275 = math.exp %274 : vector<8x128xf32>
    %cst_90 = arith.constant 1.000000e+00 : f32
    %276 = vector.broadcast %cst_90 : f32 to vector<8x128xf32>
    %277 = arith.addf %276, %275 : vector<8x128xf32>
    %278 = arith.divf %276, %277 : vector<8x128xf32>
    %279 = vector.extract_strided_slice %278 {offsets = [0, 0], sizes = [8, 64], strides = [1, 1]} : vector<8x128xf32> to vector<8x64xf32>
    %280 = vector.extract_strided_slice %278 {offsets = [0, 64], sizes = [8, 64], strides = [1, 1]} : vector<8x128xf32> to vector<8x64xf32>
    %281 = vector.extract_strided_slice %272 {offsets = [0, 128], sizes = [8, 64], strides = [1, 1]} : vector<8x256xf32> to vector<8x64xf32>
    %282 = math.tanh %281 : vector<8x64xf32>
    %283 = vector.extract_strided_slice %272 {offsets = [0, 192], sizes = [8, 64], strides = [1, 1]} : vector<8x256xf32> to vector<8x64xf32>
    %284 = arith.negf %283 : vector<8x64xf32>
    %285 = math.exp %284 : vector<8x64xf32>
    %cst_91 = arith.constant 1.000000e+00 : f32
    %286 = vector.broadcast %cst_91 : f32 to vector<8x64xf32>
    %287 = arith.addf %286, %285 : vector<8x64xf32>
    %288 = arith.divf %286, %287 : vector<8x64xf32>
    %289 = arith.mulf %280, %266 : vector<8x64xf32>
    %290 = arith.mulf %279, %282 : vector<8x64xf32>
    %291 = arith.addf %289, %290 : vector<8x64xf32>
    %292 = math.tanh %291 : vector<8x64xf32>
    %293 = arith.mulf %288, %292 : vector<8x64xf32>
    %c16_92 = arith.constant 16 : index
    %c0_93 = arith.constant 0 : index
    %294 = vector.load %arg14[%c16_92, %c0_93] : memref<64x64xf32, #tpu.memory_space<vmem>>, vector<8x64xf32>
    tpu.vector_store %arg14[%c16_92, %c0_93], %293 {strides = array<i32>} : memref<64x64xf32, #tpu.memory_space<vmem>>, vector<8x64xf32>,
    %c24_94 = arith.constant 24 : index
    %c0_95 = arith.constant 0 : index
    %295 = vector.load %arg15[%c24_94, %c0_95] : memref<64x256xf32, #tpu.memory_space<vmem>>, vector<8x256xf32>
    %cst_96 = arith.constant dense<0.000000e+00> : vector<8x256xf32>
    %296 = tpu.matmul %293, %217, %cst_96 {dimension_numbers = #tpu.dot_dimension_numbers<[1], [0], [0], [1], [0, 0, 1, 1], [], []>} : vector<8x64xf32>, vector<64x256xf32>, vector<8x256xf32> -> vector<8x256xf32>
    %297 = arith.addf %295, %296 : vector<8x256xf32>
    %298 = vector.extract_strided_slice %297 {offsets = [0, 0], sizes = [8, 128], strides = [1, 1]} : vector<8x256xf32> to vector<8x128xf32>
    %299 = arith.negf %298 : vector<8x128xf32>
    %300 = math.exp %299 : vector<8x128xf32>
    %cst_97 = arith.constant 1.000000e+00 : f32
    %301 = vector.broadcast %cst_97 : f32 to vector<8x128xf32>
    %302 = arith.addf %301, %300 : vector<8x128xf32>
    %303 = arith.divf %301, %302 : vector<8x128xf32>
    %304 = vector.extract_strided_slice %303 {offsets = [0, 0], sizes = [8, 64], strides = [1, 1]} : vector<8x128xf32> to vector<8x64xf32>
    %305 = vector.extract_strided_slice %303 {offsets = [0, 64], sizes = [8, 64], strides = [1, 1]} : vector<8x128xf32> to vector<8x64xf32>
    %306 = vector.extract_strided_slice %297 {offsets = [0, 128], sizes = [8, 64], strides = [1, 1]} : vector<8x256xf32> to vector<8x64xf32>
    %307 = math.tanh %306 : vector<8x64xf32>
    %308 = vector.extract_strided_slice %297 {offsets = [0, 192], sizes = [8, 64], strides = [1, 1]} : vector<8x256xf32> to vector<8x64xf32>
    %309 = arith.negf %308 : vector<8x64xf32>
    %310 = math.exp %309 : vector<8x64xf32>
    %cst_98 = arith.constant 1.000000e+00 : f32
    %311 = vector.broadcast %cst_98 : f32 to vector<8x64xf32>
    %312 = arith.addf %311, %310 : vector<8x64xf32>
    %313 = arith.divf %311, %312 : vector<8x64xf32>
    %314 = arith.mulf %305, %291 : vector<8x64xf32>
    %315 = arith.mulf %304, %307 : vector<8x64xf32>
    %316 = arith.addf %314, %315 : vector<8x64xf32>
    %317 = math.tanh %316 : vector<8x64xf32>
    %318 = arith.mulf %313, %317 : vector<8x64xf32>
    %c24_99 = arith.constant 24 : index
    %c0_100 = arith.constant 0 : index
    %319 = vector.load %arg14[%c24_99, %c0_100] : memref<64x64xf32, #tpu.memory_space<vmem>>, vector<8x64xf32>
    tpu.vector_store %arg14[%c24_99, %c0_100], %318 {strides = array<i32>} : memref<64x64xf32, #tpu.memory_space<vmem>>, vector<8x64xf32>,
    %c32_101 = arith.constant 32 : index
    %c0_102 = arith.constant 0 : index
    %320 = vector.load %arg15[%c32_101, %c0_102] : memref<64x256xf32, #tpu.memory_space<vmem>>, vector<8x256xf32>
    %cst_103 = arith.constant dense<0.000000e+00> : vector<8x256xf32>
    %321 = tpu.matmul %318, %217, %cst_103 {dimension_numbers = #tpu.dot_dimension_numbers<[1], [0], [0], [1], [0, 0, 1, 1], [], []>} : vector<8x64xf32>, vector<64x256xf32>, vector<8x256xf32> -> vector<8x256xf32>
    %322 = arith.addf %320, %321 : vector<8x256xf32>
    %323 = vector.extract_strided_slice %322 {offsets = [0, 0], sizes = [8, 128], strides = [1, 1]} : vector<8x256xf32> to vector<8x128xf32>
    %324 = arith.negf %323 : vector<8x128xf32>
    %325 = math.exp %324 : vector<8x128xf32>
    %cst_104 = arith.constant 1.000000e+00 : f32
    %326 = vector.broadcast %cst_104 : f32 to vector<8x128xf32>
    %327 = arith.addf %326, %325 : vector<8x128xf32>
    %328 = arith.divf %326, %327 : vector<8x128xf32>
    %329 = vector.extract_strided_slice %328 {offsets = [0, 0], sizes = [8, 64], strides = [1, 1]} : vector<8x128xf32> to vector<8x64xf32>
    %330 = vector.extract_strided_slice %328 {offsets = [0, 64], sizes = [8, 64], strides = [1, 1]} : vector<8x128xf32> to vector<8x64xf32>
    %331 = vector.extract_strided_slice %322 {offsets = [0, 128], sizes = [8, 64], strides = [1, 1]} : vector<8x256xf32> to vector<8x64xf32>
    %332 = math.tanh %331 : vector<8x64xf32>
    %333 = vector.extract_strided_slice %322 {offsets = [0, 192], sizes = [8, 64], strides = [1, 1]} : vector<8x256xf32> to vector<8x64xf32>
    %334 = arith.negf %333 : vector<8x64xf32>
    %335 = math.exp %334 : vector<8x64xf32>
    %cst_105 = arith.constant 1.000000e+00 : f32
    %336 = vector.broadcast %cst_105 : f32 to vector<8x64xf32>
    %337 = arith.addf %336, %335 : vector<8x64xf32>
    %338 = arith.divf %336, %337 : vector<8x64xf32>
    %339 = arith.mulf %330, %316 : vector<8x64xf32>
    %340 = arith.mulf %329, %332 : vector<8x64xf32>
    %341 = arith.addf %339, %340 : vector<8x64xf32>
    %342 = math.tanh %341 : vector<8x64xf32>
    %343 = arith.mulf %338, %342 : vector<8x64xf32>
    %c32_106 = arith.constant 32 : index
    %c0_107 = arith.constant 0 : index
    %344 = vector.load %arg14[%c32_106, %c0_107] : memref<64x64xf32, #tpu.memory_space<vmem>>, vector<8x64xf32>
    tpu.vector_store %arg14[%c32_106, %c0_107], %343 {strides = array<i32>} : memref<64x64xf32, #tpu.memory_space<vmem>>, vector<8x64xf32>,
    %c40_108 = arith.constant 40 : index
    %c0_109 = arith.constant 0 : index
    %345 = vector.load %arg15[%c40_108, %c0_109] : memref<64x256xf32, #tpu.memory_space<vmem>>, vector<8x256xf32>
    %cst_110 = arith.constant dense<0.000000e+00> : vector<8x256xf32>
    %346 = tpu.matmul %343, %217, %cst_110 {dimension_numbers = #tpu.dot_dimension_numbers<[1], [0], [0], [1], [0, 0, 1, 1], [], []>} : vector<8x64xf32>, vector<64x256xf32>, vector<8x256xf32> -> vector<8x256xf32>
    %347 = arith.addf %345, %346 : vector<8x256xf32>
    %348 = vector.extract_strided_slice %347 {offsets = [0, 0], sizes = [8, 128], strides = [1, 1]} : vector<8x256xf32> to vector<8x128xf32>
    %349 = arith.negf %348 : vector<8x128xf32>
    %350 = math.exp %349 : vector<8x128xf32>
    %cst_111 = arith.constant 1.000000e+00 : f32
    %351 = vector.broadcast %cst_111 : f32 to vector<8x128xf32>
    %352 = arith.addf %351, %350 : vector<8x128xf32>
    %353 = arith.divf %351, %352 : vector<8x128xf32>
    %354 = vector.extract_strided_slice %353 {offsets = [0, 0], sizes = [8, 64], strides = [1, 1]} : vector<8x128xf32> to vector<8x64xf32>
    %355 = vector.extract_strided_slice %353 {offsets = [0, 64], sizes = [8, 64], strides = [1, 1]} : vector<8x128xf32> to vector<8x64xf32>
    %356 = vector.extract_strided_slice %347 {offsets = [0, 128], sizes = [8, 64], strides = [1, 1]} : vector<8x256xf32> to vector<8x64xf32>
    %357 = math.tanh %356 : vector<8x64xf32>
    %358 = vector.extract_strided_slice %347 {offsets = [0, 192], sizes = [8, 64], strides = [1, 1]} : vector<8x256xf32> to vector<8x64xf32>
    %359 = arith.negf %358 : vector<8x64xf32>
    %360 = math.exp %359 : vector<8x64xf32>
    %cst_112 = arith.constant 1.000000e+00 : f32
    %361 = vector.broadcast %cst_112 : f32 to vector<8x64xf32>
    %362 = arith.addf %361, %360 : vector<8x64xf32>
    %363 = arith.divf %361, %362 : vector<8x64xf32>
    %364 = arith.mulf %355, %341 : vector<8x64xf32>
    %365 = arith.mulf %354, %357 : vector<8x64xf32>
    %366 = arith.addf %364, %365 : vector<8x64xf32>
    %367 = math.tanh %366 : vector<8x64xf32>
    %368 = arith.mulf %363, %367 : vector<8x64xf32>
    %c40_113 = arith.constant 40 : index
    %c0_114 = arith.constant 0 : index
    %369 = vector.load %arg14[%c40_113, %c0_114] : memref<64x64xf32, #tpu.memory_space<vmem>>, vector<8x64xf32>
    tpu.vector_store %arg14[%c40_113, %c0_114], %368 {strides = array<i32>} : memref<64x64xf32, #tpu.memory_space<vmem>>, vector<8x64xf32>,
    %c48_115 = arith.constant 48 : index
    %c0_116 = arith.constant 0 : index
    %370 = vector.load %arg15[%c48_115, %c0_116] : memref<64x256xf32, #tpu.memory_space<vmem>>, vector<8x256xf32>
    %cst_117 = arith.constant dense<0.000000e+00> : vector<8x256xf32>
    %371 = tpu.matmul %368, %217, %cst_117 {dimension_numbers = #tpu.dot_dimension_numbers<[1], [0], [0], [1], [0, 0, 1, 1], [], []>} : vector<8x64xf32>, vector<64x256xf32>, vector<8x256xf32> -> vector<8x256xf32>
    %372 = arith.addf %370, %371 : vector<8x256xf32>
    %373 = vector.extract_strided_slice %372 {offsets = [0, 0], sizes = [8, 128], strides = [1, 1]} : vector<8x256xf32> to vector<8x128xf32>
    %374 = arith.negf %373 : vector<8x128xf32>
    %375 = math.exp %374 : vector<8x128xf32>
    %cst_118 = arith.constant 1.000000e+00 : f32
    %376 = vector.broadcast %cst_118 : f32 to vector<8x128xf32>
    %377 = arith.addf %376, %375 : vector<8x128xf32>
    %378 = arith.divf %376, %377 : vector<8x128xf32>
    %379 = vector.extract_strided_slice %378 {offsets = [0, 0], sizes = [8, 64], strides = [1, 1]} : vector<8x128xf32> to vector<8x64xf32>
    %380 = vector.extract_strided_slice %378 {offsets = [0, 64], sizes = [8, 64], strides = [1, 1]} : vector<8x128xf32> to vector<8x64xf32>
    %381 = vector.extract_strided_slice %372 {offsets = [0, 128], sizes = [8, 64], strides = [1, 1]} : vector<8x256xf32> to vector<8x64xf32>
    %382 = math.tanh %381 : vector<8x64xf32>
    %383 = vector.extract_strided_slice %372 {offsets = [0, 192], sizes = [8, 64], strides = [1, 1]} : vector<8x256xf32> to vector<8x64xf32>
    %384 = arith.negf %383 : vector<8x64xf32>
    %385 = math.exp %384 : vector<8x64xf32>
    %cst_119 = arith.constant 1.000000e+00 : f32
    %386 = vector.broadcast %cst_119 : f32 to vector<8x64xf32>
    %387 = arith.addf %386, %385 : vector<8x64xf32>
    %388 = arith.divf %386, %387 : vector<8x64xf32>
    %389 = arith.mulf %380, %366 : vector<8x64xf32>
    %390 = arith.mulf %379, %382 : vector<8x64xf32>
    %391 = arith.addf %389, %390 : vector<8x64xf32>
    %392 = math.tanh %391 : vector<8x64xf32>
    %393 = arith.mulf %388, %392 : vector<8x64xf32>
    %c48_120 = arith.constant 48 : index
    %c0_121 = arith.constant 0 : index
    %394 = vector.load %arg14[%c48_120, %c0_121] : memref<64x64xf32, #tpu.memory_space<vmem>>, vector<8x64xf32>
    tpu.vector_store %arg14[%c48_120, %c0_121], %393 {strides = array<i32>} : memref<64x64xf32, #tpu.memory_space<vmem>>, vector<8x64xf32>,
    %c56_122 = arith.constant 56 : index
    %c0_123 = arith.constant 0 : index
    %395 = vector.load %arg15[%c56_122, %c0_123] : memref<64x256xf32, #tpu.memory_space<vmem>>, vector<8x256xf32>
    %cst_124 = arith.constant dense<0.000000e+00> : vector<8x256xf32>
    %396 = tpu.matmul %393, %217, %cst_124 {dimension_numbers = #tpu.dot_dimension_numbers<[1], [0], [0], [1], [0, 0, 1, 1], [], []>} : vector<8x64xf32>, vector<64x256xf32>, vector<8x256xf32> -> vector<8x256xf32>
    %397 = arith.addf %395, %396 : vector<8x256xf32>
    %398 = vector.extract_strided_slice %397 {offsets = [0, 0], sizes = [8, 128], strides = [1, 1]} : vector<8x256xf32> to vector<8x128xf32>
    %399 = arith.negf %398 : vector<8x128xf32>
    %400 = math.exp %399 : vector<8x128xf32>
    %cst_125 = arith.constant 1.000000e+00 : f32
    %401 = vector.broadcast %cst_125 : f32 to vector<8x128xf32>
    %402 = arith.addf %401, %400 : vector<8x128xf32>
    %403 = arith.divf %401, %402 : vector<8x128xf32>
    %404 = vector.extract_strided_slice %403 {offsets = [0, 0], sizes = [8, 64], strides = [1, 1]} : vector<8x128xf32> to vector<8x64xf32>
    %405 = vector.extract_strided_slice %403 {offsets = [0, 64], sizes = [8, 64], strides = [1, 1]} : vector<8x128xf32> to vector<8x64xf32>
    %406 = vector.extract_strided_slice %397 {offsets = [0, 128], sizes = [8, 64], strides = [1, 1]} : vector<8x256xf32> to vector<8x64xf32>
    %407 = math.tanh %406 : vector<8x64xf32>
    %408 = vector.extract_strided_slice %397 {offsets = [0, 192], sizes = [8, 64], strides = [1, 1]} : vector<8x256xf32> to vector<8x64xf32>
    %409 = arith.negf %408 : vector<8x64xf32>
    %410 = math.exp %409 : vector<8x64xf32>
    %cst_126 = arith.constant 1.000000e+00 : f32
    %411 = vector.broadcast %cst_126 : f32 to vector<8x64xf32>
    %412 = arith.addf %411, %410 : vector<8x64xf32>
    %413 = arith.divf %411, %412 : vector<8x64xf32>
    %414 = arith.mulf %405, %391 : vector<8x64xf32>
    %415 = arith.mulf %404, %407 : vector<8x64xf32>
    %416 = arith.addf %414, %415 : vector<8x64xf32>
    %417 = math.tanh %416 : vector<8x64xf32>
    %418 = arith.mulf %413, %417 : vector<8x64xf32>
    %c56_127 = arith.constant 56 : index
    %c0_128 = arith.constant 0 : index
    %419 = vector.load %arg14[%c56_127, %c0_128] : memref<64x64xf32, #tpu.memory_space<vmem>>, vector<8x64xf32>
    tpu.vector_store %arg14[%c56_127, %c0_128], %418 {strides = array<i32>} : memref<64x64xf32, #tpu.memory_space<vmem>>, vector<8x64xf32>,
    %c0_129 = arith.constant 0 : index
    %c0_130 = arith.constant 0 : index
    %420 = vector.load %arg14[%c0_129, %c0_130] : memref<64x64xf32, #tpu.memory_space<vmem>>, vector<64x64xf32>
    %c0_131 = arith.constant 0 : index
    %c0_132 = arith.constant 0 : index
    %421 = vector.load %arg7[%c0_131, %c0_132] : memref<64x256xf32, #tpu.memory_space<vmem>>, vector<64x256xf32>
    %cst_133 = arith.constant dense<0.000000e+00> : vector<64x256xf32>
    %422 = tpu.matmul %420, %421, %cst_133 {dimension_numbers = #tpu.dot_dimension_numbers<[1], [0], [0], [1], [0, 0, 1, 1], [], []>} : vector<64x64xf32>, vector<64x256xf32>, vector<64x256xf32> -> vector<64x256xf32>
    %c0_134 = arith.constant 0 : index
    %c0_135 = arith.constant 0 : index
    %423 = vector.load %arg9[%c0_134, %c0_135] : memref<1x256xf32, #tpu.memory_space<vmem>>, vector<1x256xf32>
    %424 = vector.broadcast %423 : vector<1x256xf32> to vector<64x256xf32>
    %425 = arith.addf %422, %424 : vector<64x256xf32>
    %c0_136 = arith.constant 0 : index
    %c0_137 = arith.constant 0 : index
    %426 = vector.load %arg15[%c0_136, %c0_137] : memref<64x256xf32, #tpu.memory_space<vmem>>, vector<64x256xf32>
    tpu.vector_store %arg15[%c0_136, %c0_137], %425 {strides = array<i32>} : memref<64x256xf32, #tpu.memory_space<vmem>>, vector<64x256xf32>,
    %c0_138 = arith.constant 0 : index
    %c0_139 = arith.constant 0 : index
    %427 = vector.load %arg8[%c0_138, %c0_139] : memref<64x256xf32, #tpu.memory_space<vmem>>, vector<64x256xf32>
    %cst_140 = arith.constant 0.000000e+00 : f32
    %428 = vector.broadcast %cst_140 : f32 to vector<8x64xf32>
    %cst_141 = arith.constant 0.000000e+00 : f32
    %429 = vector.broadcast %cst_141 : f32 to vector<8x64xf32>
    %c0_142 = arith.constant 0 : index
    %c0_143 = arith.constant 0 : index
    %430 = vector.load %arg15[%c0_142, %c0_143] : memref<64x256xf32, #tpu.memory_space<vmem>>, vector<8x256xf32>
    %cst_144 = arith.constant dense<0.000000e+00> : vector<8x256xf32>
    %431 = tpu.matmul %428, %427, %cst_144 {dimension_numbers = #tpu.dot_dimension_numbers<[1], [0], [0], [1], [0, 0, 1, 1], [], []>} : vector<8x64xf32>, vector<64x256xf32>, vector<8x256xf32> -> vector<8x256xf32>
    %432 = arith.addf %430, %431 : vector<8x256xf32>
    %433 = vector.extract_strided_slice %432 {offsets = [0, 0], sizes = [8, 128], strides = [1, 1]} : vector<8x256xf32> to vector<8x128xf32>
    %434 = arith.negf %433 : vector<8x128xf32>
    %435 = math.exp %434 : vector<8x128xf32>
    %cst_145 = arith.constant 1.000000e+00 : f32
    %436 = vector.broadcast %cst_145 : f32 to vector<8x128xf32>
    %437 = arith.addf %436, %435 : vector<8x128xf32>
    %438 = arith.divf %436, %437 : vector<8x128xf32>
    %439 = vector.extract_strided_slice %438 {offsets = [0, 0], sizes = [8, 64], strides = [1, 1]} : vector<8x128xf32> to vector<8x64xf32>
    %440 = vector.extract_strided_slice %438 {offsets = [0, 64], sizes = [8, 64], strides = [1, 1]} : vector<8x128xf32> to vector<8x64xf32>
    %441 = vector.extract_strided_slice %432 {offsets = [0, 128], sizes = [8, 64], strides = [1, 1]} : vector<8x256xf32> to vector<8x64xf32>
    %442 = math.tanh %441 : vector<8x64xf32>
    %443 = vector.extract_strided_slice %432 {offsets = [0, 192], sizes = [8, 64], strides = [1, 1]} : vector<8x256xf32> to vector<8x64xf32>
    %444 = arith.negf %443 : vector<8x64xf32>
    %445 = math.exp %444 : vector<8x64xf32>
    %cst_146 = arith.constant 1.000000e+00 : f32
    %446 = vector.broadcast %cst_146 : f32 to vector<8x64xf32>
    %447 = arith.addf %446, %445 : vector<8x64xf32>
    %448 = arith.divf %446, %447 : vector<8x64xf32>
    %449 = arith.mulf %440, %429 : vector<8x64xf32>
    %450 = arith.mulf %439, %442 : vector<8x64xf32>
    %451 = arith.addf %449, %450 : vector<8x64xf32>
    %452 = math.tanh %451 : vector<8x64xf32>
    %453 = arith.mulf %448, %452 : vector<8x64xf32>
    %c8_147 = arith.constant 8 : index
    %c0_148 = arith.constant 0 : index
    %454 = vector.load %arg15[%c8_147, %c0_148] : memref<64x256xf32, #tpu.memory_space<vmem>>, vector<8x256xf32>
    %cst_149 = arith.constant dense<0.000000e+00> : vector<8x256xf32>
    %455 = tpu.matmul %453, %427, %cst_149 {dimension_numbers = #tpu.dot_dimension_numbers<[1], [0], [0], [1], [0, 0, 1, 1], [], []>} : vector<8x64xf32>, vector<64x256xf32>, vector<8x256xf32> -> vector<8x256xf32>
    %456 = arith.addf %454, %455 : vector<8x256xf32>
    %457 = vector.extract_strided_slice %456 {offsets = [0, 0], sizes = [8, 128], strides = [1, 1]} : vector<8x256xf32> to vector<8x128xf32>
    %458 = arith.negf %457 : vector<8x128xf32>
    %459 = math.exp %458 : vector<8x128xf32>
    %cst_150 = arith.constant 1.000000e+00 : f32
    %460 = vector.broadcast %cst_150 : f32 to vector<8x128xf32>
    %461 = arith.addf %460, %459 : vector<8x128xf32>
    %462 = arith.divf %460, %461 : vector<8x128xf32>
    %463 = vector.extract_strided_slice %462 {offsets = [0, 0], sizes = [8, 64], strides = [1, 1]} : vector<8x128xf32> to vector<8x64xf32>
    %464 = vector.extract_strided_slice %462 {offsets = [0, 64], sizes = [8, 64], strides = [1, 1]} : vector<8x128xf32> to vector<8x64xf32>
    %465 = vector.extract_strided_slice %456 {offsets = [0, 128], sizes = [8, 64], strides = [1, 1]} : vector<8x256xf32> to vector<8x64xf32>
    %466 = math.tanh %465 : vector<8x64xf32>
    %467 = vector.extract_strided_slice %456 {offsets = [0, 192], sizes = [8, 64], strides = [1, 1]} : vector<8x256xf32> to vector<8x64xf32>
    %468 = arith.negf %467 : vector<8x64xf32>
    %469 = math.exp %468 : vector<8x64xf32>
    %cst_151 = arith.constant 1.000000e+00 : f32
    %470 = vector.broadcast %cst_151 : f32 to vector<8x64xf32>
    %471 = arith.addf %470, %469 : vector<8x64xf32>
    %472 = arith.divf %470, %471 : vector<8x64xf32>
    %473 = arith.mulf %464, %451 : vector<8x64xf32>
    %474 = arith.mulf %463, %466 : vector<8x64xf32>
    %475 = arith.addf %473, %474 : vector<8x64xf32>
    %476 = math.tanh %475 : vector<8x64xf32>
    %477 = arith.mulf %472, %476 : vector<8x64xf32>
    %c16_152 = arith.constant 16 : index
    %c0_153 = arith.constant 0 : index
    %478 = vector.load %arg15[%c16_152, %c0_153] : memref<64x256xf32, #tpu.memory_space<vmem>>, vector<8x256xf32>
    %cst_154 = arith.constant dense<0.000000e+00> : vector<8x256xf32>
    %479 = tpu.matmul %477, %427, %cst_154 {dimension_numbers = #tpu.dot_dimension_numbers<[1], [0], [0], [1], [0, 0, 1, 1], [], []>} : vector<8x64xf32>, vector<64x256xf32>, vector<8x256xf32> -> vector<8x256xf32>
    %480 = arith.addf %478, %479 : vector<8x256xf32>
    %481 = vector.extract_strided_slice %480 {offsets = [0, 0], sizes = [8, 128], strides = [1, 1]} : vector<8x256xf32> to vector<8x128xf32>
    %482 = arith.negf %481 : vector<8x128xf32>
    %483 = math.exp %482 : vector<8x128xf32>
    %cst_155 = arith.constant 1.000000e+00 : f32
    %484 = vector.broadcast %cst_155 : f32 to vector<8x128xf32>
    %485 = arith.addf %484, %483 : vector<8x128xf32>
    %486 = arith.divf %484, %485 : vector<8x128xf32>
    %487 = vector.extract_strided_slice %486 {offsets = [0, 0], sizes = [8, 64], strides = [1, 1]} : vector<8x128xf32> to vector<8x64xf32>
    %488 = vector.extract_strided_slice %486 {offsets = [0, 64], sizes = [8, 64], strides = [1, 1]} : vector<8x128xf32> to vector<8x64xf32>
    %489 = vector.extract_strided_slice %480 {offsets = [0, 128], sizes = [8, 64], strides = [1, 1]} : vector<8x256xf32> to vector<8x64xf32>
    %490 = math.tanh %489 : vector<8x64xf32>
    %491 = vector.extract_strided_slice %480 {offsets = [0, 192], sizes = [8, 64], strides = [1, 1]} : vector<8x256xf32> to vector<8x64xf32>
    %492 = arith.negf %491 : vector<8x64xf32>
    %493 = math.exp %492 : vector<8x64xf32>
    %cst_156 = arith.constant 1.000000e+00 : f32
    %494 = vector.broadcast %cst_156 : f32 to vector<8x64xf32>
    %495 = arith.addf %494, %493 : vector<8x64xf32>
    %496 = arith.divf %494, %495 : vector<8x64xf32>
    %497 = arith.mulf %488, %475 : vector<8x64xf32>
    %498 = arith.mulf %487, %490 : vector<8x64xf32>
    %499 = arith.addf %497, %498 : vector<8x64xf32>
    %500 = math.tanh %499 : vector<8x64xf32>
    %501 = arith.mulf %496, %500 : vector<8x64xf32>
    %c24_157 = arith.constant 24 : index
    %c0_158 = arith.constant 0 : index
    %502 = vector.load %arg15[%c24_157, %c0_158] : memref<64x256xf32, #tpu.memory_space<vmem>>, vector<8x256xf32>
    %cst_159 = arith.constant dense<0.000000e+00> : vector<8x256xf32>
    %503 = tpu.matmul %501, %427, %cst_159 {dimension_numbers = #tpu.dot_dimension_numbers<[1], [0], [0], [1], [0, 0, 1, 1], [], []>} : vector<8x64xf32>, vector<64x256xf32>, vector<8x256xf32> -> vector<8x256xf32>
    %504 = arith.addf %502, %503 : vector<8x256xf32>
    %505 = vector.extract_strided_slice %504 {offsets = [0, 0], sizes = [8, 128], strides = [1, 1]} : vector<8x256xf32> to vector<8x128xf32>
    %506 = arith.negf %505 : vector<8x128xf32>
    %507 = math.exp %506 : vector<8x128xf32>
    %cst_160 = arith.constant 1.000000e+00 : f32
    %508 = vector.broadcast %cst_160 : f32 to vector<8x128xf32>
    %509 = arith.addf %508, %507 : vector<8x128xf32>
    %510 = arith.divf %508, %509 : vector<8x128xf32>
    %511 = vector.extract_strided_slice %510 {offsets = [0, 0], sizes = [8, 64], strides = [1, 1]} : vector<8x128xf32> to vector<8x64xf32>
    %512 = vector.extract_strided_slice %510 {offsets = [0, 64], sizes = [8, 64], strides = [1, 1]} : vector<8x128xf32> to vector<8x64xf32>
    %513 = vector.extract_strided_slice %504 {offsets = [0, 128], sizes = [8, 64], strides = [1, 1]} : vector<8x256xf32> to vector<8x64xf32>
    %514 = math.tanh %513 : vector<8x64xf32>
    %515 = vector.extract_strided_slice %504 {offsets = [0, 192], sizes = [8, 64], strides = [1, 1]} : vector<8x256xf32> to vector<8x64xf32>
    %516 = arith.negf %515 : vector<8x64xf32>
    %517 = math.exp %516 : vector<8x64xf32>
    %cst_161 = arith.constant 1.000000e+00 : f32
    %518 = vector.broadcast %cst_161 : f32 to vector<8x64xf32>
    %519 = arith.addf %518, %517 : vector<8x64xf32>
    %520 = arith.divf %518, %519 : vector<8x64xf32>
    %521 = arith.mulf %512, %499 : vector<8x64xf32>
    %522 = arith.mulf %511, %514 : vector<8x64xf32>
    %523 = arith.addf %521, %522 : vector<8x64xf32>
    %524 = math.tanh %523 : vector<8x64xf32>
    %525 = arith.mulf %520, %524 : vector<8x64xf32>
    %c32_162 = arith.constant 32 : index
    %c0_163 = arith.constant 0 : index
    %526 = vector.load %arg15[%c32_162, %c0_163] : memref<64x256xf32, #tpu.memory_space<vmem>>, vector<8x256xf32>
    %cst_164 = arith.constant dense<0.000000e+00> : vector<8x256xf32>
    %527 = tpu.matmul %525, %427, %cst_164 {dimension_numbers = #tpu.dot_dimension_numbers<[1], [0], [0], [1], [0, 0, 1, 1], [], []>} : vector<8x64xf32>, vector<64x256xf32>, vector<8x256xf32> -> vector<8x256xf32>
    %528 = arith.addf %526, %527 : vector<8x256xf32>
    %529 = vector.extract_strided_slice %528 {offsets = [0, 0], sizes = [8, 128], strides = [1, 1]} : vector<8x256xf32> to vector<8x128xf32>
    %530 = arith.negf %529 : vector<8x128xf32>
    %531 = math.exp %530 : vector<8x128xf32>
    %cst_165 = arith.constant 1.000000e+00 : f32
    %532 = vector.broadcast %cst_165 : f32 to vector<8x128xf32>
    %533 = arith.addf %532, %531 : vector<8x128xf32>
    %534 = arith.divf %532, %533 : vector<8x128xf32>
    %535 = vector.extract_strided_slice %534 {offsets = [0, 0], sizes = [8, 64], strides = [1, 1]} : vector<8x128xf32> to vector<8x64xf32>
    %536 = vector.extract_strided_slice %534 {offsets = [0, 64], sizes = [8, 64], strides = [1, 1]} : vector<8x128xf32> to vector<8x64xf32>
    %537 = vector.extract_strided_slice %528 {offsets = [0, 128], sizes = [8, 64], strides = [1, 1]} : vector<8x256xf32> to vector<8x64xf32>
    %538 = math.tanh %537 : vector<8x64xf32>
    %539 = vector.extract_strided_slice %528 {offsets = [0, 192], sizes = [8, 64], strides = [1, 1]} : vector<8x256xf32> to vector<8x64xf32>
    %540 = arith.negf %539 : vector<8x64xf32>
    %541 = math.exp %540 : vector<8x64xf32>
    %cst_166 = arith.constant 1.000000e+00 : f32
    %542 = vector.broadcast %cst_166 : f32 to vector<8x64xf32>
    %543 = arith.addf %542, %541 : vector<8x64xf32>
    %544 = arith.divf %542, %543 : vector<8x64xf32>
    %545 = arith.mulf %536, %523 : vector<8x64xf32>
    %546 = arith.mulf %535, %538 : vector<8x64xf32>
    %547 = arith.addf %545, %546 : vector<8x64xf32>
    %548 = math.tanh %547 : vector<8x64xf32>
    %549 = arith.mulf %544, %548 : vector<8x64xf32>
    %c40_167 = arith.constant 40 : index
    %c0_168 = arith.constant 0 : index
    %550 = vector.load %arg15[%c40_167, %c0_168] : memref<64x256xf32, #tpu.memory_space<vmem>>, vector<8x256xf32>
    %cst_169 = arith.constant dense<0.000000e+00> : vector<8x256xf32>
    %551 = tpu.matmul %549, %427, %cst_169 {dimension_numbers = #tpu.dot_dimension_numbers<[1], [0], [0], [1], [0, 0, 1, 1], [], []>} : vector<8x64xf32>, vector<64x256xf32>, vector<8x256xf32> -> vector<8x256xf32>
    %552 = arith.addf %550, %551 : vector<8x256xf32>
    %553 = vector.extract_strided_slice %552 {offsets = [0, 0], sizes = [8, 128], strides = [1, 1]} : vector<8x256xf32> to vector<8x128xf32>
    %554 = arith.negf %553 : vector<8x128xf32>
    %555 = math.exp %554 : vector<8x128xf32>
    %cst_170 = arith.constant 1.000000e+00 : f32
    %556 = vector.broadcast %cst_170 : f32 to vector<8x128xf32>
    %557 = arith.addf %556, %555 : vector<8x128xf32>
    %558 = arith.divf %556, %557 : vector<8x128xf32>
    %559 = vector.extract_strided_slice %558 {offsets = [0, 0], sizes = [8, 64], strides = [1, 1]} : vector<8x128xf32> to vector<8x64xf32>
    %560 = vector.extract_strided_slice %558 {offsets = [0, 64], sizes = [8, 64], strides = [1, 1]} : vector<8x128xf32> to vector<8x64xf32>
    %561 = vector.extract_strided_slice %552 {offsets = [0, 128], sizes = [8, 64], strides = [1, 1]} : vector<8x256xf32> to vector<8x64xf32>
    %562 = math.tanh %561 : vector<8x64xf32>
    %563 = vector.extract_strided_slice %552 {offsets = [0, 192], sizes = [8, 64], strides = [1, 1]} : vector<8x256xf32> to vector<8x64xf32>
    %564 = arith.negf %563 : vector<8x64xf32>
    %565 = math.exp %564 : vector<8x64xf32>
    %cst_171 = arith.constant 1.000000e+00 : f32
    %566 = vector.broadcast %cst_171 : f32 to vector<8x64xf32>
    %567 = arith.addf %566, %565 : vector<8x64xf32>
    %568 = arith.divf %566, %567 : vector<8x64xf32>
    %569 = arith.mulf %560, %547 : vector<8x64xf32>
    %570 = arith.mulf %559, %562 : vector<8x64xf32>
    %571 = arith.addf %569, %570 : vector<8x64xf32>
    %572 = math.tanh %571 : vector<8x64xf32>
    %573 = arith.mulf %568, %572 : vector<8x64xf32>
    %c48_172 = arith.constant 48 : index
    %c0_173 = arith.constant 0 : index
    %574 = vector.load %arg15[%c48_172, %c0_173] : memref<64x256xf32, #tpu.memory_space<vmem>>, vector<8x256xf32>
    %cst_174 = arith.constant dense<0.000000e+00> : vector<8x256xf32>
    %575 = tpu.matmul %573, %427, %cst_174 {dimension_numbers = #tpu.dot_dimension_numbers<[1], [0], [0], [1], [0, 0, 1, 1], [], []>} : vector<8x64xf32>, vector<64x256xf32>, vector<8x256xf32> -> vector<8x256xf32>
    %576 = arith.addf %574, %575 : vector<8x256xf32>
    %577 = vector.extract_strided_slice %576 {offsets = [0, 0], sizes = [8, 128], strides = [1, 1]} : vector<8x256xf32> to vector<8x128xf32>
    %578 = arith.negf %577 : vector<8x128xf32>
    %579 = math.exp %578 : vector<8x128xf32>
    %cst_175 = arith.constant 1.000000e+00 : f32
    %580 = vector.broadcast %cst_175 : f32 to vector<8x128xf32>
    %581 = arith.addf %580, %579 : vector<8x128xf32>
    %582 = arith.divf %580, %581 : vector<8x128xf32>
    %583 = vector.extract_strided_slice %582 {offsets = [0, 0], sizes = [8, 64], strides = [1, 1]} : vector<8x128xf32> to vector<8x64xf32>
    %584 = vector.extract_strided_slice %582 {offsets = [0, 64], sizes = [8, 64], strides = [1, 1]} : vector<8x128xf32> to vector<8x64xf32>
    %585 = vector.extract_strided_slice %576 {offsets = [0, 128], sizes = [8, 64], strides = [1, 1]} : vector<8x256xf32> to vector<8x64xf32>
    %586 = math.tanh %585 : vector<8x64xf32>
    %587 = vector.extract_strided_slice %576 {offsets = [0, 192], sizes = [8, 64], strides = [1, 1]} : vector<8x256xf32> to vector<8x64xf32>
    %588 = arith.negf %587 : vector<8x64xf32>
    %589 = math.exp %588 : vector<8x64xf32>
    %cst_176 = arith.constant 1.000000e+00 : f32
    %590 = vector.broadcast %cst_176 : f32 to vector<8x64xf32>
    %591 = arith.addf %590, %589 : vector<8x64xf32>
    %592 = arith.divf %590, %591 : vector<8x64xf32>
    %593 = arith.mulf %584, %571 : vector<8x64xf32>
    %594 = arith.mulf %583, %586 : vector<8x64xf32>
    %595 = arith.addf %593, %594 : vector<8x64xf32>
    %596 = math.tanh %595 : vector<8x64xf32>
    %597 = arith.mulf %592, %596 : vector<8x64xf32>
    %c56_177 = arith.constant 56 : index
    %c0_178 = arith.constant 0 : index
    %598 = vector.load %arg15[%c56_177, %c0_178] : memref<64x256xf32, #tpu.memory_space<vmem>>, vector<8x256xf32>
    %cst_179 = arith.constant dense<0.000000e+00> : vector<8x256xf32>
    %599 = tpu.matmul %597, %427, %cst_179 {dimension_numbers = #tpu.dot_dimension_numbers<[1], [0], [0], [1], [0, 0, 1, 1], [], []>} : vector<8x64xf32>, vector<64x256xf32>, vector<8x256xf32> -> vector<8x256xf32>
    %600 = arith.addf %598, %599 : vector<8x256xf32>
    %601 = vector.extract_strided_slice %600 {offsets = [0, 0], sizes = [8, 128], strides = [1, 1]} : vector<8x256xf32> to vector<8x128xf32>
    %602 = arith.negf %601 : vector<8x128xf32>
    %603 = math.exp %602 : vector<8x128xf32>
    %cst_180 = arith.constant 1.000000e+00 : f32
    %604 = vector.broadcast %cst_180 : f32 to vector<8x128xf32>
    %605 = arith.addf %604, %603 : vector<8x128xf32>
    %606 = arith.divf %604, %605 : vector<8x128xf32>
    %607 = vector.extract_strided_slice %606 {offsets = [0, 0], sizes = [8, 64], strides = [1, 1]} : vector<8x128xf32> to vector<8x64xf32>
    %608 = vector.extract_strided_slice %606 {offsets = [0, 64], sizes = [8, 64], strides = [1, 1]} : vector<8x128xf32> to vector<8x64xf32>
    %609 = vector.extract_strided_slice %600 {offsets = [0, 128], sizes = [8, 64], strides = [1, 1]} : vector<8x256xf32> to vector<8x64xf32>
    %610 = math.tanh %609 : vector<8x64xf32>
    %611 = vector.extract_strided_slice %600 {offsets = [0, 192], sizes = [8, 64], strides = [1, 1]} : vector<8x256xf32> to vector<8x64xf32>
    %612 = arith.negf %611 : vector<8x64xf32>
    %613 = math.exp %612 : vector<8x64xf32>
    %cst_181 = arith.constant 1.000000e+00 : f32
    %614 = vector.broadcast %cst_181 : f32 to vector<8x64xf32>
    %615 = arith.addf %614, %613 : vector<8x64xf32>
    %616 = arith.divf %614, %615 : vector<8x64xf32>
    %617 = arith.mulf %608, %595 : vector<8x64xf32>
    %618 = arith.mulf %607, %610 : vector<8x64xf32>
    %619 = arith.addf %617, %618 : vector<8x64xf32>
    %620 = math.tanh %619 : vector<8x64xf32>
    %621 = arith.mulf %616, %620 : vector<8x64xf32>
    %c0_182 = arith.constant 0 : index
    %c0_183 = arith.constant 0 : index
    %622 = vector.load %arg10[%c0_182, %c0_183] : memref<64x128xf32, #tpu.memory_space<vmem>>, vector<64x128xf32>
    %cst_184 = arith.constant dense<0.000000e+00> : vector<8x128xf32>
    %623 = tpu.matmul %621, %622, %cst_184 {dimension_numbers = #tpu.dot_dimension_numbers<[1], [0], [0], [1], [0, 0, 1, 1], [], []>} : vector<8x64xf32>, vector<64x128xf32>, vector<8x128xf32> -> vector<8x128xf32>
    %c0_185 = arith.constant 0 : index
    %c0_186 = arith.constant 0 : index
    %624 = vector.load %arg11[%c0_185, %c0_186] : memref<1x128xf32, #tpu.memory_space<vmem>>, vector<1x128xf32>
    %625 = vector.broadcast %624 : vector<1x128xf32> to vector<8x128xf32>
    %626 = arith.addf %623, %625 : vector<8x128xf32>
    %c0_187 = arith.constant 0 : index
    %c0_188 = arith.constant 0 : index
    %627 = vector.load %arg12[%c0_187, %c0_188] : memref<8x128xf32, #tpu.memory_space<vmem>>, vector<8x128xf32>
    tpu.vector_store %arg12[%c0_187, %c0_188], %626 {strides = array<i32>} : memref<8x128xf32, #tpu.memory_space<vmem>>, vector<8x128xf32>,
    return
  }
}

</mosaic_0001>

<llo_original>
// kernel: lstm_model_forward.1
$region0: #{lstm_model_forward.1}
  #allocation0 [shape = 'u32[]', space=smem, size = 0x4, offset = 0x4, fixed_abs, tag = 'smem constant byte address 0x4 - core index']
  #allocation1 [shape = 'u32[144,128]{1,0:T(1,128)}', space=vmem, size = 0x12000, scoped, tag = 'internal scratch']
  #allocation2 [shape = 'f32[64,64]{1,0:T(8,128)}', space=vmem, size = 0x8000, scoped, tag = 'scratch operand']
  #allocation3 [shape = 'f32[64,64]{1,0:T(8,128)}', space=vmem, size = 0x8000, scoped, tag = 'scratch operand']
  #allocation4 [shape = 'f32[64,256]{1,0:T(8,128)}', space=vmem, size = 0x10000, scoped, tag = 'scratch operand']
  %s0 = inlined_call_operand.vmem [shape: f32[64,3], index: 0, kind: input, shape index: {}]
  %s1 = inlined_call_operand.vmem [shape: f32[3,256], index: 1, kind: input, shape index: {}]
  %s2 = inlined_call_operand.vmem [shape: f32[64,256], index: 2, kind: input, shape index: {}]
  %s3 = inlined_call_operand.vmem [shape: f32[1,256], index: 3, kind: input, shape index: {}]
  %s4 = inlined_call_operand.vmem [shape: f32[64,256], index: 4, kind: input, shape index: {}]
  %s5 = inlined_call_operand.hbm [shape: f32[64,256], index: 5, kind: input, shape index: {}]
  %s6 = inlined_call_operand.vmem [shape: f32[1,256], index: 6, kind: input, shape index: {}]
  %s7 = inlined_call_operand.hbm [shape: f32[64,256], index: 7, kind: input, shape index: {}]
  %s8 = inlined_call_operand.hbm [shape: f32[64,256], index: 8, kind: input, shape index: {}]
  %s9 = inlined_call_operand.vmem [shape: f32[1,256], index: 9, kind: input, shape index: {}]
  %s10 = inlined_call_operand.vmem [shape: f32[64,128], index: 10, kind: input, shape index: {}]
  %s11 = inlined_call_operand.vmem [shape: f32[1,128], index: 11, kind: input, shape index: {}]
  %s12 = inlined_call_operand.vmem [shape: f32[8,128], index: 12, kind: output, shape index: {}]
  %s13 = sld [smem:[#allocation0]]
  $region70: #{lstm_model_forward.1} parent=0
    _
  %s15 = ssub.s32 1, %s13
  %s16 = scalar_select 0, %s15, %s13
  $region1: #{lstm_model_forward.1} parent=0
    #allocation5 [shape = 'u8[65536]{0}', space=vmem, size = 0x10000, scoped, tag = 'input window, operand 5, single buffered']
    #allocation6 [shape = 's32[1]{0}', space=sflag, size = 0x4, scoped, tag = 'scoped memory for lstm_model_forward.1']
    #allocation7 [shape = 'u8[65536]{0}', space=vmem, size = 0x10000, scoped, tag = 'input window, operand 7, single buffered']
    #allocation8 [shape = 's32[1]{0}', space=sflag, size = 0x4, scoped, tag = 'scoped memory for lstm_model_forward.1']
    #allocation9 [shape = 'u8[65536]{0}', space=vmem, size = 0x10000, scoped, tag = 'input window, operand 8, single buffered']
    %17 = vsyncpa [#allocation6], 0
    %18 = vsyncpa [#allocation8], 0
    // Predicated region
    $region2: #{lstm_model_forward.1} parent=1 // pred_check
      _
    $region3: #{lstm_model_forward.1} parent=1 // pred_check_branch
      %20 = sbr.rel (0) target = $region5
    $region4: #{lstm_model_forward.1} parent=1 // pred_region
      _
    $region5: #{lstm_model_forward.1} parent=1 // pred_fallthru
      _
    // Predicated region
    $region6: #{lstm_model_forward.1} parent=1 // pred_check
      _
    $region7: #{lstm_model_forward.1} parent=1 // pred_check_branch
      %22 = sbr.rel (0) target = $region9
    $region8: #{lstm_model_forward.1} parent=1 // pred_region
      _
    $region9: #{lstm_model_forward.1} parent=1 // pred_fallthru
      _
    // Predicated region
    $region10: #{lstm_model_forward.1} parent=1 // pred_check
      _
    $region11: #{lstm_model_forward.1} parent=1 // pred_check_branch
      %24 = sbr.rel (0) target = $region13
    $region12: #{lstm_model_forward.1} parent=1 // pred_region
      _
    $region13: #{lstm_model_forward.1} parent=1 // pred_fallthru
      _
    // Predicated region
    $region14: #{lstm_model_forward.1} parent=1 // pred_check
      _
    $region15: #{lstm_model_forward.1} parent=1 // pred_check_branch
      %26 = sbr.rel (0) target = $region17
    $region16: #{lstm_model_forward.1} parent=1 // pred_region
      _
    $region17: #{lstm_model_forward.1} parent=1 // pred_fallthru
      _
    // Predicated region
    $region18: #{lstm_model_forward.1} parent=1 // pred_check
      _
    $region19: #{lstm_model_forward.1} parent=1 // pred_check_branch
      %28 = sbr.rel (0) target = $region21
    $region20: #{lstm_model_forward.1} parent=1 // pred_region
      _
    $region21: #{lstm_model_forward.1} parent=1 // pred_fallthru
      _
    // Predicated region
    $region22: #{lstm_model_forward.1} parent=1 // pred_check
      _
    $region23: #{lstm_model_forward.1} parent=1 // pred_check_branch
      %30 = sbr.rel (0) target = $region25
    $region24: #{lstm_model_forward.1} parent=1 // pred_region
      %s32 = ssub.s32 2048, 2048
      %33 = vsyncadd [#allocation6], %s32
      %s34 = sshll.u32 [#allocation5], 4
      %s35 = int_to_ptr.vmem [resolvable:$true] %s34
      %40 = dma.hbm_to_vmem [thread:$0]  %s5, 2048, %s35, [#allocation6], 256, 256, 16
    $region25: #{lstm_model_forward.1} parent=1 // pred_fallthru
      _
    // Predicated region
    $region26: #{lstm_model_forward.1} parent=1 // pred_check
      _
    $region27: #{lstm_model_forward.1} parent=1 // pred_check_branch
      %42 = sbr.rel (0) target = $region29
    $region28: #{lstm_model_forward.1} parent=1 // pred_region
      _
    $region29: #{lstm_model_forward.1} parent=1 // pred_fallthru
      _
    // Predicated region
    $region30: #{lstm_model_forward.1} parent=1 // pred_check
      _
    $region31: #{lstm_model_forward.1} parent=1 // pred_check_branch
      %44 = sbr.rel (0) target = $region33
    $region32: #{lstm_model_forward.1} parent=1 // pred_region
      %s46 = ssub.s32 2048, 2048
      %47 = vsyncadd [#allocation8], %s46
      %s48 = sshll.u32 [#allocation7], 4
      %s49 = int_to_ptr.vmem [resolvable:$true] %s48
      %54 = dma.hbm_to_vmem [thread:$0]  %s7, 2048, %s49, [#allocation8], 256, 256, 16
    $region33: #{lstm_model_forward.1} parent=1 // pred_fallthru
      _
    // Predicated region
    $region34: #{lstm_model_forward.1} parent=1 // pred_check
      _
    $region35: #{lstm_model_forward.1} parent=1 // pred_check_branch
      %56 = sbr.rel (0) target = $region37
    $region36: #{lstm_model_forward.1} parent=1 // pred_region
      %s58 = ssub.s32 2048, 2048
      %59 = vsyncadd [#allocation8], %s58
      %s60 = sshll.u32 [#allocation9], 4
      %s61 = int_to_ptr.vmem [resolvable:$true] %s60
      %66 = dma.hbm_to_vmem [thread:$0]  %s8, 2048, %s61, [#allocation8], 256, 256, 16
    $region37: #{lstm_model_forward.1} parent=1 // pred_fallthru
      _
    // Predicated region
    $region38: #{lstm_model_forward.1} parent=1 // pred_check
      _
    $region39: #{lstm_model_forward.1} parent=1 // pred_check_branch
      %68 = sbr.rel (0) target = $region41
    $region40: #{lstm_model_forward.1} parent=1 // pred_region
      _
    $region41: #{lstm_model_forward.1} parent=1 // pred_fallthru
      _
    // Predicated region
    $region42: #{lstm_model_forward.1} parent=1 // pred_check
      _
    $region43: #{lstm_model_forward.1} parent=1 // pred_check_branch
      %70 = sbr.rel (0) target = $region45
    $region44: #{lstm_model_forward.1} parent=1 // pred_region
      _
    $region45: #{lstm_model_forward.1} parent=1 // pred_fallthru
      _
    // Predicated region
    $region46: #{lstm_model_forward.1} parent=1 // pred_check
      _
    $region47: #{lstm_model_forward.1} parent=1 // pred_check_branch
      %72 = sbr.rel (0) target = $region49
    $region48: #{lstm_model_forward.1} parent=1 // pred_region
      _
    $region49: #{lstm_model_forward.1} parent=1 // pred_fallthru
      _
    // Predicated region
    $region50: #{lstm_model_forward.1} parent=1 // pred_check
      _
    $region51: #{lstm_model_forward.1} parent=1 // pred_check_branch
      %74 = sbr.rel (0) target = $region53
    $region52: #{lstm_model_forward.1} parent=1 // pred_region
      %75 = dma.done [#allocation6], 2048
    $region53: #{lstm_model_forward.1} parent=1 // pred_fallthru
      _
    // Predicated region
    $region54: #{lstm_model_forward.1} parent=1 // pred_check
      _
    $region55: #{lstm_model_forward.1} parent=1 // pred_check_branch
      %77 = sbr.rel (0) target = $region57
    $region56: #{lstm_model_forward.1} parent=1 // pred_region
      %78 = dma.done [#allocation8], 2048
    $region57: #{lstm_model_forward.1} parent=1 // pred_fallthru
      _
    // Predicated region
    $region58: #{lstm_model_forward.1} parent=1 // pred_check
      _
    $region59: #{lstm_model_forward.1} parent=1 // pred_check_branch
      %80 = sbr.rel (0) target = $region61
    $region60: #{lstm_model_forward.1} parent=1 // pred_region
      %81 = dma.done [#allocation8], 2048
    $region61: #{lstm_model_forward.1} parent=1 // pred_fallthru
      _
    %v82 = vld [vmem:[%s0] sm:$0xff]
    %v83 = vld [vmem:[%s0 + $0x8] sm:$0xff]
    %v84 = vld [vmem:[%s0 + $0x10] sm:$0xff]
    %v85 = vld [vmem:[%s0 + $0x18] sm:$0xff]
    %v86 = vld [vmem:[%s0 + $0x20] sm:$0xff]
    %v87 = vld [vmem:[%s0 + $0x28] sm:$0xff]
    %v88 = vld [vmem:[%s0 + $0x30] sm:$0xff]
    %v89 = vld [vmem:[%s0 + $0x38] sm:$0xff]
    %v90 = vld [vmem:[%s1] sm:$0x77]
    %v91 = vld [vmem:[%s3] sm:$0x3]
    %v93 = vlaneseq
    %v94 = vshrl.u32 %v93, 7
    %v95 = vsub.s32 0, %v94
    %v96 = vrot.slane %v91, %v95
    %v97 = vlaneseq
    %v98 = vshrl.u32 %v97, 7
    %v99 = vsub.s32 1, %v98
    %v100 = vrot.slane %v91, %v99
    %v104 = vcombine.high %v90, %v90
    %vm105 = vcmask 23552
    %v107 = vsel %vm105, %v82, 0
    %v110 = vsel %vm105, %v83, 0
    %v113 = vsel %vm105, %v84, 0
    %v116 = vsel %vm105, %v85, 0
    %v119 = vsel %vm105, %v86, 0
    %v122 = vsel %vm105, %v87, 0
    %v125 = vsel %vm105, %v88, 0
    %v128 = vsel %vm105, %v89, 0
    %vm130 = vcmask 1042432
    %v131 = vsel %vm130, %v90, 0
    %v133 = vsel %vm130, %v104, 0
    %135 = vmatprep.subr.mxu0 %v133
    %136 = vmatpush1.msra.mxu0 %v131
    %137 = vmatprep.subr.mxu0 0.0
    %138 = vmatpush1.msra.mxu0 0.0
    %139 = vmatprep.subr.mxu0 0.0
    %140 = vmatpush1.msra.mxu0 0.0
    %141 = vmatprep.subr.mxu0 0.0
    %142 = vmatpush1.msra.mxu0 0.0
    %143 = vmatprep.subr.mxu0 0.0
    %144 = vmatpush1.msra.mxu0 0.0
    %145 = vmatprep.subr.mxu0 0.0
    %146 = vmatpush1.msra.mxu0 0.0
    %147 = vmatprep.subr.mxu0 0.0
    %148 = vmatpush1.msra.mxu0 0.0
    %149 = vmatprep.subr.mxu0 0.0
    %150 = vmatpush1.msra.mxu0 0.0
    %151 = vmatprep.subr.mxu0 0.0
    %152 = vmatpush1.msra.mxu0 0.0
    %153 = vmatprep.subr.mxu0 0.0
    %154 = vmatpush1.msra.mxu0 0.0
    %155 = vmatprep.subr.mxu0 0.0
    %156 = vmatpush1.msra.mxu0 0.0
    %157 = vmatprep.subr.mxu0 0.0
    %158 = vmatpush1.msra.mxu0 0.0
    %159 = vmatprep.subr.mxu0 0.0
    %160 = vmatpush1.msra.mxu0 0.0
    %161 = vmatprep.subr.mxu0 0.0
    %162 = vmatpush1.msra.mxu0 0.0
    %163 = vmatprep.subr.mxu0 0.0
    %164 = vmatpush1.msra.mxu0 0.0
    %165 = vmatprep.subr.mxu0 0.0
    %166 = vmatpush1.msra.mxu0 0.0
    %167 = vmatprep.subr.mxu0 0.0
    %168 = vmatpush1.msra.mxu0 0.0
    %169 = vmatprep.subr.mxu0 0.0
    %170 = vmatpush1.msra.mxu0 0.0
    %171 = vmatprep.subr.mxu0 0.0
    %172 = vmatpush1.msra.mxu0 0.0
    %173 = vmatprep.subr.mxu0 0.0
    %174 = vmatpush1.msra.mxu0 0.0
    %175 = vmatprep.subr.mxu0 0.0
    %176 = vmatpush1.msra.mxu0 0.0
    %177 = vmatprep.subr.mxu0 0.0
    %178 = vmatpush1.msra.mxu0 0.0
    %179 = vmatprep.subr.mxu0 0.0
    %180 = vmatpush1.msra.mxu0 0.0
    %181 = vmatprep.subr.mxu0 0.0
    %182 = vmatpush1.msra.mxu0 0.0
    %183 = vmatprep.subr.mxu0 0.0
    %184 = vmatpush1.msra.mxu0 0.0
    %185 = vmatprep.subr.mxu0 0.0
    %186 = vmatpush1.msra.mxu0 0.0
    %187 = vmatprep.subr.mxu0 0.0
    %188 = vmatpush1.msra.mxu0 0.0
    %189 = vmatprep.subr.mxu0 0.0
    %190 = vmatpush1.msra.mxu0 0.0
    %191 = vmatprep.subr.mxu0 0.0
    %192 = vmatpush1.msra.mxu0 0.0
    %193 = vmatprep.subr.mxu0 0.0
    %194 = vmatpush1.msra.mxu0 0.0
    %195 = vmatprep.subr.mxu0 0.0
    %196 = vmatpush1.msra.mxu0 0.0
    %197 = vmatprep.subr.mxu0 0.0
    %198 = vmatpush1.msra.mxu0 0.0
    %199 = vmatprep.mubr.f32.mxu0 0.0
    %200 = vmatmul.mubr.f32.gmra.mrb[0].mxu0 %v107
    %v201 = vpop.f32.mrb[0].mxu0
    %v202 = vadd.f32 %v96, %v201
    %v203 = vpop.f32.mrb[0].mxu0
    %v204 = vadd.f32 %v100, %v203
    %205 = vmatprep.mubr.f32.mxu0 0.0
    %206 = vmatmul.mubr.f32.gmra.mrb[0].mxu0 %v110
    %v207 = vpop.f32.mrb[0].mxu0
    %v208 = vadd.f32 %v96, %v207
    %v209 = vpop.f32.mrb[0].mxu0
    %v210 = vadd.f32 %v100, %v209
    %211 = vmatprep.mubr.f32.mxu0 0.0
    %212 = vmatmul.mubr.f32.gmra.mrb[0].mxu0 %v113
    %v213 = vpop.f32.mrb[0].mxu0
    %v214 = vadd.f32 %v96, %v213
    %v215 = vpop.f32.mrb[0].mxu0
    %v216 = vadd.f32 %v100, %v215
    %217 = vmatprep.mubr.f32.mxu0 0.0
    %218 = vmatmul.mubr.f32.gmra.mrb[0].mxu0 %v116
    %v219 = vpop.f32.mrb[0].mxu0
    %v220 = vadd.f32 %v96, %v219
    %v221 = vpop.f32.mrb[0].mxu0
    %v222 = vadd.f32 %v100, %v221
    %223 = vmatprep.mubr.f32.mxu0 0.0
    %224 = vmatmul.mubr.f32.gmra.mrb[0].mxu0 %v119
    %v225 = vpop.f32.mrb[0].mxu0
    %v226 = vadd.f32 %v96, %v225
    %v227 = vpop.f32.mrb[0].mxu0
    %v228 = vadd.f32 %v100, %v227
    %229 = vmatprep.mubr.f32.mxu0 0.0
    %230 = vmatmul.mubr.f32.gmra.mrb[0].mxu0 %v122
    %v231 = vpop.f32.mrb[0].mxu0
    %v232 = vadd.f32 %v96, %v231
    %v233 = vpop.f32.mrb[0].mxu0
    %v234 = vadd.f32 %v100, %v233
    %235 = vmatprep.mubr.f32.mxu0 0.0
    %236 = vmatmul.mubr.f32.gmra.mrb[0].mxu0 %v125
    %v237 = vpop.f32.mrb[0].mxu0
    %v238 = vadd.f32 %v96, %v237
    %v239 = vpop.f32.mrb[0].mxu0
    %v240 = vadd.f32 %v100, %v239
    %241 = vmatprep.mubr.f32.mxu0 0.0
    %242 = vmatmul.mubr.f32.gmra.mrb[0].mxu0 %v128
    %v243 = vpop.f32.mrb[0].mxu0
    %v244 = vadd.f32 %v96, %v243
    %v245 = vpop.f32.mrb[0].mxu0
    %v246 = vadd.f32 %v100, %v245
    %247 = vdwg.mxu0
    %248 = vst [vmem:[#allocation4] sm:$0xff] %v202
    %249 = vst [vmem:[#allocation4 + $0x8] sm:$0xff] %v204
    %250 = vst [vmem:[#allocation4 + $0x10] sm:$0xff] %v208
    %251 = vst [vmem:[#allocation4 + $0x18] sm:$0xff] %v210
    %252 = vst [vmem:[#allocation4 + $0x20] sm:$0xff] %v214
    %253 = vst [vmem:[#allocation4 + $0x28] sm:$0xff] %v216
    %254 = vst [vmem:[#allocation4 + $0x30] sm:$0xff] %v220
    %255 = vst [vmem:[#allocation4 + $0x38] sm:$0xff] %v222
    %256 = vst [vmem:[#allocation4 + $0x40] sm:$0xff] %v226
    %257 = vst [vmem:[#allocation4 + $0x48] sm:$0xff] %v228
    %258 = vst [vmem:[#allocation4 + $0x50] sm:$0xff] %v232
    %259 = vst [vmem:[#allocation4 + $0x58] sm:$0xff] %v234
    %260 = vst [vmem:[#allocation4 + $0x60] sm:$0xff] %v238
    %261 = vst [vmem:[#allocation4 + $0x68] sm:$0xff] %v240
    %262 = vst [vmem:[#allocation4 + $0x70] sm:$0xff] %v244
    %263 = vst [vmem:[#allocation4 + $0x78] sm:$0xff] %v246
    %v264 = vld [vmem:[%s2] sm:$0xff]
    %v265 = vld [vmem:[%s2 + $0x8] sm:$0xff]
    %v266 = vld [vmem:[%s2 + $0x10] sm:$0xff]
    %v267 = vld [vmem:[%s2 + $0x18] sm:$0xff]
    %v268 = vld [vmem:[%s2 + $0x20] sm:$0xff]
    %v269 = vld [vmem:[%s2 + $0x28] sm:$0xff]
    %v270 = vld [vmem:[%s2 + $0x30] sm:$0xff]
    %v271 = vld [vmem:[%s2 + $0x38] sm:$0xff]
    %v272 = vld [vmem:[%s2 + $0x40] sm:$0xff]
    %v273 = vld [vmem:[%s2 + $0x48] sm:$0xff]
    %v274 = vld [vmem:[%s2 + $0x50] sm:$0xff]
    %v275 = vld [vmem:[%s2 + $0x58] sm:$0xff]
    %v276 = vld [vmem:[%s2 + $0x60] sm:$0xff]
    %v277 = vld [vmem:[%s2 + $0x68] sm:$0xff]
    %v278 = vld [vmem:[%s2 + $0x70] sm:$0xff]
    %v279 = vld [vmem:[%s2 + $0x78] sm:$0xff]
    %v280 = vld [vmem:[#allocation4] sm:$0xff]
    %v281 = vld [vmem:[#allocation4 + $0x8] sm:$0xff]
    %vm282 = vcmask 523264
    %v284 = vsel %vm282, 0.0, 0
    %286 = vmatprep.subr.mxu0 %v265
    %287 = vmatpush1.msra.mxu0 %v264
    %288 = vmatprep.subr.mxu0 %v267
    %289 = vmatpush1.msra.mxu0 %v266
    %290 = vmatprep.subr.mxu0 %v269
    %291 = vmatpush1.msra.mxu0 %v268
    %292 = vmatprep.subr.mxu0 %v271
    %293 = vmatpush1.msra.mxu0 %v270
    %294 = vmatprep.subr.mxu0 %v273
    %295 = vmatpush1.msra.mxu0 %v272
    %296 = vmatprep.subr.mxu0 %v275
    %297 = vmatpush1.msra.mxu0 %v274
    %298 = vmatprep.subr.mxu0 %v277
    %299 = vmatpush1.msra.mxu0 %v276
    %300 = vmatprep.subr.mxu0 %v279
    %301 = vmatpush1.msra.mxu0 %v278
    %302 = vmatprep.subr.mxu0 0.0
    %303 = vmatpush1.msra.mxu0 0.0
    %304 = vmatprep.subr.mxu0 0.0
    %305 = vmatpush1.msra.mxu0 0.0
    %306 = vmatprep.subr.mxu0 0.0
    %307 = vmatpush1.msra.mxu0 0.0
    %308 = vmatprep.subr.mxu0 0.0
    %309 = vmatpush1.msra.mxu0 0.0
    %310 = vmatprep.subr.mxu0 0.0
    %311 = vmatpush1.msra.mxu0 0.0
    %312 = vmatprep.subr.mxu0 0.0
    %313 = vmatpush1.msra.mxu0 0.0
    %314 = vmatprep.subr.mxu0 0.0
    %315 = vmatpush1.msra.mxu0 0.0
    %316 = vmatprep.subr.mxu0 0.0
    %317 = vmatpush1.msra.mxu0 0.0
    %318 = vmatprep.subr.mxu0 0.0
    %319 = vmatpush1.msra.mxu0 0.0
    %320 = vmatprep.subr.mxu0 0.0
    %321 = vmatpush1.msra.mxu0 0.0
    %322 = vmatprep.subr.mxu0 0.0
    %323 = vmatpush1.msra.mxu0 0.0
    %324 = vmatprep.subr.mxu0 0.0
    %325 = vmatpush1.msra.mxu0 0.0
    %326 = vmatprep.subr.mxu0 0.0
    %327 = vmatpush1.msra.mxu0 0.0
    %328 = vmatprep.subr.mxu0 0.0
    %329 = vmatpush1.msra.mxu0 0.0
    %330 = vmatprep.subr.mxu0 0.0
    %331 = vmatpush1.msra.mxu0 0.0
    %332 = vmatprep.subr.mxu0 0.0
    %333 = vmatpush1.msra.mxu0 0.0
    %334 = vmatprep.subr.mxu0 0.0
    %335 = vmatpush1.msra.mxu0 0.0
    %336 = vmatprep.subr.mxu0 0.0
    %337 = vmatpush1.msra.mxu0 0.0
    %338 = vmatprep.subr.mxu0 0.0
    %339 = vmatpush1.msra.mxu0 0.0
    %340 = vmatprep.subr.mxu0 0.0
    %341 = vmatpush1.msra.mxu0 0.0
    %342 = vmatprep.subr.mxu0 0.0
    %343 = vmatpush1.msra.mxu0 0.0
    %344 = vmatprep.subr.mxu0 0.0
    %345 = vmatpush1.msra.mxu0 0.0
    %346 = vmatprep.subr.mxu0 0.0
    %347 = vmatpush1.msra.mxu0 0.0
    %348 = vmatprep.subr.mxu0 0.0
    %349 = vmatpush1.msra.mxu0 0.0
    %350 = vmatprep.mubr.f32.mxu0 0.0
    %351 = vmatmul.mubr.f32.gmra.mrb[0].mxu0 %v284
    %v352 = vpop.f32.mrb[0].mxu0
    %v353 = vadd.f32 0.0, %v352
    %v354 = vpop.f32.mrb[0].mxu0
    %v355 = vadd.f32 0.0, %v354
    %356 = vdwg.mxu0
    %v357 = vadd.f32 %v280, %v353
    %v358 = vadd.f32 %v281, %v355
    %v359 = vxor.u32 %v357, 2147483648
    %v360 = vmul.f32 %v359, 1.442695
    %v361 = vpow.pop %v360
    %v362 = vadd.f32 %v361, 1.0
    %v363 = vrcp.pop %v362
    %v364 = vmul.f32 1.0, %v363
    %v365 = vtanh.pop %v358
    %v366 = vxor.u32 %v358, 2147483648
    %v367 = vmul.f32 %v366, 1.442695
    %v368 = vpow.pop %v367
    %v369 = vadd.f32 %v368, 1.0
    %v370 = vrcp.pop %v369
    %v371 = vmul.f32 1.0, %v370
    %v372 = vmul.f32 %v364, 0.0
    %v373 = vmul.f32 %v364, %v365
    %375 = vrot.lane.b32.xlu0 %v373, 64
    %v376 = vpop.permute.xlu0 %375
    %v378 = vadd.f32 %v372, %v376
    %v379 = vtanh.pop %v378
    %v380 = vmul.f32 %v371, %v379
    %382 = vrot.lane.b32.xlu0 %v380, 64
    %v383 = vpop.permute.xlu0 %382
    %385 = vst.msk [vmem:[#allocation2] sm:$0xff] %vm282, %v383
    %v386 = vld [vmem:[#allocation4 + $0x10] sm:$0xff]
    %v387 = vld [vmem:[#allocation4 + $0x18] sm:$0xff]
    %v388 = vsel %vm282, %v383, 0
    %390 = vmatprep.subr.mxu0 %v265
    %391 = vmatpush1.msra.mxu0 %v264
    %392 = vmatprep.subr.mxu0 %v267
    %393 = vmatpush1.msra.mxu0 %v266
    %394 = vmatprep.subr.mxu0 %v269
    %395 = vmatpush1.msra.mxu0 %v268
    %396 = vmatprep.subr.mxu0 %v271
    %397 = vmatpush1.msra.mxu0 %v270
    %398 = vmatprep.subr.mxu0 %v273
    %399 = vmatpush1.msra.mxu0 %v272
    %400 = vmatprep.subr.mxu0 %v275
    %401 = vmatpush1.msra.mxu0 %v274
    %402 = vmatprep.subr.mxu0 %v277
    %403 = vmatpush1.msra.mxu0 %v276
    %404 = vmatprep.subr.mxu0 %v279
    %405 = vmatpush1.msra.mxu0 %v278
    %406 = vmatprep.subr.mxu0 0.0
    %407 = vmatpush1.msra.mxu0 0.0
    %408 = vmatprep.subr.mxu0 0.0
    %409 = vmatpush1.msra.mxu0 0.0
    %410 = vmatprep.subr.mxu0 0.0
    %411 = vmatpush1.msra.mxu0 0.0
    %412 = vmatprep.subr.mxu0 0.0
    %413 = vmatpush1.msra.mxu0 0.0
    %414 = vmatprep.subr.mxu0 0.0
    %415 = vmatpush1.msra.mxu0 0.0
    %416 = vmatprep.subr.mxu0 0.0
    %417 = vmatpush1.msra.mxu0 0.0
    %418 = vmatprep.subr.mxu0 0.0
    %419 = vmatpush1.msra.mxu0 0.0
    %420 = vmatprep.subr.mxu0 0.0
    %421 = vmatpush1.msra.mxu0 0.0
    %422 = vmatprep.subr.mxu0 0.0
    %423 = vmatpush1.msra.mxu0 0.0
    %424 = vmatprep.subr.mxu0 0.0
    %425 = vmatpush1.msra.mxu0 0.0
    %426 = vmatprep.subr.mxu0 0.0
    %427 = vmatpush1.msra.mxu0 0.0
    %428 = vmatprep.subr.mxu0 0.0
    %429 = vmatpush1.msra.mxu0 0.0
    %430 = vmatprep.subr.mxu0 0.0
    %431 = vmatpush1.msra.mxu0 0.0
    %432 = vmatprep.subr.mxu0 0.0
    %433 = vmatpush1.msra.mxu0 0.0
    %434 = vmatprep.subr.mxu0 0.0
    %435 = vmatpush1.msra.mxu0 0.0
    %436 = vmatprep.subr.mxu0 0.0
    %437 = vmatpush1.msra.mxu0 0.0
    %438 = vmatprep.subr.mxu0 0.0
    %439 = vmatpush1.msra.mxu0 0.0
    %440 = vmatprep.subr.mxu0 0.0
    %441 = vmatpush1.msra.mxu0 0.0
    %442 = vmatprep.subr.mxu0 0.0
    %443 = vmatpush1.msra.mxu0 0.0
    %444 = vmatprep.subr.mxu0 0.0
    %445 = vmatpush1.msra.mxu0 0.0
    %446 = vmatprep.subr.mxu0 0.0
    %447 = vmatpush1.msra.mxu0 0.0
    %448 = vmatprep.subr.mxu0 0.0
    %449 = vmatpush1.msra.mxu0 0.0
    %450 = vmatprep.subr.mxu0 0.0
    %451 = vmatpush1.msra.mxu0 0.0
    %452 = vmatprep.subr.mxu0 0.0
    %453 = vmatpush1.msra.mxu0 0.0
    %454 = vmatprep.mubr.f32.mxu0 0.0
    %455 = vmatmul.mubr.f32.gmra.mrb[0].mxu0 %v388
    %v456 = vpop.f32.mrb[0].mxu0
    %v457 = vadd.f32 0.0, %v456
    %v458 = vpop.f32.mrb[0].mxu0
    %v459 = vadd.f32 0.0, %v458
    %460 = vdwg.mxu0
    %v461 = vadd.f32 %v386, %v457
    %v462 = vadd.f32 %v387, %v459
    %v463 = vxor.u32 %v461, 2147483648
    %v464 = vmul.f32 %v463, 1.442695
    %v465 = vpow.pop %v464
    %v466 = vadd.f32 %v465, 1.0
    %v467 = vrcp.pop %v466
    %v468 = vmul.f32 1.0, %v467
    %v469 = vtanh.pop %v462
    %v470 = vxor.u32 %v462, 2147483648
    %v471 = vmul.f32 %v470, 1.442695
    %v472 = vpow.pop %v471
    %v473 = vadd.f32 %v472, 1.0
    %v474 = vrcp.pop %v473
    %v475 = vmul.f32 1.0, %v474
    %v476 = vmul.f32 %v468, %v378
    %v477 = vmul.f32 %v468, %v469
    %479 = vrot.lane.b32.xlu0 %v477, 64
    %v480 = vpop.permute.xlu0 %479
    %v482 = vadd.f32 %v476, %v480
    %v483 = vtanh.pop %v482
    %v484 = vmul.f32 %v475, %v483
    %486 = vrot.lane.b32.xlu0 %v484, 64
    %v487 = vpop.permute.xlu0 %486
    %489 = vst.msk [vmem:[#allocation2 + $0x8] sm:$0xff] %vm282, %v487
    %v490 = vld [vmem:[#allocation4 + $0x20] sm:$0xff]
    %v491 = vld [vmem:[#allocation4 + $0x28] sm:$0xff]
    %v492 = vsel %vm282, %v487, 0
    %494 = vmatprep.subr.mxu0 %v265
    %495 = vmatpush1.msra.mxu0 %v264
    %496 = vmatprep.subr.mxu0 %v267
    %497 = vmatpush1.msra.mxu0 %v266
    %498 = vmatprep.subr.mxu0 %v269
    %499 = vmatpush1.msra.mxu0 %v268
    %500 = vmatprep.subr.mxu0 %v271
    %501 = vmatpush1.msra.mxu0 %v270
    %502 = vmatprep.subr.mxu0 %v273
    %503 = vmatpush1.msra.mxu0 %v272
    %504 = vmatprep.subr.mxu0 %v275
    %505 = vmatpush1.msra.mxu0 %v274
    %506 = vmatprep.subr.mxu0 %v277
    %507 = vmatpush1.msra.mxu0 %v276
    %508 = vmatprep.subr.mxu0 %v279
    %509 = vmatpush1.msra.mxu0 %v278
    %510 = vmatprep.subr.mxu0 0.0
    %511 = vmatpush1.msra.mxu0 0.0
    %512 = vmatprep.subr.mxu0 0.0
    %513 = vmatpush1.msra.mxu0 0.0
    %514 = vmatprep.subr.mxu0 0.0
    %515 = vmatpush1.msra.mxu0 0.0
    %516 = vmatprep.subr.mxu0 0.0
    %517 = vmatpush1.msra.mxu0 0.0
    %518 = vmatprep.subr.mxu0 0.0
    %519 = vmatpush1.msra.mxu0 0.0
    %520 = vmatprep.subr.mxu0 0.0
    %521 = vmatpush1.msra.mxu0 0.0
    %522 = vmatprep.subr.mxu0 0.0
    %523 = vmatpush1.msra.mxu0 0.0
    %524 = vmatprep.subr.mxu0 0.0
    %525 = vmatpush1.msra.mxu0 0.0
    %526 = vmatprep.subr.mxu0 0.0
    %527 = vmatpush1.msra.mxu0 0.0
    %528 = vmatprep.subr.mxu0 0.0
    %529 = vmatpush1.msra.mxu0 0.0
    %530 = vmatprep.subr.mxu0 0.0
    %531 = vmatpush1.msra.mxu0 0.0
    %532 = vmatprep.subr.mxu0 0.0
    %533 = vmatpush1.msra.mxu0 0.0
    %534 = vmatprep.subr.mxu0 0.0
    %535 = vmatpush1.msra.mxu0 0.0
    %536 = vmatprep.subr.mxu0 0.0
    %537 = vmatpush1.msra.mxu0 0.0
    %538 = vmatprep.subr.mxu0 0.0
    %539 = vmatpush1.msra.mxu0 0.0
    %540 = vmatprep.subr.mxu0 0.0
    %541 = vmatpush1.msra.mxu0 0.0
    %542 = vmatprep.subr.mxu0 0.0
    %543 = vmatpush1.msra.mxu0 0.0
    %544 = vmatprep.subr.mxu0 0.0
    %545 = vmatpush1.msra.mxu0 0.0
    %546 = vmatprep.subr.mxu0 0.0
    %547 = vmatpush1.msra.mxu0 0.0
    %548 = vmatprep.subr.mxu0 0.0
    %549 = vmatpush1.msra.mxu0 0.0
    %550 = vmatprep.subr.mxu0 0.0
    %551 = vmatpush1.msra.mxu0 0.0
    %552 = vmatprep.subr.mxu0 0.0
    %553 = vmatpush1.msra.mxu0 0.0
    %554 = vmatprep.subr.mxu0 0.0
    %555 = vmatpush1.msra.mxu0 0.0
    %556 = vmatprep.subr.mxu0 0.0
    %557 = vmatpush1.msra.mxu0 0.0
    %558 = vmatprep.mubr.f32.mxu0 0.0
    %559 = vmatmul.mubr.f32.gmra.mrb[0].mxu0 %v492
    %v560 = vpop.f32.mrb[0].mxu0
    %v561 = vadd.f32 0.0, %v560
    %v562 = vpop.f32.mrb[0].mxu0
    %v563 = vadd.f32 0.0, %v562
    %564 = vdwg.mxu0
    %v565 = vadd.f32 %v490, %v561
    %v566 = vadd.f32 %v491, %v563
    %v567 = vxor.u32 %v565, 2147483648
    %v568 = vmul.f32 %v567, 1.442695
    %v569 = vpow.pop %v568
    %v570 = vadd.f32 %v569, 1.0
    %v571 = vrcp.pop %v570
    %v572 = vmul.f32 1.0, %v571
    %v573 = vtanh.pop %v566
    %v574 = vxor.u32 %v566, 2147483648
    %v575 = vmul.f32 %v574, 1.442695
    %v576 = vpow.pop %v575
    %v577 = vadd.f32 %v576, 1.0
    %v578 = vrcp.pop %v577
    %v579 = vmul.f32 1.0, %v578
    %v580 = vmul.f32 %v572, %v482
    %v581 = vmul.f32 %v572, %v573
    %583 = vrot.lane.b32.xlu0 %v581, 64
    %v584 = vpop.permute.xlu0 %583
    %v586 = vadd.f32 %v580, %v584
    %v587 = vtanh.pop %v586
    %v588 = vmul.f32 %v579, %v587
    %590 = vrot.lane.b32.xlu0 %v588, 64
    %v591 = vpop.permute.xlu0 %590
    %593 = vst.msk [vmem:[#allocation2 + $0x10] sm:$0xff] %vm282, %v591
    %v594 = vld [vmem:[#allocation4 + $0x30] sm:$0xff]
    %v595 = vld [vmem:[#allocation4 + $0x38] sm:$0xff]
    %v596 = vsel %vm282, %v591, 0
    %598 = vmatprep.subr.mxu0 %v265
    %599 = vmatpush1.msra.mxu0 %v264
    %600 = vmatprep.subr.mxu0 %v267
    %601 = vmatpush1.msra.mxu0 %v266
    %602 = vmatprep.subr.mxu0 %v269
    %603 = vmatpush1.msra.mxu0 %v268
    %604 = vmatprep.subr.mxu0 %v271
    %605 = vmatpush1.msra.mxu0 %v270
    %606 = vmatprep.subr.mxu0 %v273
    %607 = vmatpush1.msra.mxu0 %v272
    %608 = vmatprep.subr.mxu0 %v275
    %609 = vmatpush1.msra.mxu0 %v274
    %610 = vmatprep.subr.mxu0 %v277
    %611 = vmatpush1.msra.mxu0 %v276
    %612 = vmatprep.subr.mxu0 %v279
    %613 = vmatpush1.msra.mxu0 %v278
    %614 = vmatprep.subr.mxu0 0.0
    %615 = vmatpush1.msra.mxu0 0.0
    %616 = vmatprep.subr.mxu0 0.0
    %617 = vmatpush1.msra.mxu0 0.0
    %618 = vmatprep.subr.mxu0 0.0
    %619 = vmatpush1.msra.mxu0 0.0
    %620 = vmatprep.subr.mxu0 0.0
    %621 = vmatpush1.msra.mxu0 0.0
    %622 = vmatprep.subr.mxu0 0.0
    %623 = vmatpush1.msra.mxu0 0.0
    %624 = vmatprep.subr.mxu0 0.0
    %625 = vmatpush1.msra.mxu0 0.0
    %626 = vmatprep.subr.mxu0 0.0
    %627 = vmatpush1.msra.mxu0 0.0
    %628 = vmatprep.subr.mxu0 0.0
    %629 = vmatpush1.msra.mxu0 0.0
    %630 = vmatprep.subr.mxu0 0.0
    %631 = vmatpush1.msra.mxu0 0.0
    %632 = vmatprep.subr.mxu0 0.0
    %633 = vmatpush1.msra.mxu0 0.0
    %634 = vmatprep.subr.mxu0 0.0
    %635 = vmatpush1.msra.mxu0 0.0
    %636 = vmatprep.subr.mxu0 0.0
    %637 = vmatpush1.msra.mxu0 0.0
    %638 = vmatprep.subr.mxu0 0.0
    %639 = vmatpush1.msra.mxu0 0.0
    %640 = vmatprep.subr.mxu0 0.0
    %641 = vmatpush1.msra.mxu0 0.0
    %642 = vmatprep.subr.mxu0 0.0
    %643 = vmatpush1.msra.mxu0 0.0
    %644 = vmatprep.subr.mxu0 0.0
    %645 = vmatpush1.msra.mxu0 0.0
    %646 = vmatprep.subr.mxu0 0.0
    %647 = vmatpush1.msra.mxu0 0.0
    %648 = vmatprep.subr.mxu0 0.0
    %649 = vmatpush1.msra.mxu0 0.0
    %650 = vmatprep.subr.mxu0 0.0
    %651 = vmatpush1.msra.mxu0 0.0
    %652 = vmatprep.subr.mxu0 0.0
    %653 = vmatpush1.msra.mxu0 0.0
    %654 = vmatprep.subr.mxu0 0.0
    %655 = vmatpush1.msra.mxu0 0.0
    %656 = vmatprep.subr.mxu0 0.0
    %657 = vmatpush1.msra.mxu0 0.0
    %658 = vmatprep.subr.mxu0 0.0
    %659 = vmatpush1.msra.mxu0 0.0
    %660 = vmatprep.subr.mxu0 0.0
    %661 = vmatpush1.msra.mxu0 0.0
    %662 = vmatprep.mubr.f32.mxu0 0.0
    %663 = vmatmul.mubr.f32.gmra.mrb[0].mxu0 %v596
    %v664 = vpop.f32.mrb[0].mxu0
    %v665 = vadd.f32 0.0, %v664
    %v666 = vpop.f32.mrb[0].mxu0
    %v667 = vadd.f32 0.0, %v666
    %668 = vdwg.mxu0
    %v669 = vadd.f32 %v594, %v665
    %v670 = vadd.f32 %v595, %v667
    %v671 = vxor.u32 %v669, 2147483648
    %v672 = vmul.f32 %v671, 1.442695
    %v673 = vpow.pop %v672
    %v674 = vadd.f32 %v673, 1.0
    %v675 = vrcp.pop %v674
    %v676 = vmul.f32 1.0, %v675
    %v677 = vtanh.pop %v670
    %v678 = vxor.u32 %v670, 2147483648
    %v679 = vmul.f32 %v678, 1.442695
    %v680 = vpow.pop %v679
    %v681 = vadd.f32 %v680, 1.0
    %v682 = vrcp.pop %v681
    %v683 = vmul.f32 1.0, %v682
    %v684 = vmul.f32 %v676, %v586
    %v685 = vmul.f32 %v676, %v677
    %687 = vrot.lane.b32.xlu0 %v685, 64
    %v688 = vpop.permute.xlu0 %687
    %v690 = vadd.f32 %v684, %v688
    %v691 = vtanh.pop %v690
    %v692 = vmul.f32 %v683, %v691
    %694 = vrot.lane.b32.xlu0 %v692, 64
    %v695 = vpop.permute.xlu0 %694
    %697 = vst.msk [vmem:[#allocation2 + $0x18] sm:$0xff] %vm282, %v695
    %v698 = vld [vmem:[#allocation4 + $0x40] sm:$0xff]
    %v699 = vld [vmem:[#allocation4 + $0x48] sm:$0xff]
    %v700 = vsel %vm282, %v695, 0
    %702 = vmatprep.subr.mxu0 %v265
    %703 = vmatpush1.msra.mxu0 %v264
    %704 = vmatprep.subr.mxu0 %v267
    %705 = vmatpush1.msra.mxu0 %v266
    %706 = vmatprep.subr.mxu0 %v269
    %707 = vmatpush1.msra.mxu0 %v268
    %708 = vmatprep.subr.mxu0 %v271
    %709 = vmatpush1.msra.mxu0 %v270
    %710 = vmatprep.subr.mxu0 %v273
    %711 = vmatpush1.msra.mxu0 %v272
    %712 = vmatprep.subr.mxu0 %v275
    %713 = vmatpush1.msra.mxu0 %v274
    %714 = vmatprep.subr.mxu0 %v277
    %715 = vmatpush1.msra.mxu0 %v276
    %716 = vmatprep.subr.mxu0 %v279
    %717 = vmatpush1.msra.mxu0 %v278
    %718 = vmatprep.subr.mxu0 0.0
    %719 = vmatpush1.msra.mxu0 0.0
    %720 = vmatprep.subr.mxu0 0.0
    %721 = vmatpush1.msra.mxu0 0.0
    %722 = vmatprep.subr.mxu0 0.0
    %723 = vmatpush1.msra.mxu0 0.0
    %724 = vmatprep.subr.mxu0 0.0
    %725 = vmatpush1.msra.mxu0 0.0
    %726 = vmatprep.subr.mxu0 0.0
    %727 = vmatpush1.msra.mxu0 0.0
    %728 = vmatprep.subr.mxu0 0.0
    %729 = vmatpush1.msra.mxu0 0.0
    %730 = vmatprep.subr.mxu0 0.0
    %731 = vmatpush1.msra.mxu0 0.0
    %732 = vmatprep.subr.mxu0 0.0
    %733 = vmatpush1.msra.mxu0 0.0
    %734 = vmatprep.subr.mxu0 0.0
    %735 = vmatpush1.msra.mxu0 0.0
    %736 = vmatprep.subr.mxu0 0.0
    %737 = vmatpush1.msra.mxu0 0.0
    %738 = vmatprep.subr.mxu0 0.0
    %739 = vmatpush1.msra.mxu0 0.0
    %740 = vmatprep.subr.mxu0 0.0
    %741 = vmatpush1.msra.mxu0 0.0
    %742 = vmatprep.subr.mxu0 0.0
    %743 = vmatpush1.msra.mxu0 0.0
    %744 = vmatprep.subr.mxu0 0.0
    %745 = vmatpush1.msra.mxu0 0.0
    %746 = vmatprep.subr.mxu0 0.0
    %747 = vmatpush1.msra.mxu0 0.0
    %748 = vmatprep.subr.mxu0 0.0
    %749 = vmatpush1.msra.mxu0 0.0
    %750 = vmatprep.subr.mxu0 0.0
    %751 = vmatpush1.msra.mxu0 0.0
    %752 = vmatprep.subr.mxu0 0.0
    %753 = vmatpush1.msra.mxu0 0.0
    %754 = vmatprep.subr.mxu0 0.0
    %755 = vmatpush1.msra.mxu0 0.0
    %756 = vmatprep.subr.mxu0 0.0
    %757 = vmatpush1.msra.mxu0 0.0
    %758 = vmatprep.subr.mxu0 0.0
    %759 = vmatpush1.msra.mxu0 0.0
    %760 = vmatprep.subr.mxu0 0.0
    %761 = vmatpush1.msra.mxu0 0.0
    %762 = vmatprep.subr.mxu0 0.0
    %763 = vmatpush1.msra.mxu0 0.0
    %764 = vmatprep.subr.mxu0 0.0
    %765 = vmatpush1.msra.mxu0 0.0
    %766 = vmatprep.mubr.f32.mxu0 0.0
    %767 = vmatmul.mubr.f32.gmra.mrb[0].mxu0 %v700
    %v768 = vpop.f32.mrb[0].mxu0
    %v769 = vadd.f32 0.0, %v768
    %v770 = vpop.f32.mrb[0].mxu0
    %v771 = vadd.f32 0.0, %v770
    %772 = vdwg.mxu0
    %v773 = vadd.f32 %v698, %v769
    %v774 = vadd.f32 %v699, %v771
    %v775 = vxor.u32 %v773, 2147483648
    %v776 = vmul.f32 %v775, 1.442695
    %v777 = vpow.pop %v776
    %v778 = vadd.f32 %v777, 1.0
    %v779 = vrcp.pop %v778
    %v780 = vmul.f32 1.0, %v779
    %v781 = vtanh.pop %v774
    %v782 = vxor.u32 %v774, 2147483648
    %v783 = vmul.f32 %v782, 1.442695
    %v784 = vpow.pop %v783
    %v785 = vadd.f32 %v784, 1.0
    %v786 = vrcp.pop %v785
    %v787 = vmul.f32 1.0, %v786
    %v788 = vmul.f32 %v780, %v690
    %v789 = vmul.f32 %v780, %v781
    %791 = vrot.lane.b32.xlu0 %v789, 64
    %v792 = vpop.permute.xlu0 %791
    %v794 = vadd.f32 %v788, %v792
    %v795 = vtanh.pop %v794
    %v796 = vmul.f32 %v787, %v795
    %798 = vrot.lane.b32.xlu0 %v796, 64
    %v799 = vpop.permute.xlu0 %798
    %801 = vst.msk [vmem:[#allocation2 + $0x20] sm:$0xff] %vm282, %v799
    %v802 = vld [vmem:[#allocation4 + $0x50] sm:$0xff]
    %v803 = vld [vmem:[#allocation4 + $0x58] sm:$0xff]
    %v804 = vsel %vm282, %v799, 0
    %806 = vmatprep.subr.mxu0 %v265
    %807 = vmatpush1.msra.mxu0 %v264
    %808 = vmatprep.subr.mxu0 %v267
    %809 = vmatpush1.msra.mxu0 %v266
    %810 = vmatprep.subr.mxu0 %v269
    %811 = vmatpush1.msra.mxu0 %v268
    %812 = vmatprep.subr.mxu0 %v271
    %813 = vmatpush1.msra.mxu0 %v270
    %814 = vmatprep.subr.mxu0 %v273
    %815 = vmatpush1.msra.mxu0 %v272
    %816 = vmatprep.subr.mxu0 %v275
    %817 = vmatpush1.msra.mxu0 %v274
    %818 = vmatprep.subr.mxu0 %v277
    %819 = vmatpush1.msra.mxu0 %v276
    %820 = vmatprep.subr.mxu0 %v279
    %821 = vmatpush1.msra.mxu0 %v278
    %822 = vmatprep.subr.mxu0 0.0
    %823 = vmatpush1.msra.mxu0 0.0
    %824 = vmatprep.subr.mxu0 0.0
    %825 = vmatpush1.msra.mxu0 0.0
    %826 = vmatprep.subr.mxu0 0.0
    %827 = vmatpush1.msra.mxu0 0.0
    %828 = vmatprep.subr.mxu0 0.0
    %829 = vmatpush1.msra.mxu0 0.0
    %830 = vmatprep.subr.mxu0 0.0
    %831 = vmatpush1.msra.mxu0 0.0
    %832 = vmatprep.subr.mxu0 0.0
    %833 = vmatpush1.msra.mxu0 0.0
    %834 = vmatprep.subr.mxu0 0.0
    %835 = vmatpush1.msra.mxu0 0.0
    %836 = vmatprep.subr.mxu0 0.0
    %837 = vmatpush1.msra.mxu0 0.0
    %838 = vmatprep.subr.mxu0 0.0
    %839 = vmatpush1.msra.mxu0 0.0
    %840 = vmatprep.subr.mxu0 0.0
    %841 = vmatpush1.msra.mxu0 0.0
    %842 = vmatprep.subr.mxu0 0.0
    %843 = vmatpush1.msra.mxu0 0.0
    %844 = vmatprep.subr.mxu0 0.0
    %845 = vmatpush1.msra.mxu0 0.0
    %846 = vmatprep.subr.mxu0 0.0
    %847 = vmatpush1.msra.mxu0 0.0
    %848 = vmatprep.subr.mxu0 0.0
    %849 = vmatpush1.msra.mxu0 0.0
    %850 = vmatprep.subr.mxu0 0.0
    %851 = vmatpush1.msra.mxu0 0.0
    %852 = vmatprep.subr.mxu0 0.0
    %853 = vmatpush1.msra.mxu0 0.0
    %854 = vmatprep.subr.mxu0 0.0
    %855 = vmatpush1.msra.mxu0 0.0
    %856 = vmatprep.subr.mxu0 0.0
    %857 = vmatpush1.msra.mxu0 0.0
    %858 = vmatprep.subr.mxu0 0.0
    %859 = vmatpush1.msra.mxu0 0.0
    %860 = vmatprep.subr.mxu0 0.0
    %861 = vmatpush1.msra.mxu0 0.0
    %862 = vmatprep.subr.mxu0 0.0
    %863 = vmatpush1.msra.mxu0 0.0
    %864 = vmatprep.subr.mxu0 0.0
    %865 = vmatpush1.msra.mxu0 0.0
    %866 = vmatprep.subr.mxu0 0.0
    %867 = vmatpush1.msra.mxu0 0.0
    %868 = vmatprep.subr.mxu0 0.0
    %869 = vmatpush1.msra.mxu0 0.0
    %870 = vmatprep.mubr.f32.mxu0 0.0
    %871 = vmatmul.mubr.f32.gmra.mrb[0].mxu0 %v804
    %v872 = vpop.f32.mrb[0].mxu0
    %v873 = vadd.f32 0.0, %v872
    %v874 = vpop.f32.mrb[0].mxu0
    %v875 = vadd.f32 0.0, %v874
    %876 = vdwg.mxu0
    %v877 = vadd.f32 %v802, %v873
    %v878 = vadd.f32 %v803, %v875
    %v879 = vxor.u32 %v877, 2147483648
    %v880 = vmul.f32 %v879, 1.442695
    %v881 = vpow.pop %v880
    %v882 = vadd.f32 %v881, 1.0
    %v883 = vrcp.pop %v882
    %v884 = vmul.f32 1.0, %v883
    %v885 = vtanh.pop %v878
    %v886 = vxor.u32 %v878, 2147483648
    %v887 = vmul.f32 %v886, 1.442695
    %v888 = vpow.pop %v887
    %v889 = vadd.f32 %v888, 1.0
    %v890 = vrcp.pop %v889
    %v891 = vmul.f32 1.0, %v890
    %v892 = vmul.f32 %v884, %v794
    %v893 = vmul.f32 %v884, %v885
    %895 = vrot.lane.b32.xlu0 %v893, 64
    %v896 = vpop.permute.xlu0 %895
    %v898 = vadd.f32 %v892, %v896
    %v899 = vtanh.pop %v898
    %v900 = vmul.f32 %v891, %v899
    %902 = vrot.lane.b32.xlu0 %v900, 64
    %v903 = vpop.permute.xlu0 %902
    %905 = vst.msk [vmem:[#allocation2 + $0x28] sm:$0xff] %vm282, %v903
    %v906 = vld [vmem:[#allocation4 + $0x60] sm:$0xff]
    %v907 = vld [vmem:[#allocation4 + $0x68] sm:$0xff]
    %v908 = vsel %vm282, %v903, 0
    %910 = vmatprep.subr.mxu0 %v265
    %911 = vmatpush1.msra.mxu0 %v264
    %912 = vmatprep.subr.mxu0 %v267
    %913 = vmatpush1.msra.mxu0 %v266
    %914 = vmatprep.subr.mxu0 %v269
    %915 = vmatpush1.msra.mxu0 %v268
    %916 = vmatprep.subr.mxu0 %v271
    %917 = vmatpush1.msra.mxu0 %v270
    %918 = vmatprep.subr.mxu0 %v273
    %919 = vmatpush1.msra.mxu0 %v272
    %920 = vmatprep.subr.mxu0 %v275
    %921 = vmatpush1.msra.mxu0 %v274
    %922 = vmatprep.subr.mxu0 %v277
    %923 = vmatpush1.msra.mxu0 %v276
    %924 = vmatprep.subr.mxu0 %v279
    %925 = vmatpush1.msra.mxu0 %v278
    %926 = vmatprep.subr.mxu0 0.0
    %927 = vmatpush1.msra.mxu0 0.0
    %928 = vmatprep.subr.mxu0 0.0
    %929 = vmatpush1.msra.mxu0 0.0
    %930 = vmatprep.subr.mxu0 0.0
    %931 = vmatpush1.msra.mxu0 0.0
    %932 = vmatprep.subr.mxu0 0.0
    %933 = vmatpush1.msra.mxu0 0.0
    %934 = vmatprep.subr.mxu0 0.0
    %935 = vmatpush1.msra.mxu0 0.0
    %936 = vmatprep.subr.mxu0 0.0
    %937 = vmatpush1.msra.mxu0 0.0
    %938 = vmatprep.subr.mxu0 0.0
    %939 = vmatpush1.msra.mxu0 0.0
    %940 = vmatprep.subr.mxu0 0.0
    %941 = vmatpush1.msra.mxu0 0.0
    %942 = vmatprep.subr.mxu0 0.0
    %943 = vmatpush1.msra.mxu0 0.0
    %944 = vmatprep.subr.mxu0 0.0
    %945 = vmatpush1.msra.mxu0 0.0
    %946 = vmatprep.subr.mxu0 0.0
    %947 = vmatpush1.msra.mxu0 0.0
    %948 = vmatprep.subr.mxu0 0.0
    %949 = vmatpush1.msra.mxu0 0.0
    %950 = vmatprep.subr.mxu0 0.0
    %951 = vmatpush1.msra.mxu0 0.0
    %952 = vmatprep.subr.mxu0 0.0
    %953 = vmatpush1.msra.mxu0 0.0
    %954 = vmatprep.subr.mxu0 0.0
    %955 = vmatpush1.msra.mxu0 0.0
    %956 = vmatprep.subr.mxu0 0.0
    %957 = vmatpush1.msra.mxu0 0.0
    %958 = vmatprep.subr.mxu0 0.0
    %959 = vmatpush1.msra.mxu0 0.0
    %960 = vmatprep.subr.mxu0 0.0
    %961 = vmatpush1.msra.mxu0 0.0
    %962 = vmatprep.subr.mxu0 0.0
    %963 = vmatpush1.msra.mxu0 0.0
    %964 = vmatprep.subr.mxu0 0.0
    %965 = vmatpush1.msra.mxu0 0.0
    %966 = vmatprep.subr.mxu0 0.0
    %967 = vmatpush1.msra.mxu0 0.0
    %968 = vmatprep.subr.mxu0 0.0
    %969 = vmatpush1.msra.mxu0 0.0
    %970 = vmatprep.subr.mxu0 0.0
    %971 = vmatpush1.msra.mxu0 0.0
    %972 = vmatprep.subr.mxu0 0.0
    %973 = vmatpush1.msra.mxu0 0.0
    %974 = vmatprep.mubr.f32.mxu0 0.0
    %975 = vmatmul.mubr.f32.gmra.mrb[0].mxu0 %v908
    %v976 = vpop.f32.mrb[0].mxu0
    %v977 = vadd.f32 0.0, %v976
    %v978 = vpop.f32.mrb[0].mxu0
    %v979 = vadd.f32 0.0, %v978
    %980 = vdwg.mxu0
    %v981 = vadd.f32 %v906, %v977
    %v982 = vadd.f32 %v907, %v979
    %v983 = vxor.u32 %v981, 2147483648
    %v984 = vmul.f32 %v983, 1.442695
    %v985 = vpow.pop %v984
    %v986 = vadd.f32 %v985, 1.0
    %v987 = vrcp.pop %v986
    %v988 = vmul.f32 1.0, %v987
    %v989 = vtanh.pop %v982
    %v990 = vxor.u32 %v982, 2147483648
    %v991 = vmul.f32 %v990, 1.442695
    %v992 = vpow.pop %v991
    %v993 = vadd.f32 %v992, 1.0
    %v994 = vrcp.pop %v993
    %v995 = vmul.f32 1.0, %v994
    %v996 = vmul.f32 %v988, %v898
    %v997 = vmul.f32 %v988, %v989
    %999 = vrot.lane.b32.xlu0 %v997, 64
    %v1000 = vpop.permute.xlu0 %999
    %v1002 = vadd.f32 %v996, %v1000
    %v1003 = vtanh.pop %v1002
    %v1004 = vmul.f32 %v995, %v1003
    %1006 = vrot.lane.b32.xlu0 %v1004, 64
    %v1007 = vpop.permute.xlu0 %1006
    %1009 = vst.msk [vmem:[#allocation2 + $0x30] sm:$0xff] %vm282, %v1007
    %v1010 = vld [vmem:[#allocation4 + $0x70] sm:$0xff]
    %v1011 = vld [vmem:[#allocation4 + $0x78] sm:$0xff]
    %v1012 = vsel %vm282, %v1007, 0
    %1014 = vmatprep.subr.mxu0 %v265
    %1015 = vmatpush1.msra.mxu0 %v264
    %1016 = vmatprep.subr.mxu0 %v267
    %1017 = vmatpush1.msra.mxu0 %v266
    %1018 = vmatprep.subr.mxu0 %v269
    %1019 = vmatpush1.msra.mxu0 %v268
    %1020 = vmatprep.subr.mxu0 %v271
    %1021 = vmatpush1.msra.mxu0 %v270
    %1022 = vmatprep.subr.mxu0 %v273
    %1023 = vmatpush1.msra.mxu0 %v272
    %1024 = vmatprep.subr.mxu0 %v275
    %1025 = vmatpush1.msra.mxu0 %v274
    %1026 = vmatprep.subr.mxu0 %v277
    %1027 = vmatpush1.msra.mxu0 %v276
    %1028 = vmatprep.subr.mxu0 %v279
    %1029 = vmatpush1.msra.mxu0 %v278
    %1030 = vmatprep.subr.mxu0 0.0
    %1031 = vmatpush1.msra.mxu0 0.0
    %1032 = vmatprep.subr.mxu0 0.0
    %1033 = vmatpush1.msra.mxu0 0.0
    %1034 = vmatprep.subr.mxu0 0.0
    %1035 = vmatpush1.msra.mxu0 0.0
    %1036 = vmatprep.subr.mxu0 0.0
    %1037 = vmatpush1.msra.mxu0 0.0
    %1038 = vmatprep.subr.mxu0 0.0
    %1039 = vmatpush1.msra.mxu0 0.0
    %1040 = vmatprep.subr.mxu0 0.0
    %1041 = vmatpush1.msra.mxu0 0.0
    %1042 = vmatprep.subr.mxu0 0.0
    %1043 = vmatpush1.msra.mxu0 0.0
    %1044 = vmatprep.subr.mxu0 0.0
    %1045 = vmatpush1.msra.mxu0 0.0
    %1046 = vmatprep.subr.mxu0 0.0
    %1047 = vmatpush1.msra.mxu0 0.0
    %1048 = vmatprep.subr.mxu0 0.0
    %1049 = vmatpush1.msra.mxu0 0.0
    %1050 = vmatprep.subr.mxu0 0.0
    %1051 = vmatpush1.msra.mxu0 0.0
    %1052 = vmatprep.subr.mxu0 0.0
    %1053 = vmatpush1.msra.mxu0 0.0
    %1054 = vmatprep.subr.mxu0 0.0
    %1055 = vmatpush1.msra.mxu0 0.0
    %1056 = vmatprep.subr.mxu0 0.0
    %1057 = vmatpush1.msra.mxu0 0.0
    %1058 = vmatprep.subr.mxu0 0.0
    %1059 = vmatpush1.msra.mxu0 0.0
    %1060 = vmatprep.subr.mxu0 0.0
    %1061 = vmatpush1.msra.mxu0 0.0
    %1062 = vmatprep.subr.mxu0 0.0
    %1063 = vmatpush1.msra.mxu0 0.0
    %1064 = vmatprep.subr.mxu0 0.0
    %1065 = vmatpush1.msra.mxu0 0.0
    %1066 = vmatprep.subr.mxu0 0.0
    %1067 = vmatpush1.msra.mxu0 0.0
    %1068 = vmatprep.subr.mxu0 0.0
    %1069 = vmatpush1.msra.mxu0 0.0
    %1070 = vmatprep.subr.mxu0 0.0
    %1071 = vmatpush1.msra.mxu0 0.0
    %1072 = vmatprep.subr.mxu0 0.0
    %1073 = vmatpush1.msra.mxu0 0.0
    %1074 = vmatprep.subr.mxu0 0.0
    %1075 = vmatpush1.msra.mxu0 0.0
    %1076 = vmatprep.subr.mxu0 0.0
    %1077 = vmatpush1.msra.mxu0 0.0
    %1078 = vmatprep.mubr.f32.mxu0 0.0
    %1079 = vmatmul.mubr.f32.gmra.mrb[0].mxu0 %v1012
    %v1080 = vpop.f32.mrb[0].mxu0
    %v1081 = vadd.f32 0.0, %v1080
    %v1082 = vpop.f32.mrb[0].mxu0
    %v1083 = vadd.f32 0.0, %v1082
    %1084 = vdwg.mxu0
    %v1085 = vadd.f32 %v1010, %v1081
    %v1086 = vadd.f32 %v1011, %v1083
    %v1087 = vxor.u32 %v1085, 2147483648
    %v1088 = vmul.f32 %v1087, 1.442695
    %v1089 = vpow.pop %v1088
    %v1090 = vadd.f32 %v1089, 1.0
    %v1091 = vrcp.pop %v1090
    %v1092 = vmul.f32 1.0, %v1091
    %v1093 = vtanh.pop %v1086
    %v1094 = vxor.u32 %v1086, 2147483648
    %v1095 = vmul.f32 %v1094, 1.442695
    %v1096 = vpow.pop %v1095
    %v1097 = vadd.f32 %v1096, 1.0
    %v1098 = vrcp.pop %v1097
    %v1099 = vmul.f32 1.0, %v1098
    %v1100 = vmul.f32 %v1092, %v1002
    %v1101 = vmul.f32 %v1092, %v1093
    %1103 = vrot.lane.b32.xlu0 %v1101, 64
    %v1104 = vpop.permute.xlu0 %1103
    %v1106 = vadd.f32 %v1100, %v1104
    %v1107 = vtanh.pop %v1106
    %v1108 = vmul.f32 %v1099, %v1107
    %1110 = vrot.lane.b32.xlu0 %v1108, 64
    %v1111 = vpop.permute.xlu0 %1110
    %1113 = vst.msk [vmem:[#allocation2 + $0x38] sm:$0xff] %vm282, %v1111
    %v1114 = vld [vmem:[#allocation2] sm:$0xff]
    %v1115 = vld [vmem:[#allocation2 + $0x8] sm:$0xff]
    %v1116 = vld [vmem:[#allocation2 + $0x10] sm:$0xff]
    %v1117 = vld [vmem:[#allocation2 + $0x18] sm:$0xff]
    %v1118 = vld [vmem:[#allocation2 + $0x20] sm:$0xff]
    %v1119 = vld [vmem:[#allocation2 + $0x28] sm:$0xff]
    %v1120 = vld [vmem:[#allocation2 + $0x30] sm:$0xff]
    %v1121 = vld [vmem:[#allocation2 + $0x38] sm:$0xff]
    %v1122 = vld [vmem:[%s4] sm:$0xff]
    %v1123 = vld [vmem:[%s4 + $0x8] sm:$0xff]
    %v1124 = vld [vmem:[%s4 + $0x10] sm:$0xff]
    %v1125 = vld [vmem:[%s4 + $0x18] sm:$0xff]
    %v1126 = vld [vmem:[%s4 + $0x20] sm:$0xff]
    %v1127 = vld [vmem:[%s4 + $0x28] sm:$0xff]
    %v1128 = vld [vmem:[%s4 + $0x30] sm:$0xff]
    %v1129 = vld [vmem:[%s4 + $0x38] sm:$0xff]
    %v1130 = vld [vmem:[%s4 + $0x40] sm:$0xff]
    %v1131 = vld [vmem:[%s4 + $0x48] sm:$0xff]
    %v1132 = vld [vmem:[%s4 + $0x50] sm:$0xff]
    %v1133 = vld [vmem:[%s4 + $0x58] sm:$0xff]
    %v1134 = vld [vmem:[%s4 + $0x60] sm:$0xff]
    %v1135 = vld [vmem:[%s4 + $0x68] sm:$0xff]
    %v1136 = vld [vmem:[%s4 + $0x70] sm:$0xff]
    %v1137 = vld [vmem:[%s4 + $0x78] sm:$0xff]
    %v1138 = vld [vmem:[%s6] sm:$0x3]
    %v1140 = vlaneseq
    %v1141 = vshrl.u32 %v1140, 7
    %v1142 = vsub.s32 0, %v1141
    %v1143 = vrot.slane %v1138, %v1142
    %v1144 = vlaneseq
    %v1145 = vshrl.u32 %v1144, 7
    %v1146 = vsub.s32 1, %v1145
    %v1147 = vrot.slane %v1138, %v1146
    %v1151 = vsel %vm282, %v1114, 0
    %v1154 = vsel %vm282, %v1115, 0
    %v1157 = vsel %vm282, %v1116, 0
    %v1160 = vsel %vm282, %v1117, 0
    %v1163 = vsel %vm282, %v1118, 0
    %v1166 = vsel %vm282, %v1119, 0
    %v1169 = vsel %vm282, %v1120, 0
    %v1172 = vsel %vm282, %v1121, 0
    %1174 = vmatprep.subr.mxu0 %v1123
    %1175 = vmatpush1.msra.mxu0 %v1122
    %1176 = vmatprep.subr.mxu0 %v1125
    %1177 = vmatpush1.msra.mxu0 %v1124
    %1178 = vmatprep.subr.mxu0 %v1127
    %1179 = vmatpush1.msra.mxu0 %v1126
    %1180 = vmatprep.subr.mxu0 %v1129
    %1181 = vmatpush1.msra.mxu0 %v1128
    %1182 = vmatprep.subr.mxu0 %v1131
    %1183 = vmatpush1.msra.mxu0 %v1130
    %1184 = vmatprep.subr.mxu0 %v1133
    %1185 = vmatpush1.msra.mxu0 %v1132
    %1186 = vmatprep.subr.mxu0 %v1135
    %1187 = vmatpush1.msra.mxu0 %v1134
    %1188 = vmatprep.subr.mxu0 %v1137
    %1189 = vmatpush1.msra.mxu0 %v1136
    %1190 = vmatprep.subr.mxu0 0.0
    %1191 = vmatpush1.msra.mxu0 0.0
    %1192 = vmatprep.subr.mxu0 0.0
    %1193 = vmatpush1.msra.mxu0 0.0
    %1194 = vmatprep.subr.mxu0 0.0
    %1195 = vmatpush1.msra.mxu0 0.0
    %1196 = vmatprep.subr.mxu0 0.0
    %1197 = vmatpush1.msra.mxu0 0.0
    %1198 = vmatprep.subr.mxu0 0.0
    %1199 = vmatpush1.msra.mxu0 0.0
    %1200 = vmatprep.subr.mxu0 0.0
    %1201 = vmatpush1.msra.mxu0 0.0
    %1202 = vmatprep.subr.mxu0 0.0
    %1203 = vmatpush1.msra.mxu0 0.0
    %1204 = vmatprep.subr.mxu0 0.0
    %1205 = vmatpush1.msra.mxu0 0.0
    %1206 = vmatprep.subr.mxu0 0.0
    %1207 = vmatpush1.msra.mxu0 0.0
    %1208 = vmatprep.subr.mxu0 0.0
    %1209 = vmatpush1.msra.mxu0 0.0
    %1210 = vmatprep.subr.mxu0 0.0
    %1211 = vmatpush1.msra.mxu0 0.0
    %1212 = vmatprep.subr.mxu0 0.0
    %1213 = vmatpush1.msra.mxu0 0.0
    %1214 = vmatprep.subr.mxu0 0.0
    %1215 = vmatpush1.msra.mxu0 0.0
    %1216 = vmatprep.subr.mxu0 0.0
    %1217 = vmatpush1.msra.mxu0 0.0
    %1218 = vmatprep.subr.mxu0 0.0
    %1219 = vmatpush1.msra.mxu0 0.0
    %1220 = vmatprep.subr.mxu0 0.0
    %1221 = vmatpush1.msra.mxu0 0.0
    %1222 = vmatprep.subr.mxu0 0.0
    %1223 = vmatpush1.msra.mxu0 0.0
    %1224 = vmatprep.subr.mxu0 0.0
    %1225 = vmatpush1.msra.mxu0 0.0
    %1226 = vmatprep.subr.mxu0 0.0
    %1227 = vmatpush1.msra.mxu0 0.0
    %1228 = vmatprep.subr.mxu0 0.0
    %1229 = vmatpush1.msra.mxu0 0.0
    %1230 = vmatprep.subr.mxu0 0.0
    %1231 = vmatpush1.msra.mxu0 0.0
    %1232 = vmatprep.subr.mxu0 0.0
    %1233 = vmatpush1.msra.mxu0 0.0
    %1234 = vmatprep.subr.mxu0 0.0
    %1235 = vmatpush1.msra.mxu0 0.0
    %1236 = vmatprep.subr.mxu0 0.0
    %1237 = vmatpush1.msra.mxu0 0.0
    %1238 = vmatprep.mubr.f32.mxu0 0.0
    %1239 = vmatmul.mubr.f32.gmra.mrb[0].mxu0 %v1151
    %v1240 = vpop.f32.mrb[0].mxu0
    %v1241 = vadd.f32 %v1143, %v1240
    %v1242 = vpop.f32.mrb[0].mxu0
    %v1243 = vadd.f32 %v1147, %v1242
    %1244 = vmatprep.mubr.f32.mxu0 0.0
    %1245 = vmatmul.mubr.f32.gmra.mrb[0].mxu0 %v1154
    %v1246 = vpop.f32.mrb[0].mxu0
    %v1247 = vadd.f32 %v1143, %v1246
    %v1248 = vpop.f32.mrb[0].mxu0
    %v1249 = vadd.f32 %v1147, %v1248
    %1250 = vmatprep.mubr.f32.mxu0 0.0
    %1251 = vmatmul.mubr.f32.gmra.mrb[0].mxu0 %v1157
    %v1252 = vpop.f32.mrb[0].mxu0
    %v1253 = vadd.f32 %v1143, %v1252
    %v1254 = vpop.f32.mrb[0].mxu0
    %v1255 = vadd.f32 %v1147, %v1254
    %1256 = vmatprep.mubr.f32.mxu0 0.0
    %1257 = vmatmul.mubr.f32.gmra.mrb[0].mxu0 %v1160
    %v1258 = vpop.f32.mrb[0].mxu0
    %v1259 = vadd.f32 %v1143, %v1258
    %v1260 = vpop.f32.mrb[0].mxu0
    %v1261 = vadd.f32 %v1147, %v1260
    %1262 = vmatprep.mubr.f32.mxu0 0.0
    %1263 = vmatmul.mubr.f32.gmra.mrb[0].mxu0 %v1163
    %v1264 = vpop.f32.mrb[0].mxu0
    %v1265 = vadd.f32 %v1143, %v1264
    %v1266 = vpop.f32.mrb[0].mxu0
    %v1267 = vadd.f32 %v1147, %v1266
    %1268 = vmatprep.mubr.f32.mxu0 0.0
    %1269 = vmatmul.mubr.f32.gmra.mrb[0].mxu0 %v1166
    %v1270 = vpop.f32.mrb[0].mxu0
    %v1271 = vadd.f32 %v1143, %v1270
    %v1272 = vpop.f32.mrb[0].mxu0
    %v1273 = vadd.f32 %v1147, %v1272
    %1274 = vmatprep.mubr.f32.mxu0 0.0
    %1275 = vmatmul.mubr.f32.gmra.mrb[0].mxu0 %v1169
    %v1276 = vpop.f32.mrb[0].mxu0
    %v1277 = vadd.f32 %v1143, %v1276
    %v1278 = vpop.f32.mrb[0].mxu0
    %v1279 = vadd.f32 %v1147, %v1278
    %1280 = vmatprep.mubr.f32.mxu0 0.0
    %1281 = vmatmul.mubr.f32.gmra.mrb[0].mxu0 %v1172
    %v1282 = vpop.f32.mrb[0].mxu0
    %v1283 = vadd.f32 %v1143, %v1282
    %v1284 = vpop.f32.mrb[0].mxu0
    %v1285 = vadd.f32 %v1147, %v1284
    %1286 = vdwg.mxu0
    %1287 = vst [vmem:[#allocation4] sm:$0xff] %v1241
    %1288 = vst [vmem:[#allocation4 + $0x8] sm:$0xff] %v1243
    %1289 = vst [vmem:[#allocation4 + $0x10] sm:$0xff] %v1247
    %1290 = vst [vmem:[#allocation4 + $0x18] sm:$0xff] %v1249
    %1291 = vst [vmem:[#allocation4 + $0x20] sm:$0xff] %v1253
    %1292 = vst [vmem:[#allocation4 + $0x28] sm:$0xff] %v1255
    %1293 = vst [vmem:[#allocation4 + $0x30] sm:$0xff] %v1259
    %1294 = vst [vmem:[#allocation4 + $0x38] sm:$0xff] %v1261
    %1295 = vst [vmem:[#allocation4 + $0x40] sm:$0xff] %v1265
    %1296 = vst [vmem:[#allocation4 + $0x48] sm:$0xff] %v1267
    %1297 = vst [vmem:[#allocation4 + $0x50] sm:$0xff] %v1271
    %1298 = vst [vmem:[#allocation4 + $0x58] sm:$0xff] %v1273
    %1299 = vst [vmem:[#allocation4 + $0x60] sm:$0xff] %v1277
    %1300 = vst [vmem:[#allocation4 + $0x68] sm:$0xff] %v1279
    %1301 = vst [vmem:[#allocation4 + $0x70] sm:$0xff] %v1283
    %1302 = vst [vmem:[#allocation4 + $0x78] sm:$0xff] %v1285
    %v1303 = vld [vmem:[#allocation5] sm:$0xff]
    %v1304 = vld [vmem:[#allocation5 + $0x8] sm:$0xff]
    %v1305 = vld [vmem:[#allocation5 + $0x10] sm:$0xff]
    %v1306 = vld [vmem:[#allocation5 + $0x18] sm:$0xff]
    %v1307 = vld [vmem:[#allocation5 + $0x20] sm:$0xff]
    %v1308 = vld [vmem:[#allocation5 + $0x28] sm:$0xff]
    %v1309 = vld [vmem:[#allocation5 + $0x30] sm:$0xff]
    %v1310 = vld [vmem:[#allocation5 + $0x38] sm:$0xff]
    %v1311 = vld [vmem:[#allocation5 + $0x40] sm:$0xff]
    %v1312 = vld [vmem:[#allocation5 + $0x48] sm:$0xff]
    %v1313 = vld [vmem:[#allocation5 + $0x50] sm:$0xff]
    %v1314 = vld [vmem:[#allocation5 + $0x58] sm:$0xff]
    %v1315 = vld [vmem:[#allocation5 + $0x60] sm:$0xff]
    %v1316 = vld [vmem:[#allocation5 + $0x68] sm:$0xff]
    %v1317 = vld [vmem:[#allocation5 + $0x70] sm:$0xff]
    %v1318 = vld [vmem:[#allocation5 + $0x78] sm:$0xff]
    %v1319 = vld [vmem:[#allocation4] sm:$0xff]
    %v1320 = vld [vmem:[#allocation4 + $0x8] sm:$0xff]
    %1321 = vmatprep.subr.mxu0 %v1304
    %1322 = vmatpush1.msra.mxu0 %v1303
    %1323 = vmatprep.subr.mxu0 %v1306
    %1324 = vmatpush1.msra.mxu0 %v1305
    %1325 = vmatprep.subr.mxu0 %v1308
    %1326 = vmatpush1.msra.mxu0 %v1307
    %1327 = vmatprep.subr.mxu0 %v1310
    %1328 = vmatpush1.msra.mxu0 %v1309
    %1329 = vmatprep.subr.mxu0 %v1312
    %1330 = vmatpush1.msra.mxu0 %v1311
    %1331 = vmatprep.subr.mxu0 %v1314
    %1332 = vmatpush1.msra.mxu0 %v1313
    %1333 = vmatprep.subr.mxu0 %v1316
    %1334 = vmatpush1.msra.mxu0 %v1315
    %1335 = vmatprep.subr.mxu0 %v1318
    %1336 = vmatpush1.msra.mxu0 %v1317
    %1337 = vmatprep.subr.mxu0 0.0
    %1338 = vmatpush1.msra.mxu0 0.0
    %1339 = vmatprep.subr.mxu0 0.0
    %1340 = vmatpush1.msra.mxu0 0.0
    %1341 = vmatprep.subr.mxu0 0.0
    %1342 = vmatpush1.msra.mxu0 0.0
    %1343 = vmatprep.subr.mxu0 0.0
    %1344 = vmatpush1.msra.mxu0 0.0
    %1345 = vmatprep.subr.mxu0 0.0
    %1346 = vmatpush1.msra.mxu0 0.0
    %1347 = vmatprep.subr.mxu0 0.0
    %1348 = vmatpush1.msra.mxu0 0.0
    %1349 = vmatprep.subr.mxu0 0.0
    %1350 = vmatpush1.msra.mxu0 0.0
    %1351 = vmatprep.subr.mxu0 0.0
    %1352 = vmatpush1.msra.mxu0 0.0
    %1353 = vmatprep.subr.mxu0 0.0
    %1354 = vmatpush1.msra.mxu0 0.0
    %1355 = vmatprep.subr.mxu0 0.0
    %1356 = vmatpush1.msra.mxu0 0.0
    %1357 = vmatprep.subr.mxu0 0.0
    %1358 = vmatpush1.msra.mxu0 0.0
    %1359 = vmatprep.subr.mxu0 0.0
    %1360 = vmatpush1.msra.mxu0 0.0
    %1361 = vmatprep.subr.mxu0 0.0
    %1362 = vmatpush1.msra.mxu0 0.0
    %1363 = vmatprep.subr.mxu0 0.0
    %1364 = vmatpush1.msra.mxu0 0.0
    %1365 = vmatprep.subr.mxu0 0.0
    %1366 = vmatpush1.msra.mxu0 0.0
    %1367 = vmatprep.subr.mxu0 0.0
    %1368 = vmatpush1.msra.mxu0 0.0
    %1369 = vmatprep.subr.mxu0 0.0
    %1370 = vmatpush1.msra.mxu0 0.0
    %1371 = vmatprep.subr.mxu0 0.0
    %1372 = vmatpush1.msra.mxu0 0.0
    %1373 = vmatprep.subr.mxu0 0.0
    %1374 = vmatpush1.msra.mxu0 0.0
    %1375 = vmatprep.subr.mxu0 0.0
    %1376 = vmatpush1.msra.mxu0 0.0
    %1377 = vmatprep.subr.mxu0 0.0
    %1378 = vmatpush1.msra.mxu0 0.0
    %1379 = vmatprep.subr.mxu0 0.0
    %1380 = vmatpush1.msra.mxu0 0.0
    %1381 = vmatprep.subr.mxu0 0.0
    %1382 = vmatpush1.msra.mxu0 0.0
    %1383 = vmatprep.subr.mxu0 0.0
    %1384 = vmatpush1.msra.mxu0 0.0
    %1385 = vmatprep.mubr.f32.mxu0 0.0
    %1386 = vmatmul.mubr.f32.gmra.mrb[0].mxu0 %v284
    %v1387 = vpop.f32.mrb[0].mxu0
    %v1388 = vadd.f32 0.0, %v1387
    %v1389 = vpop.f32.mrb[0].mxu0
    %v1390 = vadd.f32 0.0, %v1389
    %1391 = vdwg.mxu0
    %v1392 = vadd.f32 %v1319, %v1388
    %v1393 = vadd.f32 %v1320, %v1390
    %v1394 = vxor.u32 %v1392, 2147483648
    %v1395 = vmul.f32 %v1394, 1.442695
    %v1396 = vpow.pop %v1395
    %v1397 = vadd.f32 %v1396, 1.0
    %v1398 = vrcp.pop %v1397
    %v1399 = vmul.f32 1.0, %v1398
    %v1400 = vtanh.pop %v1393
    %v1401 = vxor.u32 %v1393, 2147483648
    %v1402 = vmul.f32 %v1401, 1.442695
    %v1403 = vpow.pop %v1402
    %v1404 = vadd.f32 %v1403, 1.0
    %v1405 = vrcp.pop %v1404
    %v1406 = vmul.f32 1.0, %v1405
    %v1407 = vmul.f32 %v1399, 0.0
    %v1408 = vmul.f32 %v1399, %v1400
    %1410 = vrot.lane.b32.xlu0 %v1408, 64
    %v1411 = vpop.permute.xlu0 %1410
    %v1413 = vadd.f32 %v1407, %v1411
    %v1414 = vtanh.pop %v1413
    %v1415 = vmul.f32 %v1406, %v1414
    %1417 = vrot.lane.b32.xlu0 %v1415, 64
    %v1418 = vpop.permute.xlu0 %1417
    %1420 = vst.msk [vmem:[#allocation3] sm:$0xff] %vm282, %v1418
    %v1421 = vld [vmem:[#allocation4 + $0x10] sm:$0xff]
    %v1422 = vld [vmem:[#allocation4 + $0x18] sm:$0xff]
    %v1423 = vsel %vm282, %v1418, 0
    %1425 = vmatprep.subr.mxu0 %v1304
    %1426 = vmatpush1.msra.mxu0 %v1303
    %1427 = vmatprep.subr.mxu0 %v1306
    %1428 = vmatpush1.msra.mxu0 %v1305
    %1429 = vmatprep.subr.mxu0 %v1308
    %1430 = vmatpush1.msra.mxu0 %v1307
    %1431 = vmatprep.subr.mxu0 %v1310
    %1432 = vmatpush1.msra.mxu0 %v1309
    %1433 = vmatprep.subr.mxu0 %v1312
    %1434 = vmatpush1.msra.mxu0 %v1311
    %1435 = vmatprep.subr.mxu0 %v1314
    %1436 = vmatpush1.msra.mxu0 %v1313
    %1437 = vmatprep.subr.mxu0 %v1316
    %1438 = vmatpush1.msra.mxu0 %v1315
    %1439 = vmatprep.subr.mxu0 %v1318
    %1440 = vmatpush1.msra.mxu0 %v1317
    %1441 = vmatprep.subr.mxu0 0.0
    %1442 = vmatpush1.msra.mxu0 0.0
    %1443 = vmatprep.subr.mxu0 0.0
    %1444 = vmatpush1.msra.mxu0 0.0
    %1445 = vmatprep.subr.mxu0 0.0
    %1446 = vmatpush1.msra.mxu0 0.0
    %1447 = vmatprep.subr.mxu0 0.0
    %1448 = vmatpush1.msra.mxu0 0.0
    %1449 = vmatprep.subr.mxu0 0.0
    %1450 = vmatpush1.msra.mxu0 0.0
    %1451 = vmatprep.subr.mxu0 0.0
    %1452 = vmatpush1.msra.mxu0 0.0
    %1453 = vmatprep.subr.mxu0 0.0
    %1454 = vmatpush1.msra.mxu0 0.0
    %1455 = vmatprep.subr.mxu0 0.0
    %1456 = vmatpush1.msra.mxu0 0.0
    %1457 = vmatprep.subr.mxu0 0.0
    %1458 = vmatpush1.msra.mxu0 0.0
    %1459 = vmatprep.subr.mxu0 0.0
    %1460 = vmatpush1.msra.mxu0 0.0
    %1461 = vmatprep.subr.mxu0 0.0
    %1462 = vmatpush1.msra.mxu0 0.0
    %1463 = vmatprep.subr.mxu0 0.0
    %1464 = vmatpush1.msra.mxu0 0.0
    %1465 = vmatprep.subr.mxu0 0.0
    %1466 = vmatpush1.msra.mxu0 0.0
    %1467 = vmatprep.subr.mxu0 0.0
    %1468 = vmatpush1.msra.mxu0 0.0
    %1469 = vmatprep.subr.mxu0 0.0
    %1470 = vmatpush1.msra.mxu0 0.0
    %1471 = vmatprep.subr.mxu0 0.0
    %1472 = vmatpush1.msra.mxu0 0.0
    %1473 = vmatprep.subr.mxu0 0.0
    %1474 = vmatpush1.msra.mxu0 0.0
    %1475 = vmatprep.subr.mxu0 0.0
    %1476 = vmatpush1.msra.mxu0 0.0
    %1477 = vmatprep.subr.mxu0 0.0
    %1478 = vmatpush1.msra.mxu0 0.0
    %1479 = vmatprep.subr.mxu0 0.0
    %1480 = vmatpush1.msra.mxu0 0.0
    %1481 = vmatprep.subr.mxu0 0.0
    %1482 = vmatpush1.msra.mxu0 0.0
    %1483 = vmatprep.subr.mxu0 0.0
    %1484 = vmatpush1.msra.mxu0 0.0
    %1485 = vmatprep.subr.mxu0 0.0
    %1486 = vmatpush1.msra.mxu0 0.0
    %1487 = vmatprep.subr.mxu0 0.0
    %1488 = vmatpush1.msra.mxu0 0.0
    %1489 = vmatprep.mubr.f32.mxu0 0.0
    %1490 = vmatmul.mubr.f32.gmra.mrb[0].mxu0 %v1423
    %v1491 = vpop.f32.mrb[0].mxu0
    %v1492 = vadd.f32 0.0, %v1491
    %v1493 = vpop.f32.mrb[0].mxu0
    %v1494 = vadd.f32 0.0, %v1493
    %1495 = vdwg.mxu0
    %v1496 = vadd.f32 %v1421, %v1492
    %v1497 = vadd.f32 %v1422, %v1494
    %v1498 = vxor.u32 %v1496, 2147483648
    %v1499 = vmul.f32 %v1498, 1.442695
    %v1500 = vpow.pop %v1499
    %v1501 = vadd.f32 %v1500, 1.0
    %v1502 = vrcp.pop %v1501
    %v1503 = vmul.f32 1.0, %v1502
    %v1504 = vtanh.pop %v1497
    %v1505 = vxor.u32 %v1497, 2147483648
    %v1506 = vmul.f32 %v1505, 1.442695
    %v1507 = vpow.pop %v1506
    %v1508 = vadd.f32 %v1507, 1.0
    %v1509 = vrcp.pop %v1508
    %v1510 = vmul.f32 1.0, %v1509
    %v1511 = vmul.f32 %v1503, %v1413
    %v1512 = vmul.f32 %v1503, %v1504
    %1514 = vrot.lane.b32.xlu0 %v1512, 64
    %v1515 = vpop.permute.xlu0 %1514
    %v1517 = vadd.f32 %v1511, %v1515
    %v1518 = vtanh.pop %v1517
    %v1519 = vmul.f32 %v1510, %v1518
    %1521 = vrot.lane.b32.xlu0 %v1519, 64
    %v1522 = vpop.permute.xlu0 %1521
    %1524 = vst.msk [vmem:[#allocation3 + $0x8] sm:$0xff] %vm282, %v1522
    %v1525 = vld [vmem:[#allocation4 + $0x20] sm:$0xff]
    %v1526 = vld [vmem:[#allocation4 + $0x28] sm:$0xff]
    %v1527 = vsel %vm282, %v1522, 0
    %1529 = vmatprep.subr.mxu0 %v1304
    %1530 = vmatpush1.msra.mxu0 %v1303
    %1531 = vmatprep.subr.mxu0 %v1306
    %1532 = vmatpush1.msra.mxu0 %v1305
    %1533 = vmatprep.subr.mxu0 %v1308
    %1534 = vmatpush1.msra.mxu0 %v1307
    %1535 = vmatprep.subr.mxu0 %v1310
    %1536 = vmatpush1.msra.mxu0 %v1309
    %1537 = vmatprep.subr.mxu0 %v1312
    %1538 = vmatpush1.msra.mxu0 %v1311
    %1539 = vmatprep.subr.mxu0 %v1314
    %1540 = vmatpush1.msra.mxu0 %v1313
    %1541 = vmatprep.subr.mxu0 %v1316
    %1542 = vmatpush1.msra.mxu0 %v1315
    %1543 = vmatprep.subr.mxu0 %v1318
    %1544 = vmatpush1.msra.mxu0 %v1317
    %1545 = vmatprep.subr.mxu0 0.0
    %1546 = vmatpush1.msra.mxu0 0.0
    %1547 = vmatprep.subr.mxu0 0.0
    %1548 = vmatpush1.msra.mxu0 0.0
    %1549 = vmatprep.subr.mxu0 0.0
    %1550 = vmatpush1.msra.mxu0 0.0
    %1551 = vmatprep.subr.mxu0 0.0
    %1552 = vmatpush1.msra.mxu0 0.0
    %1553 = vmatprep.subr.mxu0 0.0
    %1554 = vmatpush1.msra.mxu0 0.0
    %1555 = vmatprep.subr.mxu0 0.0
    %1556 = vmatpush1.msra.mxu0 0.0
    %1557 = vmatprep.subr.mxu0 0.0
    %1558 = vmatpush1.msra.mxu0 0.0
    %1559 = vmatprep.subr.mxu0 0.0
    %1560 = vmatpush1.msra.mxu0 0.0
    %1561 = vmatprep.subr.mxu0 0.0
    %1562 = vmatpush1.msra.mxu0 0.0
    %1563 = vmatprep.subr.mxu0 0.0
    %1564 = vmatpush1.msra.mxu0 0.0
    %1565 = vmatprep.subr.mxu0 0.0
    %1566 = vmatpush1.msra.mxu0 0.0
    %1567 = vmatprep.subr.mxu0 0.0
    %1568 = vmatpush1.msra.mxu0 0.0
    %1569 = vmatprep.subr.mxu0 0.0
    %1570 = vmatpush1.msra.mxu0 0.0
    %1571 = vmatprep.subr.mxu0 0.0
    %1572 = vmatpush1.msra.mxu0 0.0
    %1573 = vmatprep.subr.mxu0 0.0
    %1574 = vmatpush1.msra.mxu0 0.0
    %1575 = vmatprep.subr.mxu0 0.0
    %1576 = vmatpush1.msra.mxu0 0.0
    %1577 = vmatprep.subr.mxu0 0.0
    %1578 = vmatpush1.msra.mxu0 0.0
    %1579 = vmatprep.subr.mxu0 0.0
    %1580 = vmatpush1.msra.mxu0 0.0
    %1581 = vmatprep.subr.mxu0 0.0
    %1582 = vmatpush1.msra.mxu0 0.0
    %1583 = vmatprep.subr.mxu0 0.0
    %1584 = vmatpush1.msra.mxu0 0.0
    %1585 = vmatprep.subr.mxu0 0.0
    %1586 = vmatpush1.msra.mxu0 0.0
    %1587 = vmatprep.subr.mxu0 0.0
    %1588 = vmatpush1.msra.mxu0 0.0
    %1589 = vmatprep.subr.mxu0 0.0
    %1590 = vmatpush1.msra.mxu0 0.0
    %1591 = vmatprep.subr.mxu0 0.0
    %1592 = vmatpush1.msra.mxu0 0.0
    %1593 = vmatprep.mubr.f32.mxu0 0.0
    %1594 = vmatmul.mubr.f32.gmra.mrb[0].mxu0 %v1527
    %v1595 = vpop.f32.mrb[0].mxu0
    %v1596 = vadd.f32 0.0, %v1595
    %v1597 = vpop.f32.mrb[0].mxu0
    %v1598 = vadd.f32 0.0, %v1597
    %1599 = vdwg.mxu0
    %v1600 = vadd.f32 %v1525, %v1596
    %v1601 = vadd.f32 %v1526, %v1598
    %v1602 = vxor.u32 %v1600, 2147483648
    %v1603 = vmul.f32 %v1602, 1.442695
    %v1604 = vpow.pop %v1603
    %v1605 = vadd.f32 %v1604, 1.0
    %v1606 = vrcp.pop %v1605
    %v1607 = vmul.f32 1.0, %v1606
    %v1608 = vtanh.pop %v1601
    %v1609 = vxor.u32 %v1601, 2147483648
    %v1610 = vmul.f32 %v1609, 1.442695
    %v1611 = vpow.pop %v1610
    %v1612 = vadd.f32 %v1611, 1.0
    %v1613 = vrcp.pop %v1612
    %v1614 = vmul.f32 1.0, %v1613
    %v1615 = vmul.f32 %v1607, %v1517
    %v1616 = vmul.f32 %v1607, %v1608
    %1618 = vrot.lane.b32.xlu0 %v1616, 64
    %v1619 = vpop.permute.xlu0 %1618
    %v1621 = vadd.f32 %v1615, %v1619
    %v1622 = vtanh.pop %v1621
    %v1623 = vmul.f32 %v1614, %v1622
    %1625 = vrot.lane.b32.xlu0 %v1623, 64
    %v1626 = vpop.permute.xlu0 %1625
    %1628 = vst.msk [vmem:[#allocation3 + $0x10] sm:$0xff] %vm282, %v1626
    %v1629 = vld [vmem:[#allocation4 + $0x30] sm:$0xff]
    %v1630 = vld [vmem:[#allocation4 + $0x38] sm:$0xff]
    %v1631 = vsel %vm282, %v1626, 0
    %1633 = vmatprep.subr.mxu0 %v1304
    %1634 = vmatpush1.msra.mxu0 %v1303
    %1635 = vmatprep.subr.mxu0 %v1306
    %1636 = vmatpush1.msra.mxu0 %v1305
    %1637 = vmatprep.subr.mxu0 %v1308
    %1638 = vmatpush1.msra.mxu0 %v1307
    %1639 = vmatprep.subr.mxu0 %v1310
    %1640 = vmatpush1.msra.mxu0 %v1309
    %1641 = vmatprep.subr.mxu0 %v1312
    %1642 = vmatpush1.msra.mxu0 %v1311
    %1643 = vmatprep.subr.mxu0 %v1314
    %1644 = vmatpush1.msra.mxu0 %v1313
    %1645 = vmatprep.subr.mxu0 %v1316
    %1646 = vmatpush1.msra.mxu0 %v1315
    %1647 = vmatprep.subr.mxu0 %v1318
    %1648 = vmatpush1.msra.mxu0 %v1317
    %1649 = vmatprep.subr.mxu0 0.0
    %1650 = vmatpush1.msra.mxu0 0.0
    %1651 = vmatprep.subr.mxu0 0.0
    %1652 = vmatpush1.msra.mxu0 0.0
    %1653 = vmatprep.subr.mxu0 0.0
    %1654 = vmatpush1.msra.mxu0 0.0
    %1655 = vmatprep.subr.mxu0 0.0
    %1656 = vmatpush1.msra.mxu0 0.0
    %1657 = vmatprep.subr.mxu0 0.0
    %1658 = vmatpush1.msra.mxu0 0.0
    %1659 = vmatprep.subr.mxu0 0.0
    %1660 = vmatpush1.msra.mxu0 0.0
    %1661 = vmatprep.subr.mxu0 0.0
    %1662 = vmatpush1.msra.mxu0 0.0
    %1663 = vmatprep.subr.mxu0 0.0
    %1664 = vmatpush1.msra.mxu0 0.0
    %1665 = vmatprep.subr.mxu0 0.0
    %1666 = vmatpush1.msra.mxu0 0.0
    %1667 = vmatprep.subr.mxu0 0.0
    %1668 = vmatpush1.msra.mxu0 0.0
    %1669 = vmatprep.subr.mxu0 0.0
    %1670 = vmatpush1.msra.mxu0 0.0
    %1671 = vmatprep.subr.mxu0 0.0
    %1672 = vmatpush1.msra.mxu0 0.0
    %1673 = vmatprep.subr.mxu0 0.0
    %1674 = vmatpush1.msra.mxu0 0.0
    %1675 = vmatprep.subr.mxu0 0.0
    %1676 = vmatpush1.msra.mxu0 0.0
    %1677 = vmatprep.subr.mxu0 0.0
    %1678 = vmatpush1.msra.mxu0 0.0
    %1679 = vmatprep.subr.mxu0 0.0
    %1680 = vmatpush1.msra.mxu0 0.0
    %1681 = vmatprep.subr.mxu0 0.0
    %1682 = vmatpush1.msra.mxu0 0.0
    %1683 = vmatprep.subr.mxu0 0.0
    %1684 = vmatpush1.msra.mxu0 0.0
    %1685 = vmatprep.subr.mxu0 0.0
    %1686 = vmatpush1.msra.mxu0 0.0
    %1687 = vmatprep.subr.mxu0 0.0
    %1688 = vmatpush1.msra.mxu0 0.0
    %1689 = vmatprep.subr.mxu0 0.0
    %1690 = vmatpush1.msra.mxu0 0.0
    %1691 = vmatprep.subr.mxu0 0.0
    %1692 = vmatpush1.msra.mxu0 0.0
    %1693 = vmatprep.subr.mxu0 0.0
    %1694 = vmatpush1.msra.mxu0 0.0
    %1695 = vmatprep.subr.mxu0 0.0
    %1696 = vmatpush1.msra.mxu0 0.0
    %1697 = vmatprep.mubr.f32.mxu0 0.0
    %1698 = vmatmul.mubr.f32.gmra.mrb[0].mxu0 %v1631
    %v1699 = vpop.f32.mrb[0].mxu0
    %v1700 = vadd.f32 0.0, %v1699
    %v1701 = vpop.f32.mrb[0].mxu0
    %v1702 = vadd.f32 0.0, %v1701
    %1703 = vdwg.mxu0
    %v1704 = vadd.f32 %v1629, %v1700
    %v1705 = vadd.f32 %v1630, %v1702
    %v1706 = vxor.u32 %v1704, 2147483648
    %v1707 = vmul.f32 %v1706, 1.442695
    %v1708 = vpow.pop %v1707
    %v1709 = vadd.f32 %v1708, 1.0
    %v1710 = vrcp.pop %v1709
    %v1711 = vmul.f32 1.0, %v1710
    %v1712 = vtanh.pop %v1705
    %v1713 = vxor.u32 %v1705, 2147483648
    %v1714 = vmul.f32 %v1713, 1.442695
    %v1715 = vpow.pop %v1714
    %v1716 = vadd.f32 %v1715, 1.0
    %v1717 = vrcp.pop %v1716
    %v1718 = vmul.f32 1.0, %v1717
    %v1719 = vmul.f32 %v1711, %v1621
    %v1720 = vmul.f32 %v1711, %v1712
    %1722 = vrot.lane.b32.xlu0 %v1720, 64
    %v1723 = vpop.permute.xlu0 %1722
    %v1725 = vadd.f32 %v1719, %v1723
    %v1726 = vtanh.pop %v1725
    %v1727 = vmul.f32 %v1718, %v1726
    %1729 = vrot.lane.b32.xlu0 %v1727, 64
    %v1730 = vpop.permute.xlu0 %1729
    %1732 = vst.msk [vmem:[#allocation3 + $0x18] sm:$0xff] %vm282, %v1730
    %v1733 = vld [vmem:[#allocation4 + $0x40] sm:$0xff]
    %v1734 = vld [vmem:[#allocation4 + $0x48] sm:$0xff]
    %v1735 = vsel %vm282, %v1730, 0
    %1737 = vmatprep.subr.mxu0 %v1304
    %1738 = vmatpush1.msra.mxu0 %v1303
    %1739 = vmatprep.subr.mxu0 %v1306
    %1740 = vmatpush1.msra.mxu0 %v1305
    %1741 = vmatprep.subr.mxu0 %v1308
    %1742 = vmatpush1.msra.mxu0 %v1307
    %1743 = vmatprep.subr.mxu0 %v1310
    %1744 = vmatpush1.msra.mxu0 %v1309
    %1745 = vmatprep.subr.mxu0 %v1312
    %1746 = vmatpush1.msra.mxu0 %v1311
    %1747 = vmatprep.subr.mxu0 %v1314
    %1748 = vmatpush1.msra.mxu0 %v1313
    %1749 = vmatprep.subr.mxu0 %v1316
    %1750 = vmatpush1.msra.mxu0 %v1315
    %1751 = vmatprep.subr.mxu0 %v1318
    %1752 = vmatpush1.msra.mxu0 %v1317
    %1753 = vmatprep.subr.mxu0 0.0
    %1754 = vmatpush1.msra.mxu0 0.0
    %1755 = vmatprep.subr.mxu0 0.0
    %1756 = vmatpush1.msra.mxu0 0.0
    %1757 = vmatprep.subr.mxu0 0.0
    %1758 = vmatpush1.msra.mxu0 0.0
    %1759 = vmatprep.subr.mxu0 0.0
    %1760 = vmatpush1.msra.mxu0 0.0
    %1761 = vmatprep.subr.mxu0 0.0
    %1762 = vmatpush1.msra.mxu0 0.0
    %1763 = vmatprep.subr.mxu0 0.0
    %1764 = vmatpush1.msra.mxu0 0.0
    %1765 = vmatprep.subr.mxu0 0.0
    %1766 = vmatpush1.msra.mxu0 0.0
    %1767 = vmatprep.subr.mxu0 0.0
    %1768 = vmatpush1.msra.mxu0 0.0
    %1769 = vmatprep.subr.mxu0 0.0
    %1770 = vmatpush1.msra.mxu0 0.0
    %1771 = vmatprep.subr.mxu0 0.0
    %1772 = vmatpush1.msra.mxu0 0.0
    %1773 = vmatprep.subr.mxu0 0.0
    %1774 = vmatpush1.msra.mxu0 0.0
    %1775 = vmatprep.subr.mxu0 0.0
    %1776 = vmatpush1.msra.mxu0 0.0
    %1777 = vmatprep.subr.mxu0 0.0
    %1778 = vmatpush1.msra.mxu0 0.0
    %1779 = vmatprep.subr.mxu0 0.0
    %1780 = vmatpush1.msra.mxu0 0.0
    %1781 = vmatprep.subr.mxu0 0.0
    %1782 = vmatpush1.msra.mxu0 0.0
    %1783 = vmatprep.subr.mxu0 0.0
    %1784 = vmatpush1.msra.mxu0 0.0
    %1785 = vmatprep.subr.mxu0 0.0
    %1786 = vmatpush1.msra.mxu0 0.0
    %1787 = vmatprep.subr.mxu0 0.0
    %1788 = vmatpush1.msra.mxu0 0.0
    %1789 = vmatprep.subr.mxu0 0.0
    %1790 = vmatpush1.msra.mxu0 0.0
    %1791 = vmatprep.subr.mxu0 0.0
    %1792 = vmatpush1.msra.mxu0 0.0
    %1793 = vmatprep.subr.mxu0 0.0
    %1794 = vmatpush1.msra.mxu0 0.0
    %1795 = vmatprep.subr.mxu0 0.0
    %1796 = vmatpush1.msra.mxu0 0.0
    %1797 = vmatprep.subr.mxu0 0.0
    %1798 = vmatpush1.msra.mxu0 0.0
    %1799 = vmatprep.subr.mxu0 0.0
    %1800 = vmatpush1.msra.mxu0 0.0
    %1801 = vmatprep.mubr.f32.mxu0 0.0
    %1802 = vmatmul.mubr.f32.gmra.mrb[0].mxu0 %v1735
    %v1803 = vpop.f32.mrb[0].mxu0
    %v1804 = vadd.f32 0.0, %v1803
    %v1805 = vpop.f32.mrb[0].mxu0
    %v1806 = vadd.f32 0.0, %v1805
    %1807 = vdwg.mxu0
    %v1808 = vadd.f32 %v1733, %v1804
    %v1809 = vadd.f32 %v1734, %v1806
    %v1810 = vxor.u32 %v1808, 2147483648
    %v1811 = vmul.f32 %v1810, 1.442695
    %v1812 = vpow.pop %v1811
    %v1813 = vadd.f32 %v1812, 1.0
    %v1814 = vrcp.pop %v1813
    %v1815 = vmul.f32 1.0, %v1814
    %v1816 = vtanh.pop %v1809
    %v1817 = vxor.u32 %v1809, 2147483648
    %v1818 = vmul.f32 %v1817, 1.442695
    %v1819 = vpow.pop %v1818
    %v1820 = vadd.f32 %v1819, 1.0
    %v1821 = vrcp.pop %v1820
    %v1822 = vmul.f32 1.0, %v1821
    %v1823 = vmul.f32 %v1815, %v1725
    %v1824 = vmul.f32 %v1815, %v1816
    %1826 = vrot.lane.b32.xlu0 %v1824, 64
    %v1827 = vpop.permute.xlu0 %1826
    %v1829 = vadd.f32 %v1823, %v1827
    %v1830 = vtanh.pop %v1829
    %v1831 = vmul.f32 %v1822, %v1830
    %1833 = vrot.lane.b32.xlu0 %v1831, 64
    %v1834 = vpop.permute.xlu0 %1833
    %1836 = vst.msk [vmem:[#allocation3 + $0x20] sm:$0xff] %vm282, %v1834
    %v1837 = vld [vmem:[#allocation4 + $0x50] sm:$0xff]
    %v1838 = vld [vmem:[#allocation4 + $0x58] sm:$0xff]
    %v1839 = vsel %vm282, %v1834, 0
    %1841 = vmatprep.subr.mxu0 %v1304
    %1842 = vmatpush1.msra.mxu0 %v1303
    %1843 = vmatprep.subr.mxu0 %v1306
    %1844 = vmatpush1.msra.mxu0 %v1305
    %1845 = vmatprep.subr.mxu0 %v1308
    %1846 = vmatpush1.msra.mxu0 %v1307
    %1847 = vmatprep.subr.mxu0 %v1310
    %1848 = vmatpush1.msra.mxu0 %v1309
    %1849 = vmatprep.subr.mxu0 %v1312
    %1850 = vmatpush1.msra.mxu0 %v1311
    %1851 = vmatprep.subr.mxu0 %v1314
    %1852 = vmatpush1.msra.mxu0 %v1313
    %1853 = vmatprep.subr.mxu0 %v1316
    %1854 = vmatpush1.msra.mxu0 %v1315
    %1855 = vmatprep.subr.mxu0 %v1318
    %1856 = vmatpush1.msra.mxu0 %v1317
    %1857 = vmatprep.subr.mxu0 0.0
    %1858 = vmatpush1.msra.mxu0 0.0
    %1859 = vmatprep.subr.mxu0 0.0
    %1860 = vmatpush1.msra.mxu0 0.0
    %1861 = vmatprep.subr.mxu0 0.0
    %1862 = vmatpush1.msra.mxu0 0.0
    %1863 = vmatprep.subr.mxu0 0.0
    %1864 = vmatpush1.msra.mxu0 0.0
    %1865 = vmatprep.subr.mxu0 0.0
    %1866 = vmatpush1.msra.mxu0 0.0
    %1867 = vmatprep.subr.mxu0 0.0
    %1868 = vmatpush1.msra.mxu0 0.0
    %1869 = vmatprep.subr.mxu0 0.0
    %1870 = vmatpush1.msra.mxu0 0.0
    %1871 = vmatprep.subr.mxu0 0.0
    %1872 = vmatpush1.msra.mxu0 0.0
    %1873 = vmatprep.subr.mxu0 0.0
    %1874 = vmatpush1.msra.mxu0 0.0
    %1875 = vmatprep.subr.mxu0 0.0
    %1876 = vmatpush1.msra.mxu0 0.0
    %1877 = vmatprep.subr.mxu0 0.0
    %1878 = vmatpush1.msra.mxu0 0.0
    %1879 = vmatprep.subr.mxu0 0.0
    %1880 = vmatpush1.msra.mxu0 0.0
    %1881 = vmatprep.subr.mxu0 0.0
    %1882 = vmatpush1.msra.mxu0 0.0
    %1883 = vmatprep.subr.mxu0 0.0
    %1884 = vmatpush1.msra.mxu0 0.0
    %1885 = vmatprep.subr.mxu0 0.0
    %1886 = vmatpush1.msra.mxu0 0.0
    %1887 = vmatprep.subr.mxu0 0.0
    %1888 = vmatpush1.msra.mxu0 0.0
    %1889 = vmatprep.subr.mxu0 0.0
    %1890 = vmatpush1.msra.mxu0 0.0
    %1891 = vmatprep.subr.mxu0 0.0
    %1892 = vmatpush1.msra.mxu0 0.0
    %1893 = vmatprep.subr.mxu0 0.0
    %1894 = vmatpush1.msra.mxu0 0.0
    %1895 = vmatprep.subr.mxu0 0.0
    %1896 = vmatpush1.msra.mxu0 0.0
    %1897 = vmatprep.subr.mxu0 0.0
    %1898 = vmatpush1.msra.mxu0 0.0
    %1899 = vmatprep.subr.mxu0 0.0
    %1900 = vmatpush1.msra.mxu0 0.0
    %1901 = vmatprep.subr.mxu0 0.0
    %1902 = vmatpush1.msra.mxu0 0.0
    %1903 = vmatprep.subr.mxu0 0.0
    %1904 = vmatpush1.msra.mxu0 0.0
    %1905 = vmatprep.mubr.f32.mxu0 0.0
    %1906 = vmatmul.mubr.f32.gmra.mrb[0].mxu0 %v1839
    %v1907 = vpop.f32.mrb[0].mxu0
    %v1908 = vadd.f32 0.0, %v1907
    %v1909 = vpop.f32.mrb[0].mxu0
    %v1910 = vadd.f32 0.0, %v1909
    %1911 = vdwg.mxu0
    %v1912 = vadd.f32 %v1837, %v1908
    %v1913 = vadd.f32 %v1838, %v1910
    %v1914 = vxor.u32 %v1912, 2147483648
    %v1915 = vmul.f32 %v1914, 1.442695
    %v1916 = vpow.pop %v1915
    %v1917 = vadd.f32 %v1916, 1.0
    %v1918 = vrcp.pop %v1917
    %v1919 = vmul.f32 1.0, %v1918
    %v1920 = vtanh.pop %v1913
    %v1921 = vxor.u32 %v1913, 2147483648
    %v1922 = vmul.f32 %v1921, 1.442695
    %v1923 = vpow.pop %v1922
    %v1924 = vadd.f32 %v1923, 1.0
    %v1925 = vrcp.pop %v1924
    %v1926 = vmul.f32 1.0, %v1925
    %v1927 = vmul.f32 %v1919, %v1829
    %v1928 = vmul.f32 %v1919, %v1920
    %1930 = vrot.lane.b32.xlu0 %v1928, 64
    %v1931 = vpop.permute.xlu0 %1930
    %v1933 = vadd.f32 %v1927, %v1931
    %v1934 = vtanh.pop %v1933
    %v1935 = vmul.f32 %v1926, %v1934
    %1937 = vrot.lane.b32.xlu0 %v1935, 64
    %v1938 = vpop.permute.xlu0 %1937
    %1940 = vst.msk [vmem:[#allocation3 + $0x28] sm:$0xff] %vm282, %v1938
    %v1941 = vld [vmem:[#allocation4 + $0x60] sm:$0xff]
    %v1942 = vld [vmem:[#allocation4 + $0x68] sm:$0xff]
    %v1943 = vsel %vm282, %v1938, 0
    %1945 = vmatprep.subr.mxu0 %v1304
    %1946 = vmatpush1.msra.mxu0 %v1303
    %1947 = vmatprep.subr.mxu0 %v1306
    %1948 = vmatpush1.msra.mxu0 %v1305
    %1949 = vmatprep.subr.mxu0 %v1308
    %1950 = vmatpush1.msra.mxu0 %v1307
    %1951 = vmatprep.subr.mxu0 %v1310
    %1952 = vmatpush1.msra.mxu0 %v1309
    %1953 = vmatprep.subr.mxu0 %v1312
    %1954 = vmatpush1.msra.mxu0 %v1311
    %1955 = vmatprep.subr.mxu0 %v1314
    %1956 = vmatpush1.msra.mxu0 %v1313
    %1957 = vmatprep.subr.mxu0 %v1316
    %1958 = vmatpush1.msra.mxu0 %v1315
    %1959 = vmatprep.subr.mxu0 %v1318
    %1960 = vmatpush1.msra.mxu0 %v1317
    %1961 = vmatprep.subr.mxu0 0.0
    %1962 = vmatpush1.msra.mxu0 0.0
    %1963 = vmatprep.subr.mxu0 0.0
    %1964 = vmatpush1.msra.mxu0 0.0
    %1965 = vmatprep.subr.mxu0 0.0
    %1966 = vmatpush1.msra.mxu0 0.0
    %1967 = vmatprep.subr.mxu0 0.0
    %1968 = vmatpush1.msra.mxu0 0.0
    %1969 = vmatprep.subr.mxu0 0.0
    %1970 = vmatpush1.msra.mxu0 0.0
    %1971 = vmatprep.subr.mxu0 0.0
    %1972 = vmatpush1.msra.mxu0 0.0
    %1973 = vmatprep.subr.mxu0 0.0
    %1974 = vmatpush1.msra.mxu0 0.0
    %1975 = vmatprep.subr.mxu0 0.0
    %1976 = vmatpush1.msra.mxu0 0.0
    %1977 = vmatprep.subr.mxu0 0.0
    %1978 = vmatpush1.msra.mxu0 0.0
    %1979 = vmatprep.subr.mxu0 0.0
    %1980 = vmatpush1.msra.mxu0 0.0
    %1981 = vmatprep.subr.mxu0 0.0
    %1982 = vmatpush1.msra.mxu0 0.0
    %1983 = vmatprep.subr.mxu0 0.0
    %1984 = vmatpush1.msra.mxu0 0.0
    %1985 = vmatprep.subr.mxu0 0.0
    %1986 = vmatpush1.msra.mxu0 0.0
    %1987 = vmatprep.subr.mxu0 0.0
    %1988 = vmatpush1.msra.mxu0 0.0
    %1989 = vmatprep.subr.mxu0 0.0
    %1990 = vmatpush1.msra.mxu0 0.0
    %1991 = vmatprep.subr.mxu0 0.0
    %1992 = vmatpush1.msra.mxu0 0.0
    %1993 = vmatprep.subr.mxu0 0.0
    %1994 = vmatpush1.msra.mxu0 0.0
    %1995 = vmatprep.subr.mxu0 0.0
    %1996 = vmatpush1.msra.mxu0 0.0
    %1997 = vmatprep.subr.mxu0 0.0
    %1998 = vmatpush1.msra.mxu0 0.0
    %1999 = vmatprep.subr.mxu0 0.0
    %2000 = vmatpush1.msra.mxu0 0.0
    %2001 = vmatprep.subr.mxu0 0.0
    %2002 = vmatpush1.msra.mxu0 0.0
    %2003 = vmatprep.subr.mxu0 0.0
    %2004 = vmatpush1.msra.mxu0 0.0
    %2005 = vmatprep.subr.mxu0 0.0
    %2006 = vmatpush1.msra.mxu0 0.0
    %2007 = vmatprep.subr.mxu0 0.0
    %2008 = vmatpush1.msra.mxu0 0.0
    %2009 = vmatprep.mubr.f32.mxu0 0.0
    %2010 = vmatmul.mubr.f32.gmra.mrb[0].mxu0 %v1943
    %v2011 = vpop.f32.mrb[0].mxu0
    %v2012 = vadd.f32 0.0, %v2011
    %v2013 = vpop.f32.mrb[0].mxu0
    %v2014 = vadd.f32 0.0, %v2013
    %2015 = vdwg.mxu0
    %v2016 = vadd.f32 %v1941, %v2012
    %v2017 = vadd.f32 %v1942, %v2014
    %v2018 = vxor.u32 %v2016, 2147483648
    %v2019 = vmul.f32 %v2018, 1.442695
    %v2020 = vpow.pop %v2019
    %v2021 = vadd.f32 %v2020, 1.0
    %v2022 = vrcp.pop %v2021
    %v2023 = vmul.f32 1.0, %v2022
    %v2024 = vtanh.pop %v2017
    %v2025 = vxor.u32 %v2017, 2147483648
    %v2026 = vmul.f32 %v2025, 1.442695
    %v2027 = vpow.pop %v2026
    %v2028 = vadd.f32 %v2027, 1.0
    %v2029 = vrcp.pop %v2028
    %v2030 = vmul.f32 1.0, %v2029
    %v2031 = vmul.f32 %v2023, %v1933
    %v2032 = vmul.f32 %v2023, %v2024
    %2034 = vrot.lane.b32.xlu0 %v2032, 64
    %v2035 = vpop.permute.xlu0 %2034
    %v2037 = vadd.f32 %v2031, %v2035
    %v2038 = vtanh.pop %v2037
    %v2039 = vmul.f32 %v2030, %v2038
    %2041 = vrot.lane.b32.xlu0 %v2039, 64
    %v2042 = vpop.permute.xlu0 %2041
    %2044 = vst.msk [vmem:[#allocation3 + $0x30] sm:$0xff] %vm282, %v2042
    %v2045 = vld [vmem:[#allocation4 + $0x70] sm:$0xff]
    %v2046 = vld [vmem:[#allocation4 + $0x78] sm:$0xff]
    %v2047 = vsel %vm282, %v2042, 0
    %2049 = vmatprep.subr.mxu0 %v1304
    %2050 = vmatpush1.msra.mxu0 %v1303
    %2051 = vmatprep.subr.mxu0 %v1306
    %2052 = vmatpush1.msra.mxu0 %v1305
    %2053 = vmatprep.subr.mxu0 %v1308
    %2054 = vmatpush1.msra.mxu0 %v1307
    %2055 = vmatprep.subr.mxu0 %v1310
    %2056 = vmatpush1.msra.mxu0 %v1309
    %2057 = vmatprep.subr.mxu0 %v1312
    %2058 = vmatpush1.msra.mxu0 %v1311
    %2059 = vmatprep.subr.mxu0 %v1314
    %2060 = vmatpush1.msra.mxu0 %v1313
    %2061 = vmatprep.subr.mxu0 %v1316
    %2062 = vmatpush1.msra.mxu0 %v1315
    %2063 = vmatprep.subr.mxu0 %v1318
    %2064 = vmatpush1.msra.mxu0 %v1317
    %2065 = vmatprep.subr.mxu0 0.0
    %2066 = vmatpush1.msra.mxu0 0.0
    %2067 = vmatprep.subr.mxu0 0.0
    %2068 = vmatpush1.msra.mxu0 0.0
    %2069 = vmatprep.subr.mxu0 0.0
    %2070 = vmatpush1.msra.mxu0 0.0
    %2071 = vmatprep.subr.mxu0 0.0
    %2072 = vmatpush1.msra.mxu0 0.0
    %2073 = vmatprep.subr.mxu0 0.0
    %2074 = vmatpush1.msra.mxu0 0.0
    %2075 = vmatprep.subr.mxu0 0.0
    %2076 = vmatpush1.msra.mxu0 0.0
    %2077 = vmatprep.subr.mxu0 0.0
    %2078 = vmatpush1.msra.mxu0 0.0
    %2079 = vmatprep.subr.mxu0 0.0
    %2080 = vmatpush1.msra.mxu0 0.0
    %2081 = vmatprep.subr.mxu0 0.0
    %2082 = vmatpush1.msra.mxu0 0.0
    %2083 = vmatprep.subr.mxu0 0.0
    %2084 = vmatpush1.msra.mxu0 0.0
    %2085 = vmatprep.subr.mxu0 0.0
    %2086 = vmatpush1.msra.mxu0 0.0
    %2087 = vmatprep.subr.mxu0 0.0
    %2088 = vmatpush1.msra.mxu0 0.0
    %2089 = vmatprep.subr.mxu0 0.0
    %2090 = vmatpush1.msra.mxu0 0.0
    %2091 = vmatprep.subr.mxu0 0.0
    %2092 = vmatpush1.msra.mxu0 0.0
    %2093 = vmatprep.subr.mxu0 0.0
    %2094 = vmatpush1.msra.mxu0 0.0
    %2095 = vmatprep.subr.mxu0 0.0
    %2096 = vmatpush1.msra.mxu0 0.0
    %2097 = vmatprep.subr.mxu0 0.0
    %2098 = vmatpush1.msra.mxu0 0.0
    %2099 = vmatprep.subr.mxu0 0.0
    %2100 = vmatpush1.msra.mxu0 0.0
    %2101 = vmatprep.subr.mxu0 0.0
    %2102 = vmatpush1.msra.mxu0 0.0
    %2103 = vmatprep.subr.mxu0 0.0
    %2104 = vmatpush1.msra.mxu0 0.0
    %2105 = vmatprep.subr.mxu0 0.0
    %2106 = vmatpush1.msra.mxu0 0.0
    %2107 = vmatprep.subr.mxu0 0.0
    %2108 = vmatpush1.msra.mxu0 0.0
    %2109 = vmatprep.subr.mxu0 0.0
    %2110 = vmatpush1.msra.mxu0 0.0
    %2111 = vmatprep.subr.mxu0 0.0
    %2112 = vmatpush1.msra.mxu0 0.0
    %2113 = vmatprep.mubr.f32.mxu0 0.0
    %2114 = vmatmul.mubr.f32.gmra.mrb[0].mxu0 %v2047
    %v2115 = vpop.f32.mrb[0].mxu0
    %v2116 = vadd.f32 0.0, %v2115
    %v2117 = vpop.f32.mrb[0].mxu0
    %v2118 = vadd.f32 0.0, %v2117
    %2119 = vdwg.mxu0
    %v2120 = vadd.f32 %v2045, %v2116
    %v2121 = vadd.f32 %v2046, %v2118
    %v2122 = vxor.u32 %v2120, 2147483648
    %v2123 = vmul.f32 %v2122, 1.442695
    %v2124 = vpow.pop %v2123
    %v2125 = vadd.f32 %v2124, 1.0
    %v2126 = vrcp.pop %v2125
    %v2127 = vmul.f32 1.0, %v2126
    %v2128 = vtanh.pop %v2121
    %v2129 = vxor.u32 %v2121, 2147483648
    %v2130 = vmul.f32 %v2129, 1.442695
    %v2131 = vpow.pop %v2130
    %v2132 = vadd.f32 %v2131, 1.0
    %v2133 = vrcp.pop %v2132
    %v2134 = vmul.f32 1.0, %v2133
    %v2135 = vmul.f32 %v2127, %v2037
    %v2136 = vmul.f32 %v2127, %v2128
    %2138 = vrot.lane.b32.xlu0 %v2136, 64
    %v2139 = vpop.permute.xlu0 %2138
    %v2141 = vadd.f32 %v2135, %v2139
    %v2142 = vtanh.pop %v2141
    %v2143 = vmul.f32 %v2134, %v2142
    %2145 = vrot.lane.b32.xlu0 %v2143, 64
    %v2146 = vpop.permute.xlu0 %2145
    %2148 = vst.msk [vmem:[#allocation3 + $0x38] sm:$0xff] %vm282, %v2146
    %v2149 = vld [vmem:[#allocation3] sm:$0xff]
    %v2150 = vld [vmem:[#allocation3 + $0x8] sm:$0xff]
    %v2151 = vld [vmem:[#allocation3 + $0x10] sm:$0xff]
    %v2152 = vld [vmem:[#allocation3 + $0x18] sm:$0xff]
    %v2153 = vld [vmem:[#allocation3 + $0x20] sm:$0xff]
    %v2154 = vld [vmem:[#allocation3 + $0x28] sm:$0xff]
    %v2155 = vld [vmem:[#allocation3 + $0x30] sm:$0xff]
    %v2156 = vld [vmem:[#allocation3 + $0x38] sm:$0xff]
    %v2157 = vld [vmem:[#allocation7] sm:$0xff]
    %v2158 = vld [vmem:[#allocation7 + $0x8] sm:$0xff]
    %v2159 = vld [vmem:[#allocation7 + $0x10] sm:$0xff]
    %v2160 = vld [vmem:[#allocation7 + $0x18] sm:$0xff]
    %v2161 = vld [vmem:[#allocation7 + $0x20] sm:$0xff]
    %v2162 = vld [vmem:[#allocation7 + $0x28] sm:$0xff]
    %v2163 = vld [vmem:[#allocation7 + $0x30] sm:$0xff]
    %v2164 = vld [vmem:[#allocation7 + $0x38] sm:$0xff]
    %v2165 = vld [vmem:[#allocation7 + $0x40] sm:$0xff]
    %v2166 = vld [vmem:[#allocation7 + $0x48] sm:$0xff]
    %v2167 = vld [vmem:[#allocation7 + $0x50] sm:$0xff]
    %v2168 = vld [vmem:[#allocation7 + $0x58] sm:$0xff]
    %v2169 = vld [vmem:[#allocation7 + $0x60] sm:$0xff]
    %v2170 = vld [vmem:[#allocation7 + $0x68] sm:$0xff]
    %v2171 = vld [vmem:[#allocation7 + $0x70] sm:$0xff]
    %v2172 = vld [vmem:[#allocation7 + $0x78] sm:$0xff]
    %v2173 = vld [vmem:[%s9] sm:$0x3]
    %v2175 = vlaneseq
    %v2176 = vshrl.u32 %v2175, 7
    %v2177 = vsub.s32 0, %v2176
    %v2178 = vrot.slane %v2173, %v2177
    %v2179 = vlaneseq
    %v2180 = vshrl.u32 %v2179, 7
    %v2181 = vsub.s32 1, %v2180
    %v2182 = vrot.slane %v2173, %v2181
    %v2186 = vsel %vm282, %v2149, 0
    %v2189 = vsel %vm282, %v2150, 0
    %v2192 = vsel %vm282, %v2151, 0
    %v2195 = vsel %vm282, %v2152, 0
    %v2198 = vsel %vm282, %v2153, 0
    %v2201 = vsel %vm282, %v2154, 0
    %v2204 = vsel %vm282, %v2155, 0
    %v2207 = vsel %vm282, %v2156, 0
    %2209 = vmatprep.subr.mxu0 %v2158
    %2210 = vmatpush1.msra.mxu0 %v2157
    %2211 = vmatprep.subr.mxu0 %v2160
    %2212 = vmatpush1.msra.mxu0 %v2159
    %2213 = vmatprep.subr.mxu0 %v2162
    %2214 = vmatpush1.msra.mxu0 %v2161
    %2215 = vmatprep.subr.mxu0 %v2164
    %2216 = vmatpush1.msra.mxu0 %v2163
    %2217 = vmatprep.subr.mxu0 %v2166
    %2218 = vmatpush1.msra.mxu0 %v2165
    %2219 = vmatprep.subr.mxu0 %v2168
    %2220 = vmatpush1.msra.mxu0 %v2167
    %2221 = vmatprep.subr.mxu0 %v2170
    %2222 = vmatpush1.msra.mxu0 %v2169
    %2223 = vmatprep.subr.mxu0 %v2172
    %2224 = vmatpush1.msra.mxu0 %v2171
    %2225 = vmatprep.subr.mxu0 0.0
    %2226 = vmatpush1.msra.mxu0 0.0
    %2227 = vmatprep.subr.mxu0 0.0
    %2228 = vmatpush1.msra.mxu0 0.0
    %2229 = vmatprep.subr.mxu0 0.0
    %2230 = vmatpush1.msra.mxu0 0.0
    %2231 = vmatprep.subr.mxu0 0.0
    %2232 = vmatpush1.msra.mxu0 0.0
    %2233 = vmatprep.subr.mxu0 0.0
    %2234 = vmatpush1.msra.mxu0 0.0
    %2235 = vmatprep.subr.mxu0 0.0
    %2236 = vmatpush1.msra.mxu0 0.0
    %2237 = vmatprep.subr.mxu0 0.0
    %2238 = vmatpush1.msra.mxu0 0.0
    %2239 = vmatprep.subr.mxu0 0.0
    %2240 = vmatpush1.msra.mxu0 0.0
    %2241 = vmatprep.subr.mxu0 0.0
    %2242 = vmatpush1.msra.mxu0 0.0
    %2243 = vmatprep.subr.mxu0 0.0
    %2244 = vmatpush1.msra.mxu0 0.0
    %2245 = vmatprep.subr.mxu0 0.0
    %2246 = vmatpush1.msra.mxu0 0.0
    %2247 = vmatprep.subr.mxu0 0.0
    %2248 = vmatpush1.msra.mxu0 0.0
    %2249 = vmatprep.subr.mxu0 0.0
    %2250 = vmatpush1.msra.mxu0 0.0
    %2251 = vmatprep.subr.mxu0 0.0
    %2252 = vmatpush1.msra.mxu0 0.0
    %2253 = vmatprep.subr.mxu0 0.0
    %2254 = vmatpush1.msra.mxu0 0.0
    %2255 = vmatprep.subr.mxu0 0.0
    %2256 = vmatpush1.msra.mxu0 0.0
    %2257 = vmatprep.subr.mxu0 0.0
    %2258 = vmatpush1.msra.mxu0 0.0
    %2259 = vmatprep.subr.mxu0 0.0
    %2260 = vmatpush1.msra.mxu0 0.0
    %2261 = vmatprep.subr.mxu0 0.0
    %2262 = vmatpush1.msra.mxu0 0.0
    %2263 = vmatprep.subr.mxu0 0.0
    %2264 = vmatpush1.msra.mxu0 0.0
    %2265 = vmatprep.subr.mxu0 0.0
    %2266 = vmatpush1.msra.mxu0 0.0
    %2267 = vmatprep.subr.mxu0 0.0
    %2268 = vmatpush1.msra.mxu0 0.0
    %2269 = vmatprep.subr.mxu0 0.0
    %2270 = vmatpush1.msra.mxu0 0.0
    %2271 = vmatprep.subr.mxu0 0.0
    %2272 = vmatpush1.msra.mxu0 0.0
    %2273 = vmatprep.mubr.f32.mxu0 0.0
    %2274 = vmatmul.mubr.f32.gmra.mrb[0].mxu0 %v2186
    %v2275 = vpop.f32.mrb[0].mxu0
    %v2276 = vadd.f32 %v2178, %v2275
    %v2277 = vpop.f32.mrb[0].mxu0
    %v2278 = vadd.f32 %v2182, %v2277
    %2279 = vmatprep.mubr.f32.mxu0 0.0
    %2280 = vmatmul.mubr.f32.gmra.mrb[0].mxu0 %v2189
    %v2281 = vpop.f32.mrb[0].mxu0
    %v2282 = vadd.f32 %v2178, %v2281
    %v2283 = vpop.f32.mrb[0].mxu0
    %v2284 = vadd.f32 %v2182, %v2283
    %2285 = vmatprep.mubr.f32.mxu0 0.0
    %2286 = vmatmul.mubr.f32.gmra.mrb[0].mxu0 %v2192
    %v2287 = vpop.f32.mrb[0].mxu0
    %v2288 = vadd.f32 %v2178, %v2287
    %v2289 = vpop.f32.mrb[0].mxu0
    %v2290 = vadd.f32 %v2182, %v2289
    %2291 = vmatprep.mubr.f32.mxu0 0.0
    %2292 = vmatmul.mubr.f32.gmra.mrb[0].mxu0 %v2195
    %v2293 = vpop.f32.mrb[0].mxu0
    %v2294 = vadd.f32 %v2178, %v2293
    %v2295 = vpop.f32.mrb[0].mxu0
    %v2296 = vadd.f32 %v2182, %v2295
    %2297 = vmatprep.mubr.f32.mxu0 0.0
    %2298 = vmatmul.mubr.f32.gmra.mrb[0].mxu0 %v2198
    %v2299 = vpop.f32.mrb[0].mxu0
    %v2300 = vadd.f32 %v2178, %v2299
    %v2301 = vpop.f32.mrb[0].mxu0
    %v2302 = vadd.f32 %v2182, %v2301
    %2303 = vmatprep.mubr.f32.mxu0 0.0
    %2304 = vmatmul.mubr.f32.gmra.mrb[0].mxu0 %v2201
    %v2305 = vpop.f32.mrb[0].mxu0
    %v2306 = vadd.f32 %v2178, %v2305
    %v2307 = vpop.f32.mrb[0].mxu0
    %v2308 = vadd.f32 %v2182, %v2307
    %2309 = vmatprep.mubr.f32.mxu0 0.0
    %2310 = vmatmul.mubr.f32.gmra.mrb[0].mxu0 %v2204
    %v2311 = vpop.f32.mrb[0].mxu0
    %v2312 = vadd.f32 %v2178, %v2311
    %v2313 = vpop.f32.mrb[0].mxu0
    %v2314 = vadd.f32 %v2182, %v2313
    %2315 = vmatprep.mubr.f32.mxu0 0.0
    %2316 = vmatmul.mubr.f32.gmra.mrb[0].mxu0 %v2207
    %v2317 = vpop.f32.mrb[0].mxu0
    %v2318 = vadd.f32 %v2178, %v2317
    %v2319 = vpop.f32.mrb[0].mxu0
    %v2320 = vadd.f32 %v2182, %v2319
    %2321 = vdwg.mxu0
    %2322 = vst [vmem:[#allocation4] sm:$0xff] %v2276
    %2323 = vst [vmem:[#allocation4 + $0x8] sm:$0xff] %v2278
    %2324 = vst [vmem:[#allocation4 + $0x10] sm:$0xff] %v2282
    %2325 = vst [vmem:[#allocation4 + $0x18] sm:$0xff] %v2284
    %2326 = vst [vmem:[#allocation4 + $0x20] sm:$0xff] %v2288
    %2327 = vst [vmem:[#allocation4 + $0x28] sm:$0xff] %v2290
    %2328 = vst [vmem:[#allocation4 + $0x30] sm:$0xff] %v2294
    %2329 = vst [vmem:[#allocation4 + $0x38] sm:$0xff] %v2296
    %2330 = vst [vmem:[#allocation4 + $0x40] sm:$0xff] %v2300
    %2331 = vst [vmem:[#allocation4 + $0x48] sm:$0xff] %v2302
    %2332 = vst [vmem:[#allocation4 + $0x50] sm:$0xff] %v2306
    %2333 = vst [vmem:[#allocation4 + $0x58] sm:$0xff] %v2308
    %2334 = vst [vmem:[#allocation4 + $0x60] sm:$0xff] %v2312
    %2335 = vst [vmem:[#allocation4 + $0x68] sm:$0xff] %v2314
    %2336 = vst [vmem:[#allocation4 + $0x70] sm:$0xff] %v2318
    %2337 = vst [vmem:[#allocation4 + $0x78] sm:$0xff] %v2320
    %v2338 = vld [vmem:[#allocation9] sm:$0xff]
    %v2339 = vld [vmem:[#allocation9 + $0x8] sm:$0xff]
    %v2340 = vld [vmem:[#allocation9 + $0x10] sm:$0xff]
    %v2341 = vld [vmem:[#allocation9 + $0x18] sm:$0xff]
    %v2342 = vld [vmem:[#allocation9 + $0x20] sm:$0xff]
    %v2343 = vld [vmem:[#allocation9 + $0x28] sm:$0xff]
    %v2344 = vld [vmem:[#allocation9 + $0x30] sm:$0xff]
    %v2345 = vld [vmem:[#allocation9 + $0x38] sm:$0xff]
    %v2346 = vld [vmem:[#allocation9 + $0x40] sm:$0xff]
    %v2347 = vld [vmem:[#allocation9 + $0x48] sm:$0xff]
    %v2348 = vld [vmem:[#allocation9 + $0x50] sm:$0xff]
    %v2349 = vld [vmem:[#allocation9 + $0x58] sm:$0xff]
    %v2350 = vld [vmem:[#allocation9 + $0x60] sm:$0xff]
    %v2351 = vld [vmem:[#allocation9 + $0x68] sm:$0xff]
    %v2352 = vld [vmem:[#allocation9 + $0x70] sm:$0xff]
    %v2353 = vld [vmem:[#allocation9 + $0x78] sm:$0xff]
    %v2354 = vld [vmem:[#allocation4] sm:$0xff]
    %v2355 = vld [vmem:[#allocation4 + $0x8] sm:$0xff]
    %2356 = vmatprep.subr.mxu0 %v2339
    %2357 = vmatpush1.msra.mxu0 %v2338
    %2358 = vmatprep.subr.mxu0 %v2341
    %2359 = vmatpush1.msra.mxu0 %v2340
    %2360 = vmatprep.subr.mxu0 %v2343
    %2361 = vmatpush1.msra.mxu0 %v2342
    %2362 = vmatprep.subr.mxu0 %v2345
    %2363 = vmatpush1.msra.mxu0 %v2344
    %2364 = vmatprep.subr.mxu0 %v2347
    %2365 = vmatpush1.msra.mxu0 %v2346
    %2366 = vmatprep.subr.mxu0 %v2349
    %2367 = vmatpush1.msra.mxu0 %v2348
    %2368 = vmatprep.subr.mxu0 %v2351
    %2369 = vmatpush1.msra.mxu0 %v2350
    %2370 = vmatprep.subr.mxu0 %v2353
    %2371 = vmatpush1.msra.mxu0 %v2352
    %2372 = vmatprep.subr.mxu0 0.0
    %2373 = vmatpush1.msra.mxu0 0.0
    %2374 = vmatprep.subr.mxu0 0.0
    %2375 = vmatpush1.msra.mxu0 0.0
    %2376 = vmatprep.subr.mxu0 0.0
    %2377 = vmatpush1.msra.mxu0 0.0
    %2378 = vmatprep.subr.mxu0 0.0
    %2379 = vmatpush1.msra.mxu0 0.0
    %2380 = vmatprep.subr.mxu0 0.0
    %2381 = vmatpush1.msra.mxu0 0.0
    %2382 = vmatprep.subr.mxu0 0.0
    %2383 = vmatpush1.msra.mxu0 0.0
    %2384 = vmatprep.subr.mxu0 0.0
    %2385 = vmatpush1.msra.mxu0 0.0
    %2386 = vmatprep.subr.mxu0 0.0
    %2387 = vmatpush1.msra.mxu0 0.0
    %2388 = vmatprep.subr.mxu0 0.0
    %2389 = vmatpush1.msra.mxu0 0.0
    %2390 = vmatprep.subr.mxu0 0.0
    %2391 = vmatpush1.msra.mxu0 0.0
    %2392 = vmatprep.subr.mxu0 0.0
    %2393 = vmatpush1.msra.mxu0 0.0
    %2394 = vmatprep.subr.mxu0 0.0
    %2395 = vmatpush1.msra.mxu0 0.0
    %2396 = vmatprep.subr.mxu0 0.0
    %2397 = vmatpush1.msra.mxu0 0.0
    %2398 = vmatprep.subr.mxu0 0.0
    %2399 = vmatpush1.msra.mxu0 0.0
    %2400 = vmatprep.subr.mxu0 0.0
    %2401 = vmatpush1.msra.mxu0 0.0
    %2402 = vmatprep.subr.mxu0 0.0
    %2403 = vmatpush1.msra.mxu0 0.0
    %2404 = vmatprep.subr.mxu0 0.0
    %2405 = vmatpush1.msra.mxu0 0.0
    %2406 = vmatprep.subr.mxu0 0.0
    %2407 = vmatpush1.msra.mxu0 0.0
    %2408 = vmatprep.subr.mxu0 0.0
    %2409 = vmatpush1.msra.mxu0 0.0
    %2410 = vmatprep.subr.mxu0 0.0
    %2411 = vmatpush1.msra.mxu0 0.0
    %2412 = vmatprep.subr.mxu0 0.0
    %2413 = vmatpush1.msra.mxu0 0.0
    %2414 = vmatprep.subr.mxu0 0.0
    %2415 = vmatpush1.msra.mxu0 0.0
    %2416 = vmatprep.subr.mxu0 0.0
    %2417 = vmatpush1.msra.mxu0 0.0
    %2418 = vmatprep.subr.mxu0 0.0
    %2419 = vmatpush1.msra.mxu0 0.0
    %2420 = vmatprep.mubr.f32.mxu0 0.0
    %2421 = vmatmul.mubr.f32.gmra.mrb[0].mxu0 %v284
    %v2422 = vpop.f32.mrb[0].mxu0
    %v2423 = vadd.f32 0.0, %v2422
    %v2424 = vpop.f32.mrb[0].mxu0
    %v2425 = vadd.f32 0.0, %v2424
    %2426 = vdwg.mxu0
    %v2427 = vadd.f32 %v2354, %v2423
    %v2428 = vadd.f32 %v2355, %v2425
    %v2429 = vxor.u32 %v2427, 2147483648
    %v2430 = vmul.f32 %v2429, 1.442695
    %v2431 = vpow.pop %v2430
    %v2432 = vadd.f32 %v2431, 1.0
    %v2433 = vrcp.pop %v2432
    %v2434 = vmul.f32 1.0, %v2433
    %v2435 = vtanh.pop %v2428
    %v2436 = vxor.u32 %v2428, 2147483648
    %v2437 = vmul.f32 %v2436, 1.442695
    %v2438 = vpow.pop %v2437
    %v2439 = vadd.f32 %v2438, 1.0
    %v2440 = vrcp.pop %v2439
    %v2441 = vmul.f32 1.0, %v2440
    %v2442 = vmul.f32 %v2434, 0.0
    %v2443 = vmul.f32 %v2434, %v2435
    %2445 = vrot.lane.b32.xlu0 %v2443, 64
    %v2446 = vpop.permute.xlu0 %2445
    %v2448 = vadd.f32 %v2442, %v2446
    %v2449 = vtanh.pop %v2448
    %v2450 = vmul.f32 %v2441, %v2449
    %v2451 = vld [vmem:[#allocation4 + $0x10] sm:$0xff]
    %v2452 = vld [vmem:[#allocation4 + $0x18] sm:$0xff]
    %2454 = vrot.lane.b32.xlu0 %v2450, 64
    %v2455 = vpop.permute.xlu0 %2454
    %v2456 = vsel %vm282, %v2455, 0
    %2458 = vmatprep.subr.mxu0 %v2339
    %2459 = vmatpush1.msra.mxu0 %v2338
    %2460 = vmatprep.subr.mxu0 %v2341
    %2461 = vmatpush1.msra.mxu0 %v2340
    %2462 = vmatprep.subr.mxu0 %v2343
    %2463 = vmatpush1.msra.mxu0 %v2342
    %2464 = vmatprep.subr.mxu0 %v2345
    %2465 = vmatpush1.msra.mxu0 %v2344
    %2466 = vmatprep.subr.mxu0 %v2347
    %2467 = vmatpush1.msra.mxu0 %v2346
    %2468 = vmatprep.subr.mxu0 %v2349
    %2469 = vmatpush1.msra.mxu0 %v2348
    %2470 = vmatprep.subr.mxu0 %v2351
    %2471 = vmatpush1.msra.mxu0 %v2350
    %2472 = vmatprep.subr.mxu0 %v2353
    %2473 = vmatpush1.msra.mxu0 %v2352
    %2474 = vmatprep.subr.mxu0 0.0
    %2475 = vmatpush1.msra.mxu0 0.0
    %2476 = vmatprep.subr.mxu0 0.0
    %2477 = vmatpush1.msra.mxu0 0.0
    %2478 = vmatprep.subr.mxu0 0.0
    %2479 = vmatpush1.msra.mxu0 0.0
    %2480 = vmatprep.subr.mxu0 0.0
    %2481 = vmatpush1.msra.mxu0 0.0
    %2482 = vmatprep.subr.mxu0 0.0
    %2483 = vmatpush1.msra.mxu0 0.0
    %2484 = vmatprep.subr.mxu0 0.0
    %2485 = vmatpush1.msra.mxu0 0.0
    %2486 = vmatprep.subr.mxu0 0.0
    %2487 = vmatpush1.msra.mxu0 0.0
    %2488 = vmatprep.subr.mxu0 0.0
    %2489 = vmatpush1.msra.mxu0 0.0
    %2490 = vmatprep.subr.mxu0 0.0
    %2491 = vmatpush1.msra.mxu0 0.0
    %2492 = vmatprep.subr.mxu0 0.0
    %2493 = vmatpush1.msra.mxu0 0.0
    %2494 = vmatprep.subr.mxu0 0.0
    %2495 = vmatpush1.msra.mxu0 0.0
    %2496 = vmatprep.subr.mxu0 0.0
    %2497 = vmatpush1.msra.mxu0 0.0
    %2498 = vmatprep.subr.mxu0 0.0
    %2499 = vmatpush1.msra.mxu0 0.0
    %2500 = vmatprep.subr.mxu0 0.0
    %2501 = vmatpush1.msra.mxu0 0.0
    %2502 = vmatprep.subr.mxu0 0.0
    %2503 = vmatpush1.msra.mxu0 0.0
    %2504 = vmatprep.subr.mxu0 0.0
    %2505 = vmatpush1.msra.mxu0 0.0
    %2506 = vmatprep.subr.mxu0 0.0
    %2507 = vmatpush1.msra.mxu0 0.0
    %2508 = vmatprep.subr.mxu0 0.0
    %2509 = vmatpush1.msra.mxu0 0.0
    %2510 = vmatprep.subr.mxu0 0.0
    %2511 = vmatpush1.msra.mxu0 0.0
    %2512 = vmatprep.subr.mxu0 0.0
    %2513 = vmatpush1.msra.mxu0 0.0
    %2514 = vmatprep.subr.mxu0 0.0
    %2515 = vmatpush1.msra.mxu0 0.0
    %2516 = vmatprep.subr.mxu0 0.0
    %2517 = vmatpush1.msra.mxu0 0.0
    %2518 = vmatprep.subr.mxu0 0.0
    %2519 = vmatpush1.msra.mxu0 0.0
    %2520 = vmatprep.subr.mxu0 0.0
    %2521 = vmatpush1.msra.mxu0 0.0
    %2522 = vmatprep.mubr.f32.mxu0 0.0
    %2523 = vmatmul.mubr.f32.gmra.mrb[0].mxu0 %v2456
    %v2524 = vpop.f32.mrb[0].mxu0
    %v2525 = vadd.f32 0.0, %v2524
    %v2526 = vpop.f32.mrb[0].mxu0
    %v2527 = vadd.f32 0.0, %v2526
    %2528 = vdwg.mxu0
    %v2529 = vadd.f32 %v2451, %v2525
    %v2530 = vadd.f32 %v2452, %v2527
    %v2531 = vxor.u32 %v2529, 2147483648
    %v2532 = vmul.f32 %v2531, 1.442695
    %v2533 = vpow.pop %v2532
    %v2534 = vadd.f32 %v2533, 1.0
    %v2535 = vrcp.pop %v2534
    %v2536 = vmul.f32 1.0, %v2535
    %v2537 = vtanh.pop %v2530
    %v2538 = vxor.u32 %v2530, 2147483648
    %v2539 = vmul.f32 %v2538, 1.442695
    %v2540 = vpow.pop %v2539
    %v2541 = vadd.f32 %v2540, 1.0
    %v2542 = vrcp.pop %v2541
    %v2543 = vmul.f32 1.0, %v2542
    %v2544 = vmul.f32 %v2536, %v2448
    %v2545 = vmul.f32 %v2536, %v2537
    %2547 = vrot.lane.b32.xlu0 %v2545, 64
    %v2548 = vpop.permute.xlu0 %2547
    %v2550 = vadd.f32 %v2544, %v2548
    %v2551 = vtanh.pop %v2550
    %v2552 = vmul.f32 %v2543, %v2551
    %v2553 = vld [vmem:[#allocation4 + $0x20] sm:$0xff]
    %v2554 = vld [vmem:[#allocation4 + $0x28] sm:$0xff]
    %2556 = vrot.lane.b32.xlu0 %v2552, 64
    %v2557 = vpop.permute.xlu0 %2556
    %v2558 = vsel %vm282, %v2557, 0
    %2560 = vmatprep.subr.mxu0 %v2339
    %2561 = vmatpush1.msra.mxu0 %v2338
    %2562 = vmatprep.subr.mxu0 %v2341
    %2563 = vmatpush1.msra.mxu0 %v2340
    %2564 = vmatprep.subr.mxu0 %v2343
    %2565 = vmatpush1.msra.mxu0 %v2342
    %2566 = vmatprep.subr.mxu0 %v2345
    %2567 = vmatpush1.msra.mxu0 %v2344
    %2568 = vmatprep.subr.mxu0 %v2347
    %2569 = vmatpush1.msra.mxu0 %v2346
    %2570 = vmatprep.subr.mxu0 %v2349
    %2571 = vmatpush1.msra.mxu0 %v2348
    %2572 = vmatprep.subr.mxu0 %v2351
    %2573 = vmatpush1.msra.mxu0 %v2350
    %2574 = vmatprep.subr.mxu0 %v2353
    %2575 = vmatpush1.msra.mxu0 %v2352
    %2576 = vmatprep.subr.mxu0 0.0
    %2577 = vmatpush1.msra.mxu0 0.0
    %2578 = vmatprep.subr.mxu0 0.0
    %2579 = vmatpush1.msra.mxu0 0.0
    %2580 = vmatprep.subr.mxu0 0.0
    %2581 = vmatpush1.msra.mxu0 0.0
    %2582 = vmatprep.subr.mxu0 0.0
    %2583 = vmatpush1.msra.mxu0 0.0
    %2584 = vmatprep.subr.mxu0 0.0
    %2585 = vmatpush1.msra.mxu0 0.0
    %2586 = vmatprep.subr.mxu0 0.0
    %2587 = vmatpush1.msra.mxu0 0.0
    %2588 = vmatprep.subr.mxu0 0.0
    %2589 = vmatpush1.msra.mxu0 0.0
    %2590 = vmatprep.subr.mxu0 0.0
    %2591 = vmatpush1.msra.mxu0 0.0
    %2592 = vmatprep.subr.mxu0 0.0
    %2593 = vmatpush1.msra.mxu0 0.0
    %2594 = vmatprep.subr.mxu0 0.0
    %2595 = vmatpush1.msra.mxu0 0.0
    %2596 = vmatprep.subr.mxu0 0.0
    %2597 = vmatpush1.msra.mxu0 0.0
    %2598 = vmatprep.subr.mxu0 0.0
    %2599 = vmatpush1.msra.mxu0 0.0
    %2600 = vmatprep.subr.mxu0 0.0
    %2601 = vmatpush1.msra.mxu0 0.0
    %2602 = vmatprep.subr.mxu0 0.0
    %2603 = vmatpush1.msra.mxu0 0.0
    %2604 = vmatprep.subr.mxu0 0.0
    %2605 = vmatpush1.msra.mxu0 0.0
    %2606 = vmatprep.subr.mxu0 0.0
    %2607 = vmatpush1.msra.mxu0 0.0
    %2608 = vmatprep.subr.mxu0 0.0
    %2609 = vmatpush1.msra.mxu0 0.0
    %2610 = vmatprep.subr.mxu0 0.0
    %2611 = vmatpush1.msra.mxu0 0.0
    %2612 = vmatprep.subr.mxu0 0.0
    %2613 = vmatpush1.msra.mxu0 0.0
    %2614 = vmatprep.subr.mxu0 0.0
    %2615 = vmatpush1.msra.mxu0 0.0
    %2616 = vmatprep.subr.mxu0 0.0
    %2617 = vmatpush1.msra.mxu0 0.0
    %2618 = vmatprep.subr.mxu0 0.0
    %2619 = vmatpush1.msra.mxu0 0.0
    %2620 = vmatprep.subr.mxu0 0.0
    %2621 = vmatpush1.msra.mxu0 0.0
    %2622 = vmatprep.subr.mxu0 0.0
    %2623 = vmatpush1.msra.mxu0 0.0
    %2624 = vmatprep.mubr.f32.mxu0 0.0
    %2625 = vmatmul.mubr.f32.gmra.mrb[0].mxu0 %v2558
    %v2626 = vpop.f32.mrb[0].mxu0
    %v2627 = vadd.f32 0.0, %v2626
    %v2628 = vpop.f32.mrb[0].mxu0
    %v2629 = vadd.f32 0.0, %v2628
    %2630 = vdwg.mxu0
    %v2631 = vadd.f32 %v2553, %v2627
    %v2632 = vadd.f32 %v2554, %v2629
    %v2633 = vxor.u32 %v2631, 2147483648
    %v2634 = vmul.f32 %v2633, 1.442695
    %v2635 = vpow.pop %v2634
    %v2636 = vadd.f32 %v2635, 1.0
    %v2637 = vrcp.pop %v2636
    %v2638 = vmul.f32 1.0, %v2637
    %v2639 = vtanh.pop %v2632
    %v2640 = vxor.u32 %v2632, 2147483648
    %v2641 = vmul.f32 %v2640, 1.442695
    %v2642 = vpow.pop %v2641
    %v2643 = vadd.f32 %v2642, 1.0
    %v2644 = vrcp.pop %v2643
    %v2645 = vmul.f32 1.0, %v2644
    %v2646 = vmul.f32 %v2638, %v2550
    %v2647 = vmul.f32 %v2638, %v2639
    %2649 = vrot.lane.b32.xlu0 %v2647, 64
    %v2650 = vpop.permute.xlu0 %2649
    %v2652 = vadd.f32 %v2646, %v2650
    %v2653 = vtanh.pop %v2652
    %v2654 = vmul.f32 %v2645, %v2653
    %v2655 = vld [vmem:[#allocation4 + $0x30] sm:$0xff]
    %v2656 = vld [vmem:[#allocation4 + $0x38] sm:$0xff]
    %2658 = vrot.lane.b32.xlu0 %v2654, 64
    %v2659 = vpop.permute.xlu0 %2658
    %v2660 = vsel %vm282, %v2659, 0
    %2662 = vmatprep.subr.mxu0 %v2339
    %2663 = vmatpush1.msra.mxu0 %v2338
    %2664 = vmatprep.subr.mxu0 %v2341
    %2665 = vmatpush1.msra.mxu0 %v2340
    %2666 = vmatprep.subr.mxu0 %v2343
    %2667 = vmatpush1.msra.mxu0 %v2342
    %2668 = vmatprep.subr.mxu0 %v2345
    %2669 = vmatpush1.msra.mxu0 %v2344
    %2670 = vmatprep.subr.mxu0 %v2347
    %2671 = vmatpush1.msra.mxu0 %v2346
    %2672 = vmatprep.subr.mxu0 %v2349
    %2673 = vmatpush1.msra.mxu0 %v2348
    %2674 = vmatprep.subr.mxu0 %v2351
    %2675 = vmatpush1.msra.mxu0 %v2350
    %2676 = vmatprep.subr.mxu0 %v2353
    %2677 = vmatpush1.msra.mxu0 %v2352
    %2678 = vmatprep.subr.mxu0 0.0
    %2679 = vmatpush1.msra.mxu0 0.0
    %2680 = vmatprep.subr.mxu0 0.0
    %2681 = vmatpush1.msra.mxu0 0.0
    %2682 = vmatprep.subr.mxu0 0.0
    %2683 = vmatpush1.msra.mxu0 0.0
    %2684 = vmatprep.subr.mxu0 0.0
    %2685 = vmatpush1.msra.mxu0 0.0
    %2686 = vmatprep.subr.mxu0 0.0
    %2687 = vmatpush1.msra.mxu0 0.0
    %2688 = vmatprep.subr.mxu0 0.0
    %2689 = vmatpush1.msra.mxu0 0.0
    %2690 = vmatprep.subr.mxu0 0.0
    %2691 = vmatpush1.msra.mxu0 0.0
    %2692 = vmatprep.subr.mxu0 0.0
    %2693 = vmatpush1.msra.mxu0 0.0
    %2694 = vmatprep.subr.mxu0 0.0
    %2695 = vmatpush1.msra.mxu0 0.0
    %2696 = vmatprep.subr.mxu0 0.0
    %2697 = vmatpush1.msra.mxu0 0.0
    %2698 = vmatprep.subr.mxu0 0.0
    %2699 = vmatpush1.msra.mxu0 0.0
    %2700 = vmatprep.subr.mxu0 0.0
    %2701 = vmatpush1.msra.mxu0 0.0
    %2702 = vmatprep.subr.mxu0 0.0
    %2703 = vmatpush1.msra.mxu0 0.0
    %2704 = vmatprep.subr.mxu0 0.0
    %2705 = vmatpush1.msra.mxu0 0.0
    %2706 = vmatprep.subr.mxu0 0.0
    %2707 = vmatpush1.msra.mxu0 0.0
    %2708 = vmatprep.subr.mxu0 0.0
    %2709 = vmatpush1.msra.mxu0 0.0
    %2710 = vmatprep.subr.mxu0 0.0
    %2711 = vmatpush1.msra.mxu0 0.0
    %2712 = vmatprep.subr.mxu0 0.0
    %2713 = vmatpush1.msra.mxu0 0.0
    %2714 = vmatprep.subr.mxu0 0.0
    %2715 = vmatpush1.msra.mxu0 0.0
    %2716 = vmatprep.subr.mxu0 0.0
    %2717 = vmatpush1.msra.mxu0 0.0
    %2718 = vmatprep.subr.mxu0 0.0
    %2719 = vmatpush1.msra.mxu0 0.0
    %2720 = vmatprep.subr.mxu0 0.0
    %2721 = vmatpush1.msra.mxu0 0.0
    %2722 = vmatprep.subr.mxu0 0.0
    %2723 = vmatpush1.msra.mxu0 0.0
    %2724 = vmatprep.subr.mxu0 0.0
    %2725 = vmatpush1.msra.mxu0 0.0
    %2726 = vmatprep.mubr.f32.mxu0 0.0
    %2727 = vmatmul.mubr.f32.gmra.mrb[0].mxu0 %v2660
    %v2728 = vpop.f32.mrb[0].mxu0
    %v2729 = vadd.f32 0.0, %v2728
    %v2730 = vpop.f32.mrb[0].mxu0
    %v2731 = vadd.f32 0.0, %v2730
    %2732 = vdwg.mxu0
    %v2733 = vadd.f32 %v2655, %v2729
    %v2734 = vadd.f32 %v2656, %v2731
    %v2735 = vxor.u32 %v2733, 2147483648
    %v2736 = vmul.f32 %v2735, 1.442695
    %v2737 = vpow.pop %v2736
    %v2738 = vadd.f32 %v2737, 1.0
    %v2739 = vrcp.pop %v2738
    %v2740 = vmul.f32 1.0, %v2739
    %v2741 = vtanh.pop %v2734
    %v2742 = vxor.u32 %v2734, 2147483648
    %v2743 = vmul.f32 %v2742, 1.442695
    %v2744 = vpow.pop %v2743
    %v2745 = vadd.f32 %v2744, 1.0
    %v2746 = vrcp.pop %v2745
    %v2747 = vmul.f32 1.0, %v2746
    %v2748 = vmul.f32 %v2740, %v2652
    %v2749 = vmul.f32 %v2740, %v2741
    %2751 = vrot.lane.b32.xlu0 %v2749, 64
    %v2752 = vpop.permute.xlu0 %2751
    %v2754 = vadd.f32 %v2748, %v2752
    %v2755 = vtanh.pop %v2754
    %v2756 = vmul.f32 %v2747, %v2755
    %v2757 = vld [vmem:[#allocation4 + $0x40] sm:$0xff]
    %v2758 = vld [vmem:[#allocation4 + $0x48] sm:$0xff]
    %2760 = vrot.lane.b32.xlu0 %v2756, 64
    %v2761 = vpop.permute.xlu0 %2760
    %v2762 = vsel %vm282, %v2761, 0
    %2764 = vmatprep.subr.mxu0 %v2339
    %2765 = vmatpush1.msra.mxu0 %v2338
    %2766 = vmatprep.subr.mxu0 %v2341
    %2767 = vmatpush1.msra.mxu0 %v2340
    %2768 = vmatprep.subr.mxu0 %v2343
    %2769 = vmatpush1.msra.mxu0 %v2342
    %2770 = vmatprep.subr.mxu0 %v2345
    %2771 = vmatpush1.msra.mxu0 %v2344
    %2772 = vmatprep.subr.mxu0 %v2347
    %2773 = vmatpush1.msra.mxu0 %v2346
    %2774 = vmatprep.subr.mxu0 %v2349
    %2775 = vmatpush1.msra.mxu0 %v2348
    %2776 = vmatprep.subr.mxu0 %v2351
    %2777 = vmatpush1.msra.mxu0 %v2350
    %2778 = vmatprep.subr.mxu0 %v2353
    %2779 = vmatpush1.msra.mxu0 %v2352
    %2780 = vmatprep.subr.mxu0 0.0
    %2781 = vmatpush1.msra.mxu0 0.0
    %2782 = vmatprep.subr.mxu0 0.0
    %2783 = vmatpush1.msra.mxu0 0.0
    %2784 = vmatprep.subr.mxu0 0.0
    %2785 = vmatpush1.msra.mxu0 0.0
    %2786 = vmatprep.subr.mxu0 0.0
    %2787 = vmatpush1.msra.mxu0 0.0
    %2788 = vmatprep.subr.mxu0 0.0
    %2789 = vmatpush1.msra.mxu0 0.0
    %2790 = vmatprep.subr.mxu0 0.0
    %2791 = vmatpush1.msra.mxu0 0.0
    %2792 = vmatprep.subr.mxu0 0.0
    %2793 = vmatpush1.msra.mxu0 0.0
    %2794 = vmatprep.subr.mxu0 0.0
    %2795 = vmatpush1.msra.mxu0 0.0
    %2796 = vmatprep.subr.mxu0 0.0
    %2797 = vmatpush1.msra.mxu0 0.0
    %2798 = vmatprep.subr.mxu0 0.0
    %2799 = vmatpush1.msra.mxu0 0.0
    %2800 = vmatprep.subr.mxu0 0.0
    %2801 = vmatpush1.msra.mxu0 0.0
    %2802 = vmatprep.subr.mxu0 0.0
    %2803 = vmatpush1.msra.mxu0 0.0
    %2804 = vmatprep.subr.mxu0 0.0
    %2805 = vmatpush1.msra.mxu0 0.0
    %2806 = vmatprep.subr.mxu0 0.0
    %2807 = vmatpush1.msra.mxu0 0.0
    %2808 = vmatprep.subr.mxu0 0.0
    %2809 = vmatpush1.msra.mxu0 0.0
    %2810 = vmatprep.subr.mxu0 0.0
    %2811 = vmatpush1.msra.mxu0 0.0
    %2812 = vmatprep.subr.mxu0 0.0
    %2813 = vmatpush1.msra.mxu0 0.0
    %2814 = vmatprep.subr.mxu0 0.0
    %2815 = vmatpush1.msra.mxu0 0.0
    %2816 = vmatprep.subr.mxu0 0.0
    %2817 = vmatpush1.msra.mxu0 0.0
    %2818 = vmatprep.subr.mxu0 0.0
    %2819 = vmatpush1.msra.mxu0 0.0
    %2820 = vmatprep.subr.mxu0 0.0
    %2821 = vmatpush1.msra.mxu0 0.0
    %2822 = vmatprep.subr.mxu0 0.0
    %2823 = vmatpush1.msra.mxu0 0.0
    %2824 = vmatprep.subr.mxu0 0.0
    %2825 = vmatpush1.msra.mxu0 0.0
    %2826 = vmatprep.subr.mxu0 0.0
    %2827 = vmatpush1.msra.mxu0 0.0
    %2828 = vmatprep.mubr.f32.mxu0 0.0
    %2829 = vmatmul.mubr.f32.gmra.mrb[0].mxu0 %v2762
    %v2830 = vpop.f32.mrb[0].mxu0
    %v2831 = vadd.f32 0.0, %v2830
    %v2832 = vpop.f32.mrb[0].mxu0
    %v2833 = vadd.f32 0.0, %v2832
    %2834 = vdwg.mxu0
    %v2835 = vadd.f32 %v2757, %v2831
    %v2836 = vadd.f32 %v2758, %v2833
    %v2837 = vxor.u32 %v2835, 2147483648
    %v2838 = vmul.f32 %v2837, 1.442695
    %v2839 = vpow.pop %v2838
    %v2840 = vadd.f32 %v2839, 1.0
    %v2841 = vrcp.pop %v2840
    %v2842 = vmul.f32 1.0, %v2841
    %v2843 = vtanh.pop %v2836
    %v2844 = vxor.u32 %v2836, 2147483648
    %v2845 = vmul.f32 %v2844, 1.442695
    %v2846 = vpow.pop %v2845
    %v2847 = vadd.f32 %v2846, 1.0
    %v2848 = vrcp.pop %v2847
    %v2849 = vmul.f32 1.0, %v2848
    %v2850 = vmul.f32 %v2842, %v2754
    %v2851 = vmul.f32 %v2842, %v2843
    %2853 = vrot.lane.b32.xlu0 %v2851, 64
    %v2854 = vpop.permute.xlu0 %2853
    %v2856 = vadd.f32 %v2850, %v2854
    %v2857 = vtanh.pop %v2856
    %v2858 = vmul.f32 %v2849, %v2857
    %v2859 = vld [vmem:[#allocation4 + $0x50] sm:$0xff]
    %v2860 = vld [vmem:[#allocation4 + $0x58] sm:$0xff]
    %2862 = vrot.lane.b32.xlu0 %v2858, 64
    %v2863 = vpop.permute.xlu0 %2862
    %v2864 = vsel %vm282, %v2863, 0
    %2866 = vmatprep.subr.mxu0 %v2339
    %2867 = vmatpush1.msra.mxu0 %v2338
    %2868 = vmatprep.subr.mxu0 %v2341
    %2869 = vmatpush1.msra.mxu0 %v2340
    %2870 = vmatprep.subr.mxu0 %v2343
    %2871 = vmatpush1.msra.mxu0 %v2342
    %2872 = vmatprep.subr.mxu0 %v2345
    %2873 = vmatpush1.msra.mxu0 %v2344
    %2874 = vmatprep.subr.mxu0 %v2347
    %2875 = vmatpush1.msra.mxu0 %v2346
    %2876 = vmatprep.subr.mxu0 %v2349
    %2877 = vmatpush1.msra.mxu0 %v2348
    %2878 = vmatprep.subr.mxu0 %v2351
    %2879 = vmatpush1.msra.mxu0 %v2350
    %2880 = vmatprep.subr.mxu0 %v2353
    %2881 = vmatpush1.msra.mxu0 %v2352
    %2882 = vmatprep.subr.mxu0 0.0
    %2883 = vmatpush1.msra.mxu0 0.0
    %2884 = vmatprep.subr.mxu0 0.0
    %2885 = vmatpush1.msra.mxu0 0.0
    %2886 = vmatprep.subr.mxu0 0.0
    %2887 = vmatpush1.msra.mxu0 0.0
    %2888 = vmatprep.subr.mxu0 0.0
    %2889 = vmatpush1.msra.mxu0 0.0
    %2890 = vmatprep.subr.mxu0 0.0
    %2891 = vmatpush1.msra.mxu0 0.0
    %2892 = vmatprep.subr.mxu0 0.0
    %2893 = vmatpush1.msra.mxu0 0.0
    %2894 = vmatprep.subr.mxu0 0.0
    %2895 = vmatpush1.msra.mxu0 0.0
    %2896 = vmatprep.subr.mxu0 0.0
    %2897 = vmatpush1.msra.mxu0 0.0
    %2898 = vmatprep.subr.mxu0 0.0
    %2899 = vmatpush1.msra.mxu0 0.0
    %2900 = vmatprep.subr.mxu0 0.0
    %2901 = vmatpush1.msra.mxu0 0.0
    %2902 = vmatprep.subr.mxu0 0.0
    %2903 = vmatpush1.msra.mxu0 0.0
    %2904 = vmatprep.subr.mxu0 0.0
    %2905 = vmatpush1.msra.mxu0 0.0
    %2906 = vmatprep.subr.mxu0 0.0
    %2907 = vmatpush1.msra.mxu0 0.0
    %2908 = vmatprep.subr.mxu0 0.0
    %2909 = vmatpush1.msra.mxu0 0.0
    %2910 = vmatprep.subr.mxu0 0.0
    %2911 = vmatpush1.msra.mxu0 0.0
    %2912 = vmatprep.subr.mxu0 0.0
    %2913 = vmatpush1.msra.mxu0 0.0
    %2914 = vmatprep.subr.mxu0 0.0
    %2915 = vmatpush1.msra.mxu0 0.0
    %2916 = vmatprep.subr.mxu0 0.0
    %2917 = vmatpush1.msra.mxu0 0.0
    %2918 = vmatprep.subr.mxu0 0.0
    %2919 = vmatpush1.msra.mxu0 0.0
    %2920 = vmatprep.subr.mxu0 0.0
    %2921 = vmatpush1.msra.mxu0 0.0
    %2922 = vmatprep.subr.mxu0 0.0
    %2923 = vmatpush1.msra.mxu0 0.0
    %2924 = vmatprep.subr.mxu0 0.0
    %2925 = vmatpush1.msra.mxu0 0.0
    %2926 = vmatprep.subr.mxu0 0.0
    %2927 = vmatpush1.msra.mxu0 0.0
    %2928 = vmatprep.subr.mxu0 0.0
    %2929 = vmatpush1.msra.mxu0 0.0
    %2930 = vmatprep.mubr.f32.mxu0 0.0
    %2931 = vmatmul.mubr.f32.gmra.mrb[0].mxu0 %v2864
    %v2932 = vpop.f32.mrb[0].mxu0
    %v2933 = vadd.f32 0.0, %v2932
    %v2934 = vpop.f32.mrb[0].mxu0
    %v2935 = vadd.f32 0.0, %v2934
    %2936 = vdwg.mxu0
    %v2937 = vadd.f32 %v2859, %v2933
    %v2938 = vadd.f32 %v2860, %v2935
    %v2939 = vxor.u32 %v2937, 2147483648
    %v2940 = vmul.f32 %v2939, 1.442695
    %v2941 = vpow.pop %v2940
    %v2942 = vadd.f32 %v2941, 1.0
    %v2943 = vrcp.pop %v2942
    %v2944 = vmul.f32 1.0, %v2943
    %v2945 = vtanh.pop %v2938
    %v2946 = vxor.u32 %v2938, 2147483648
    %v2947 = vmul.f32 %v2946, 1.442695
    %v2948 = vpow.pop %v2947
    %v2949 = vadd.f32 %v2948, 1.0
    %v2950 = vrcp.pop %v2949
    %v2951 = vmul.f32 1.0, %v2950
    %v2952 = vmul.f32 %v2944, %v2856
    %v2953 = vmul.f32 %v2944, %v2945
    %2955 = vrot.lane.b32.xlu0 %v2953, 64
    %v2956 = vpop.permute.xlu0 %2955
    %v2958 = vadd.f32 %v2952, %v2956
    %v2959 = vtanh.pop %v2958
    %v2960 = vmul.f32 %v2951, %v2959
    %v2961 = vld [vmem:[#allocation4 + $0x60] sm:$0xff]
    %v2962 = vld [vmem:[#allocation4 + $0x68] sm:$0xff]
    %2964 = vrot.lane.b32.xlu0 %v2960, 64
    %v2965 = vpop.permute.xlu0 %2964
    %v2966 = vsel %vm282, %v2965, 0
    %2968 = vmatprep.subr.mxu0 %v2339
    %2969 = vmatpush1.msra.mxu0 %v2338
    %2970 = vmatprep.subr.mxu0 %v2341
    %2971 = vmatpush1.msra.mxu0 %v2340
    %2972 = vmatprep.subr.mxu0 %v2343
    %2973 = vmatpush1.msra.mxu0 %v2342
    %2974 = vmatprep.subr.mxu0 %v2345
    %2975 = vmatpush1.msra.mxu0 %v2344
    %2976 = vmatprep.subr.mxu0 %v2347
    %2977 = vmatpush1.msra.mxu0 %v2346
    %2978 = vmatprep.subr.mxu0 %v2349
    %2979 = vmatpush1.msra.mxu0 %v2348
    %2980 = vmatprep.subr.mxu0 %v2351
    %2981 = vmatpush1.msra.mxu0 %v2350
    %2982 = vmatprep.subr.mxu0 %v2353
    %2983 = vmatpush1.msra.mxu0 %v2352
    %2984 = vmatprep.subr.mxu0 0.0
    %2985 = vmatpush1.msra.mxu0 0.0
    %2986 = vmatprep.subr.mxu0 0.0
    %2987 = vmatpush1.msra.mxu0 0.0
    %2988 = vmatprep.subr.mxu0 0.0
    %2989 = vmatpush1.msra.mxu0 0.0
    %2990 = vmatprep.subr.mxu0 0.0
    %2991 = vmatpush1.msra.mxu0 0.0
    %2992 = vmatprep.subr.mxu0 0.0
    %2993 = vmatpush1.msra.mxu0 0.0
    %2994 = vmatprep.subr.mxu0 0.0
    %2995 = vmatpush1.msra.mxu0 0.0
    %2996 = vmatprep.subr.mxu0 0.0
    %2997 = vmatpush1.msra.mxu0 0.0
    %2998 = vmatprep.subr.mxu0 0.0
    %2999 = vmatpush1.msra.mxu0 0.0
    %3000 = vmatprep.subr.mxu0 0.0
    %3001 = vmatpush1.msra.mxu0 0.0
    %3002 = vmatprep.subr.mxu0 0.0
    %3003 = vmatpush1.msra.mxu0 0.0
    %3004 = vmatprep.subr.mxu0 0.0
    %3005 = vmatpush1.msra.mxu0 0.0
    %3006 = vmatprep.subr.mxu0 0.0
    %3007 = vmatpush1.msra.mxu0 0.0
    %3008 = vmatprep.subr.mxu0 0.0
    %3009 = vmatpush1.msra.mxu0 0.0
    %3010 = vmatprep.subr.mxu0 0.0
    %3011 = vmatpush1.msra.mxu0 0.0
    %3012 = vmatprep.subr.mxu0 0.0
    %3013 = vmatpush1.msra.mxu0 0.0
    %3014 = vmatprep.subr.mxu0 0.0
    %3015 = vmatpush1.msra.mxu0 0.0
    %3016 = vmatprep.subr.mxu0 0.0
    %3017 = vmatpush1.msra.mxu0 0.0
    %3018 = vmatprep.subr.mxu0 0.0
    %3019 = vmatpush1.msra.mxu0 0.0
    %3020 = vmatprep.subr.mxu0 0.0
    %3021 = vmatpush1.msra.mxu0 0.0
    %3022 = vmatprep.subr.mxu0 0.0
    %3023 = vmatpush1.msra.mxu0 0.0
    %3024 = vmatprep.subr.mxu0 0.0
    %3025 = vmatpush1.msra.mxu0 0.0
    %3026 = vmatprep.subr.mxu0 0.0
    %3027 = vmatpush1.msra.mxu0 0.0
    %3028 = vmatprep.subr.mxu0 0.0
    %3029 = vmatpush1.msra.mxu0 0.0
    %3030 = vmatprep.subr.mxu0 0.0
    %3031 = vmatpush1.msra.mxu0 0.0
    %3032 = vmatprep.mubr.f32.mxu0 0.0
    %3033 = vmatmul.mubr.f32.gmra.mrb[0].mxu0 %v2966
    %v3034 = vpop.f32.mrb[0].mxu0
    %v3035 = vadd.f32 0.0, %v3034
    %v3036 = vpop.f32.mrb[0].mxu0
    %v3037 = vadd.f32 0.0, %v3036
    %3038 = vdwg.mxu0
    %v3039 = vadd.f32 %v2961, %v3035
    %v3040 = vadd.f32 %v2962, %v3037
    %v3041 = vxor.u32 %v3039, 2147483648
    %v3042 = vmul.f32 %v3041, 1.442695
    %v3043 = vpow.pop %v3042
    %v3044 = vadd.f32 %v3043, 1.0
    %v3045 = vrcp.pop %v3044
    %v3046 = vmul.f32 1.0, %v3045
    %v3047 = vtanh.pop %v3040
    %v3048 = vxor.u32 %v3040, 2147483648
    %v3049 = vmul.f32 %v3048, 1.442695
    %v3050 = vpow.pop %v3049
    %v3051 = vadd.f32 %v3050, 1.0
    %v3052 = vrcp.pop %v3051
    %v3053 = vmul.f32 1.0, %v3052
    %v3054 = vmul.f32 %v3046, %v2958
    %v3055 = vmul.f32 %v3046, %v3047
    %3057 = vrot.lane.b32.xlu0 %v3055, 64
    %v3058 = vpop.permute.xlu0 %3057
    %v3060 = vadd.f32 %v3054, %v3058
    %v3061 = vtanh.pop %v3060
    %v3062 = vmul.f32 %v3053, %v3061
    %v3063 = vld [vmem:[#allocation4 + $0x70] sm:$0xff]
    %v3064 = vld [vmem:[#allocation4 + $0x78] sm:$0xff]
    %3066 = vrot.lane.b32.xlu0 %v3062, 64
    %v3067 = vpop.permute.xlu0 %3066
    %v3068 = vsel %vm282, %v3067, 0
    %3070 = vmatprep.subr.mxu0 %v2339
    %3071 = vmatpush1.msra.mxu0 %v2338
    %3072 = vmatprep.subr.mxu0 %v2341
    %3073 = vmatpush1.msra.mxu0 %v2340
    %3074 = vmatprep.subr.mxu0 %v2343
    %3075 = vmatpush1.msra.mxu0 %v2342
    %3076 = vmatprep.subr.mxu0 %v2345
    %3077 = vmatpush1.msra.mxu0 %v2344
    %3078 = vmatprep.subr.mxu0 %v2347
    %3079 = vmatpush1.msra.mxu0 %v2346
    %3080 = vmatprep.subr.mxu0 %v2349
    %3081 = vmatpush1.msra.mxu0 %v2348
    %3082 = vmatprep.subr.mxu0 %v2351
    %3083 = vmatpush1.msra.mxu0 %v2350
    %3084 = vmatprep.subr.mxu0 %v2353
    %3085 = vmatpush1.msra.mxu0 %v2352
    %3086 = vmatprep.subr.mxu0 0.0
    %3087 = vmatpush1.msra.mxu0 0.0
    %3088 = vmatprep.subr.mxu0 0.0
    %3089 = vmatpush1.msra.mxu0 0.0
    %3090 = vmatprep.subr.mxu0 0.0
    %3091 = vmatpush1.msra.mxu0 0.0
    %3092 = vmatprep.subr.mxu0 0.0
    %3093 = vmatpush1.msra.mxu0 0.0
    %3094 = vmatprep.subr.mxu0 0.0
    %3095 = vmatpush1.msra.mxu0 0.0
    %3096 = vmatprep.subr.mxu0 0.0
    %3097 = vmatpush1.msra.mxu0 0.0
    %3098 = vmatprep.subr.mxu0 0.0
    %3099 = vmatpush1.msra.mxu0 0.0
    %3100 = vmatprep.subr.mxu0 0.0
    %3101 = vmatpush1.msra.mxu0 0.0
    %3102 = vmatprep.subr.mxu0 0.0
    %3103 = vmatpush1.msra.mxu0 0.0
    %3104 = vmatprep.subr.mxu0 0.0
    %3105 = vmatpush1.msra.mxu0 0.0
    %3106 = vmatprep.subr.mxu0 0.0
    %3107 = vmatpush1.msra.mxu0 0.0
    %3108 = vmatprep.subr.mxu0 0.0
    %3109 = vmatpush1.msra.mxu0 0.0
    %3110 = vmatprep.subr.mxu0 0.0
    %3111 = vmatpush1.msra.mxu0 0.0
    %3112 = vmatprep.subr.mxu0 0.0
    %3113 = vmatpush1.msra.mxu0 0.0
    %3114 = vmatprep.subr.mxu0 0.0
    %3115 = vmatpush1.msra.mxu0 0.0
    %3116 = vmatprep.subr.mxu0 0.0
    %3117 = vmatpush1.msra.mxu0 0.0
    %3118 = vmatprep.subr.mxu0 0.0
    %3119 = vmatpush1.msra.mxu0 0.0
    %3120 = vmatprep.subr.mxu0 0.0
    %3121 = vmatpush1.msra.mxu0 0.0
    %3122 = vmatprep.subr.mxu0 0.0
    %3123 = vmatpush1.msra.mxu0 0.0
    %3124 = vmatprep.subr.mxu0 0.0
    %3125 = vmatpush1.msra.mxu0 0.0
    %3126 = vmatprep.subr.mxu0 0.0
    %3127 = vmatpush1.msra.mxu0 0.0
    %3128 = vmatprep.subr.mxu0 0.0
    %3129 = vmatpush1.msra.mxu0 0.0
    %3130 = vmatprep.subr.mxu0 0.0
    %3131 = vmatpush1.msra.mxu0 0.0
    %3132 = vmatprep.subr.mxu0 0.0
    %3133 = vmatpush1.msra.mxu0 0.0
    %3134 = vmatprep.mubr.f32.mxu0 0.0
    %3135 = vmatmul.mubr.f32.gmra.mrb[0].mxu0 %v3068
    %v3136 = vpop.f32.mrb[0].mxu0
    %v3137 = vadd.f32 0.0, %v3136
    %v3138 = vpop.f32.mrb[0].mxu0
    %v3139 = vadd.f32 0.0, %v3138
    %3140 = vdwg.mxu0
    %v3141 = vadd.f32 %v3063, %v3137
    %v3142 = vadd.f32 %v3064, %v3139
    %v3143 = vxor.u32 %v3141, 2147483648
    %v3144 = vmul.f32 %v3143, 1.442695
    %v3145 = vpow.pop %v3144
    %v3146 = vadd.f32 %v3145, 1.0
    %v3147 = vrcp.pop %v3146
    %v3148 = vmul.f32 1.0, %v3147
    %v3149 = vtanh.pop %v3142
    %v3150 = vxor.u32 %v3142, 2147483648
    %v3151 = vmul.f32 %v3150, 1.442695
    %v3152 = vpow.pop %v3151
    %v3153 = vadd.f32 %v3152, 1.0
    %v3154 = vrcp.pop %v3153
    %v3155 = vmul.f32 1.0, %v3154
    %v3156 = vmul.f32 %v3148, %v3060
    %v3157 = vmul.f32 %v3148, %v3149
    %3159 = vrot.lane.b32.xlu0 %v3157, 64
    %v3160 = vpop.permute.xlu0 %3159
    %v3162 = vadd.f32 %v3156, %v3160
    %v3163 = vtanh.pop %v3162
    %v3164 = vmul.f32 %v3155, %v3163
    %v3165 = vld [vmem:[%s10] sm:$0xff]
    %v3166 = vld [vmem:[%s10 + $0x8] sm:$0xff]
    %v3167 = vld [vmem:[%s10 + $0x10] sm:$0xff]
    %v3168 = vld [vmem:[%s10 + $0x18] sm:$0xff]
    %v3169 = vld [vmem:[%s10 + $0x20] sm:$0xff]
    %v3170 = vld [vmem:[%s10 + $0x28] sm:$0xff]
    %v3171 = vld [vmem:[%s10 + $0x30] sm:$0xff]
    %v3172 = vld [vmem:[%s10 + $0x38] sm:$0xff]
    %v3173 = vld [vmem:[%s11] sm:$0x1]
    %v3175 = vlaneseq
    %v3176 = vshrl.u32 %v3175, 7
    %v3177 = vsub.s32 0, %v3176
    %v3178 = vrot.slane %v3173, %v3177
    %3181 = vrot.lane.b32.xlu0 %v3164, 64
    %v3182 = vpop.permute.xlu0 %3181
    %v3183 = vsel %vm282, %v3182, 0
    %3185 = vmatprep.subr.mxu0 0.0
    %3186 = vmatpush1.msra.mxu0 %v3165
    %3187 = vmatprep.subr.mxu0 0.0
    %3188 = vmatpush1.msra.mxu0 %v3166
    %3189 = vmatprep.subr.mxu0 0.0
    %3190 = vmatpush1.msra.mxu0 %v3167
    %3191 = vmatprep.subr.mxu0 0.0
    %3192 = vmatpush1.msra.mxu0 %v3168
    %3193 = vmatprep.subr.mxu0 0.0
    %3194 = vmatpush1.msra.mxu0 %v3169
    %3195 = vmatprep.subr.mxu0 0.0
    %3196 = vmatpush1.msra.mxu0 %v3170
    %3197 = vmatprep.subr.mxu0 0.0
    %3198 = vmatpush1.msra.mxu0 %v3171
    %3199 = vmatprep.subr.mxu0 0.0
    %3200 = vmatpush1.msra.mxu0 %v3172
    %3201 = vmatprep.subr.mxu0 0.0
    %3202 = vmatpush1.msra.mxu0 0.0
    %3203 = vmatprep.subr.mxu0 0.0
    %3204 = vmatpush1.msra.mxu0 0.0
    %3205 = vmatprep.subr.mxu0 0.0
    %3206 = vmatpush1.msra.mxu0 0.0
    %3207 = vmatprep.subr.mxu0 0.0
    %3208 = vmatpush1.msra.mxu0 0.0
    %3209 = vmatprep.subr.mxu0 0.0
    %3210 = vmatpush1.msra.mxu0 0.0
    %3211 = vmatprep.subr.mxu0 0.0
    %3212 = vmatpush1.msra.mxu0 0.0
    %3213 = vmatprep.subr.mxu0 0.0
    %3214 = vmatpush1.msra.mxu0 0.0
    %3215 = vmatprep.subr.mxu0 0.0
    %3216 = vmatpush1.msra.mxu0 0.0
    %3217 = vmatprep.subr.mxu0 0.0
    %3218 = vmatpush1.msra.mxu0 0.0
    %3219 = vmatprep.subr.mxu0 0.0
    %3220 = vmatpush1.msra.mxu0 0.0
    %3221 = vmatprep.subr.mxu0 0.0
    %3222 = vmatpush1.msra.mxu0 0.0
    %3223 = vmatprep.subr.mxu0 0.0
    %3224 = vmatpush1.msra.mxu0 0.0
    %3225 = vmatprep.subr.mxu0 0.0
    %3226 = vmatpush1.msra.mxu0 0.0
    %3227 = vmatprep.subr.mxu0 0.0
    %3228 = vmatpush1.msra.mxu0 0.0
    %3229 = vmatprep.subr.mxu0 0.0
    %3230 = vmatpush1.msra.mxu0 0.0
    %3231 = vmatprep.subr.mxu0 0.0
    %3232 = vmatpush1.msra.mxu0 0.0
    %3233 = vmatprep.subr.mxu0 0.0
    %3234 = vmatpush1.msra.mxu0 0.0
    %3235 = vmatprep.subr.mxu0 0.0
    %3236 = vmatpush1.msra.mxu0 0.0
    %3237 = vmatprep.subr.mxu0 0.0
    %3238 = vmatpush1.msra.mxu0 0.0
    %3239 = vmatprep.subr.mxu0 0.0
    %3240 = vmatpush1.msra.mxu0 0.0
    %3241 = vmatprep.subr.mxu0 0.0
    %3242 = vmatpush1.msra.mxu0 0.0
    %3243 = vmatprep.subr.mxu0 0.0
    %3244 = vmatpush1.msra.mxu0 0.0
    %3245 = vmatprep.subr.mxu0 0.0
    %3246 = vmatpush1.msra.mxu0 0.0
    %3247 = vmatprep.subr.mxu0 0.0
    %3248 = vmatpush1.msra.mxu0 0.0
    %3249 = vmatprep.mubr.f32.mxu0 0.0
    %3250 = vmatmul.mubr.f32.gmra.mrb[0].mxu0 %v3183
    %v3251 = vpop.f32.mrb[0].mxu0
    %v3252 = vadd.f32 %v3178, %v3251
    %v3253 = vpop.f32.mrb[0].mxu0
    %3254 = vdwg.mxu0
    %3255 = vst [vmem:[%s12] sm:$0xff] %v3252
    // Predicated region
    $region62: #{lstm_model_forward.1} parent=1 // pred_check
      _
    $region63: #{lstm_model_forward.1} parent=1 // pred_check_branch
      %3257 = sbr.rel (0) target = $region65
    $region64: #{lstm_model_forward.1} parent=1 // pred_region
      _
    $region65: #{lstm_model_forward.1} parent=1 // pred_fallthru
      _
    // Predicated region
    $region66: #{lstm_model_forward.1} parent=1 // pred_check
      _
    $region67: #{lstm_model_forward.1} parent=1 // pred_check_branch
      %3259 = sbr.rel (0) target = $region69
    $region68: #{lstm_model_forward.1} parent=1 // pred_region
      _
    $region69: #{lstm_model_forward.1} parent=1 // pred_fallthru
      _
    %3260 = vsyncpa [#allocation6], 1
    %3261 = vsyncpa [#allocation8], 1

</llo_original>
